<compile_context>
chip_gen: v7x
topology: tpu7x:2x2x1
jax: 0.10.0
libtpu: 0.0.40
codegen_flags: <defaults>
</compile_context>

<pallas_src>
import math
import jax
import jax.numpy as jnp
from jax import lax
from jax.experimental import pallas as pl
from jax.experimental.pallas import tpu as pltpu


# ---------------------------------------------------------------------------
# In-kernel helpers
# ---------------------------------------------------------------------------
def _mha_1head(x, wqT, wkT, wvT, bq, bk, bv, owT, ob):
    """Single-head nn.MultiheadAttention forward on a (T, E) tile.

    Weights arrive already split & transposed: wqT/wkT/wvT/owT are (E, E),
    biases are (1, E) and broadcast over tokens.
    """
    E = x.shape[-1]
    q = jnp.dot(x, wqT, preferred_element_type=jnp.float32) + bq
    k = jnp.dot(x, wkT, preferred_element_type=jnp.float32) + bk
    v = jnp.dot(x, wvT, preferred_element_type=jnp.float32) + bv
    # q @ k^T without materializing k.T (trans_b is native on the MXU).
    s = lax.dot_general(q, k, (((1,), (1,)), ((), ())),
                        preferred_element_type=jnp.float32)
    s = s * (1.0 / math.sqrt(E))
    m = jnp.max(s, axis=-1, keepdims=True)
    e = jnp.exp(s - m)
    l = jnp.sum(e, axis=-1, keepdims=True)
    a = e * pl.reciprocal(l, approx=True)          # divide on the idle EUP slot
    o = jnp.dot(a, v, preferred_element_type=jnp.float32)
    return jnp.dot(o, owT, preferred_element_type=jnp.float32) + ob


def _crossattn_tile(x, w):
    """One CrossAttn block on a single batch element x: (T, F)."""
    (wtT, bt, wq1, wk1, wv1, bq1, bk1, bv1, ow1, ob1,
     wvT, bvb, wq2, wk2, wv2, bq2, bk2, bv2, ow2, ob2) = w
    # attn_time[0]: Linear applied to x.transpose(1,2).  Contract x's token
    # axis (axis 0) directly -> (F, hid_len); no explicit transpose.
    t = lax.dot_general(x, wtT[...], (((0,), (0,)), ((), ())),
                        preferred_element_type=jnp.float32) + bt[...]
    # attn_time[1]: 1-head self-attention over F tokens of dim hid_len.
    t = _mha_1head(t, wq1[...], wk1[...], wv1[...],
                   bq1[...], bk1[...], bv1[...], ow1[...], ob1[...])
    # attn_var[0]: Linear applied to out.transpose(1,2).  Contract t's axis 0
    # (the F axis) directly -> (hid_len, hid_size); no explicit transpose.
    g = lax.dot_general(t, wvT[...], (((0,), (0,)), ((), ())),
                        preferred_element_type=jnp.float32) + bvb[...]
    # attn_var[1]: 1-head self-attention over hid_len tokens of dim hid_size.
    g = _mha_1head(g, wq2[...], wk2[...], wv2[...],
                   bq2[...], bk2[...], bv2[...], ow2[...], ob2[...])
    return g


_N_W = 20   # weight arrays per CrossAttn block


def _fused_kernel(x_ref, *refs):
    enc_w = refs[:_N_W]
    dec_w = refs[_N_W:2 * _N_W]
    o_ref = refs[2 * _N_W]
    x = x_ref[0]                                   # (seq_len, input_size)
    h = _crossattn_tile(x, enc_w)                  # Encoder CrossAttn
    h = jnp.maximum(h, 0.0)                        # Encoder ReLU
    y = _crossattn_tile(h, dec_w)                  # Decoder CrossAttn
    o_ref[0] = y


# ---------------------------------------------------------------------------
# Wrapper: one-time host-side weight layout + a single pallas_call
# ---------------------------------------------------------------------------
def _prep_crossattn(p):
    """One-time layout work: transpose linears / out_proj, split the fused
    in_proj into (transposed) wq/wk/wv, reshape biases to (1, E)."""
    def split_qkv(ipw, ipb):
        E = ipw.shape[1]
        return (ipw[:E].T, ipw[E:2 * E].T, ipw[2 * E:].T,
                ipb[:E].reshape(1, -1), ipb[E:2 * E].reshape(1, -1),
                ipb[2 * E:].reshape(1, -1))

    wq1, wk1, wv1, bq1, bk1, bv1 = split_qkv(p['ipw_t'], p['ipb_t'])
    wq2, wk2, wv2, bq2, bk2, bv2 = split_qkv(p['ipw_v'], p['ipb_v'])
    return [
        p['wt'].T, p['bt'].reshape(1, -1),
        wq1, wk1, wv1, bq1, bk1, bv1, p['ow_t'].T, p['ob_t'].reshape(1, -1),
        p['wv'].T, p['bv'].reshape(1, -1),
        wq2, wk2, wv2, bq2, bk2, bv2, p['ow_v'].T, p['ob_v'].reshape(1, -1),
    ]


def model_forward(x, enc_p, dec_p):
    """Encoder(CrossAttn+ReLU) -> Decoder(CrossAttn) in ONE pallas_call."""
    B, L, D = x.shape
    # Host-side, tiny, done once per call (not per grid step).
    weights = _prep_crossattn(enc_p) + _prep_crossattn(dec_p)

    in_specs = [pl.BlockSpec((1, L, D), lambda b: (b, 0, 0))]
    for w in weights:
        # Full (untiled) weight blocks; constant index_map -> fetched once.
        in_specs.append(pl.BlockSpec(w.shape, lambda b: (0, 0)))
    out_spec = pl.BlockSpec((1, L, D), lambda b: (b, 0, 0))

    return pl.pallas_call(
        _fused_kernel,
        out_shape=jax.ShapeDtypeStruct((B, L, D), jnp.float32),
        grid=(B,),
        in_specs=in_specs,
        out_specs=out_spec,
        compiler_params=pltpu.CompilerParams(
            # Batch grid stays parallel: on v7x the two batch elements run on
            # the two TensorCores; on v5e/v6e it is just a loop (no cost).
            dimension_semantics=("parallel",)),
    )(x, *weights)


# ---------------------------------------------------------------------------
# Deterministic parameter init (shapes from the module's __init__).
# seq_len != hid_len and input_size != hid_size here, so both projection
# layers are Linear (the Identity branch never triggers for these sizes).
# ---------------------------------------------------------------------------
def init_crossattn_params(key, seq_len, hid_len, input_size, hid_size):
    ks = jax.random.split(key, 12)
    s = 0.1
    n = lambda k, shape: (jax.random.normal(k, shape, jnp.float32) * s)
    return dict(
        wt=n(ks[0], (hid_len, seq_len)), bt=n(ks[1], (hid_len,)),
        ipw_t=n(ks[2], (3 * hid_len, hid_len)), ipb_t=n(ks[3], (3 * hid_len,)),
        ow_t=n(ks[4], (hid_len, hid_len)), ob_t=n(ks[5], (hid_len,)),
        wv=n(ks[6], (hid_size, input_size)), bv=n(ks[7], (hid_size,)),
        ipw_v=n(ks[8], (3 * hid_size, hid_size)), ipb_v=n(ks[9], (3 * hid_size,)),
        ow_v=n(ks[10], (hid_size, hid_size)), ob_v=n(ks[11], (hid_size,)),
    )


# ---------------------------------------------------------------------------
# Pure-JAX reference (for correctness check)
# ---------------------------------------------------------------------------
def _mha_ref(x, ipw, ipb, ow, ob):
    E = x.shape[-1]
    q = x @ ipw[:E].T + ipb[:E]
    k = x @ ipw[E:2 * E].T + ipb[E:2 * E]
    v = x @ ipw[2 * E:].T + ipb[2 * E:]
    s = jnp.einsum('bte,bse->bts', q, k) / math.sqrt(E)
    a = jax.nn.softmax(s, axis=-1)
    o = jnp.einsum('bts,bse->bte', a, v)
    return o @ ow.T + ob


def _crossattn_ref(x, p, apply_relu):
    xt = jnp.swapaxes(x, 1, 2)
    h = xt @ p['wt'].T + p['bt']
    h = _mha_ref(h, p['ipw_t'], p['ipb_t'], p['ow_t'], p['ob_t'])
    h = jnp.swapaxes(h, 1, 2)
    g = h @ p['wv'].T + p['bv']
    g = _mha_ref(g, p['ipw_v'], p['ipb_v'], p['ow_v'], p['ob_v'])
    if apply_relu:
        g = jnp.maximum(g, 0.0)
    return g


def model_ref(x, enc_p, dec_p):
    h = _crossattn_ref(x, enc_p, True)
    return _crossattn_ref(h, dec_p, False)


# ---------------------------------------------------------------------------
if __name__ == "__main__":
    # Small shapes consistent with the module (defaults 96/64/7/64 shrunk to
    # sublane-aligned sizes):
    batch, seq_len, hid_len, input_size, hid_size = 2, 16, 8, 8, 32

    key = jax.random.PRNGKey(0)
    k_x, k_enc, k_dec = jax.random.split(key, 3)

    x = jax.random.normal(k_x, (batch, seq_len, input_size), jnp.float32)
    enc_p = init_crossattn_params(k_enc, seq_len, hid_len, input_size, hid_size)
    dec_p = init_crossattn_params(k_dec, hid_len, seq_len, hid_size, input_size)

    out = jax.block_until_ready(model_forward(x, enc_p, dec_p))
    ref = jax.block_until_ready(model_ref(x, enc_p, dec_p))

    assert out.shape == (batch, seq_len, input_size), out.shape
    err = float(jnp.max(jnp.abs(out - ref)))
    # pl.reciprocal(approx=True) in the softmax denominator has ~2^-12
    # relative error; everything else is exact f32, so 1e-3 is comfortable.
    assert jnp.allclose(out, ref, atol=1e-3, rtol=1e-3), err
    print("KERNEL_OK")
</pallas_src>

<mosaic_0001>
module attributes {stable_mosaic.version = 11 : i64} {
  func.func @_fused_kernel(%arg0: i32, %arg1: memref<1x16x8xf32, #tpu.memory_space<vmem>>, %arg2: memref<16x8xf32, #tpu.memory_space<vmem>>, %arg3: memref<1x8xf32, #tpu.memory_space<vmem>>, %arg4: memref<8x8xf32, #tpu.memory_space<vmem>>, %arg5: memref<8x8xf32, #tpu.memory_space<vmem>>, %arg6: memref<8x8xf32, #tpu.memory_space<vmem>>, %arg7: memref<1x8xf32, #tpu.memory_space<vmem>>, %arg8: memref<1x8xf32, #tpu.memory_space<vmem>>, %arg9: memref<1x8xf32, #tpu.memory_space<vmem>>, %arg10: memref<8x8xf32, #tpu.memory_space<vmem>>, %arg11: memref<1x8xf32, #tpu.memory_space<vmem>>, %arg12: memref<8x32xf32, #tpu.memory_space<vmem>>, %arg13: memref<1x32xf32, #tpu.memory_space<vmem>>, %arg14: memref<32x32xf32, #tpu.memory_space<vmem>>, %arg15: memref<32x32xf32, #tpu.memory_space<vmem>>, %arg16: memref<32x32xf32, #tpu.memory_space<vmem>>, %arg17: memref<1x32xf32, #tpu.memory_space<vmem>>, %arg18: memref<1x32xf32, #tpu.memory_space<vmem>>, %arg19: memref<1x32xf32, #tpu.memory_space<vmem>>, %arg20: memref<32x32xf32, #tpu.memory_space<vmem>>, %arg21: memref<1x32xf32, #tpu.memory_space<vmem>>, %arg22: memref<8x16xf32, #tpu.memory_space<vmem>>, %arg23: memref<1x16xf32, #tpu.memory_space<vmem>>, %arg24: memref<16x16xf32, #tpu.memory_space<vmem>>, %arg25: memref<16x16xf32, #tpu.memory_space<vmem>>, %arg26: memref<16x16xf32, #tpu.memory_space<vmem>>, %arg27: memref<1x16xf32, #tpu.memory_space<vmem>>, %arg28: memref<1x16xf32, #tpu.memory_space<vmem>>, %arg29: memref<1x16xf32, #tpu.memory_space<vmem>>, %arg30: memref<16x16xf32, #tpu.memory_space<vmem>>, %arg31: memref<1x16xf32, #tpu.memory_space<vmem>>, %arg32: memref<32x8xf32, #tpu.memory_space<vmem>>, %arg33: memref<1x8xf32, #tpu.memory_space<vmem>>, %arg34: memref<8x8xf32, #tpu.memory_space<vmem>>, %arg35: memref<8x8xf32, #tpu.memory_space<vmem>>, %arg36: memref<8x8xf32, #tpu.memory_space<vmem>>, %arg37: memref<1x8xf32, #tpu.memory_space<vmem>>, %arg38: memref<1x8xf32, #tpu.memory_space<vmem>>, %arg39: memref<1x8xf32, #tpu.memory_space<vmem>>, %arg40: memref<8x8xf32, #tpu.memory_space<vmem>>, %arg41: memref<1x8xf32, #tpu.memory_space<vmem>>, %arg42: memref<1x16x8xf32, #tpu.memory_space<vmem>>) attributes {dimension_semantics = [#tpu.dimension_semantics<parallel>], iteration_bounds = array<i64: 2>, scalar_prefetch = 0 : i64, scratch_operands = 0 : i64, tpu.core_type = #tpu.core_type<tc>, window_params = [{transform_indices = @transform_0, window_bounds = array<i64: 1, 16, 8>}, {pipeline_mode = #tpu.pipeline_mode<synchronous>, transform_indices = @transform_1, window_bounds = array<i64: 16, 8>}, {pipeline_mode = #tpu.pipeline_mode<synchronous>, transform_indices = @transform_2, window_bounds = array<i64: 1, 8>}, {pipeline_mode = #tpu.pipeline_mode<synchronous>, transform_indices = @transform_3, window_bounds = array<i64: 8, 8>}, {pipeline_mode = #tpu.pipeline_mode<synchronous>, transform_indices = @transform_4, window_bounds = array<i64: 8, 8>}, {pipeline_mode = #tpu.pipeline_mode<synchronous>, transform_indices = @transform_5, window_bounds = array<i64: 8, 8>}, {pipeline_mode = #tpu.pipeline_mode<synchronous>, transform_indices = @transform_6, window_bounds = array<i64: 1, 8>}, {pipeline_mode = #tpu.pipeline_mode<synchronous>, transform_indices = @transform_7, window_bounds = array<i64: 1, 8>}, {pipeline_mode = #tpu.pipeline_mode<synchronous>, transform_indices = @transform_8, window_bounds = array<i64: 1, 8>}, {pipeline_mode = #tpu.pipeline_mode<synchronous>, transform_indices = @transform_9, window_bounds = array<i64: 8, 8>}, {pipeline_mode = #tpu.pipeline_mode<synchronous>, transform_indices = @transform_10, window_bounds = array<i64: 1, 8>}, {pipeline_mode = #tpu.pipeline_mode<synchronous>, transform_indices = @transform_11, window_bounds = array<i64: 8, 32>}, {pipeline_mode = #tpu.pipeline_mode<synchronous>, transform_indices = @transform_12, window_bounds = array<i64: 1, 32>}, {pipeline_mode = #tpu.pipeline_mode<synchronous>, transform_indices = @transform_13, window_bounds = array<i64: 32, 32>}, {pipeline_mode = #tpu.pipeline_mode<synchronous>, transform_indices = @transform_14, window_bounds = array<i64: 32, 32>}, {pipeline_mode = #tpu.pipeline_mode<synchronous>, transform_indices = @transform_15, window_bounds = array<i64: 32, 32>}, {pipeline_mode = #tpu.pipeline_mode<synchronous>, transform_indices = @transform_16, window_bounds = array<i64: 1, 32>}, {pipeline_mode = #tpu.pipeline_mode<synchronous>, transform_indices = @transform_17, window_bounds = array<i64: 1, 32>}, {pipeline_mode = #tpu.pipeline_mode<synchronous>, transform_indices = @transform_18, window_bounds = array<i64: 1, 32>}, {pipeline_mode = #tpu.pipeline_mode<synchronous>, transform_indices = @transform_19, window_bounds = array<i64: 32, 32>}, {pipeline_mode = #tpu.pipeline_mode<synchronous>, transform_indices = @transform_20, window_bounds = array<i64: 1, 32>}, {pipeline_mode = #tpu.pipeline_mode<synchronous>, transform_indices = @transform_21, window_bounds = array<i64: 8, 16>}, {pipeline_mode = #tpu.pipeline_mode<synchronous>, transform_indices = @transform_22, window_bounds = array<i64: 1, 16>}, {pipeline_mode = #tpu.pipeline_mode<synchronous>, transform_indices = @transform_23, window_bounds = array<i64: 16, 16>}, {pipeline_mode = #tpu.pipeline_mode<synchronous>, transform_indices = @transform_24, window_bounds = array<i64: 16, 16>}, {pipeline_mode = #tpu.pipeline_mode<synchronous>, transform_indices = @transform_25, window_bounds = array<i64: 16, 16>}, {pipeline_mode = #tpu.pipeline_mode<synchronous>, transform_indices = @transform_26, window_bounds = array<i64: 1, 16>}, {pipeline_mode = #tpu.pipeline_mode<synchronous>, transform_indices = @transform_27, window_bounds = array<i64: 1, 16>}, {pipeline_mode = #tpu.pipeline_mode<synchronous>, transform_indices = @transform_28, window_bounds = array<i64: 1, 16>}, {pipeline_mode = #tpu.pipeline_mode<synchronous>, transform_indices = @transform_29, window_bounds = array<i64: 16, 16>}, {pipeline_mode = #tpu.pipeline_mode<synchronous>, transform_indices = @transform_30, window_bounds = array<i64: 1, 16>}, {pipeline_mode = #tpu.pipeline_mode<synchronous>, transform_indices = @transform_31, window_bounds = array<i64: 32, 8>}, {pipeline_mode = #tpu.pipeline_mode<synchronous>, transform_indices = @transform_32, window_bounds = array<i64: 1, 8>}, {pipeline_mode = #tpu.pipeline_mode<synchronous>, transform_indices = @transform_33, window_bounds = array<i64: 8, 8>}, {pipeline_mode = #tpu.pipeline_mode<synchronous>, transform_indices = @transform_34, window_bounds = array<i64: 8, 8>}, {pipeline_mode = #tpu.pipeline_mode<synchronous>, transform_indices = @transform_35, window_bounds = array<i64: 8, 8>}, {pipeline_mode = #tpu.pipeline_mode<synchronous>, transform_indices = @transform_36, window_bounds = array<i64: 1, 8>}, {pipeline_mode = #tpu.pipeline_mode<synchronous>, transform_indices = @transform_37, window_bounds = array<i64: 1, 8>}, {pipeline_mode = #tpu.pipeline_mode<synchronous>, transform_indices = @transform_38, window_bounds = array<i64: 1, 8>}, {pipeline_mode = #tpu.pipeline_mode<synchronous>, transform_indices = @transform_39, window_bounds = array<i64: 8, 8>}, {pipeline_mode = #tpu.pipeline_mode<synchronous>, transform_indices = @transform_40, window_bounds = array<i64: 1, 8>}, {transform_indices = @transform_41, window_bounds = array<i64: 1, 16, 8>}]} {
    %c0 = arith.constant 0 : index
    %c0_0 = arith.constant 0 : index
    %c0_1 = arith.constant 0 : index
    %0 = vector.load %arg1[%c0, %c0_0, %c0_1] : memref<1x16x8xf32, #tpu.memory_space<vmem>>, vector<1x16x8xf32>
    %1 = vector.shape_cast %0 : vector<1x16x8xf32> to vector<16x8xf32>
    %c0_2 = arith.constant 0 : index
    %c0_3 = arith.constant 0 : index
    %2 = vector.load %arg2[%c0_2, %c0_3] : memref<16x8xf32, #tpu.memory_space<vmem>>, vector<16x8xf32>
    %cst = arith.constant dense<0.000000e+00> : vector<8x8xf32>
    %3 = tpu.matmul %1, %2, %cst {dimension_numbers = #tpu.dot_dimension_numbers<[0], [0], [1], [1], [0, 1, 1, 1], [], []>} : vector<16x8xf32>, vector<16x8xf32>, vector<8x8xf32> -> vector<8x8xf32>
    %c0_4 = arith.constant 0 : index
    %c0_5 = arith.constant 0 : index
    %4 = vector.load %arg3[%c0_4, %c0_5] : memref<1x8xf32, #tpu.memory_space<vmem>>, vector<1x8xf32>
    %5 = vector.broadcast %4 : vector<1x8xf32> to vector<8x8xf32>
    %6 = arith.addf %3, %5 : vector<8x8xf32>
    %c0_6 = arith.constant 0 : index
    %c0_7 = arith.constant 0 : index
    %7 = vector.load %arg4[%c0_6, %c0_7] : memref<8x8xf32, #tpu.memory_space<vmem>>, vector<8x8xf32>
    %c0_8 = arith.constant 0 : index
    %c0_9 = arith.constant 0 : index
    %8 = vector.load %arg5[%c0_8, %c0_9] : memref<8x8xf32, #tpu.memory_space<vmem>>, vector<8x8xf32>
    %c0_10 = arith.constant 0 : index
    %c0_11 = arith.constant 0 : index
    %9 = vector.load %arg6[%c0_10, %c0_11] : memref<8x8xf32, #tpu.memory_space<vmem>>, vector<8x8xf32>
    %c0_12 = arith.constant 0 : index
    %c0_13 = arith.constant 0 : index
    %10 = vector.load %arg7[%c0_12, %c0_13] : memref<1x8xf32, #tpu.memory_space<vmem>>, vector<1x8xf32>
    %c0_14 = arith.constant 0 : index
    %c0_15 = arith.constant 0 : index
    %11 = vector.load %arg8[%c0_14, %c0_15] : memref<1x8xf32, #tpu.memory_space<vmem>>, vector<1x8xf32>
    %c0_16 = arith.constant 0 : index
    %c0_17 = arith.constant 0 : index
    %12 = vector.load %arg9[%c0_16, %c0_17] : memref<1x8xf32, #tpu.memory_space<vmem>>, vector<1x8xf32>
    %c0_18 = arith.constant 0 : index
    %c0_19 = arith.constant 0 : index
    %13 = vector.load %arg10[%c0_18, %c0_19] : memref<8x8xf32, #tpu.memory_space<vmem>>, vector<8x8xf32>
    %c0_20 = arith.constant 0 : index
    %c0_21 = arith.constant 0 : index
    %14 = vector.load %arg11[%c0_20, %c0_21] : memref<1x8xf32, #tpu.memory_space<vmem>>, vector<1x8xf32>
    %cst_22 = arith.constant dense<0.000000e+00> : vector<8x8xf32>
    %15 = tpu.matmul %6, %7, %cst_22 {dimension_numbers = #tpu.dot_dimension_numbers<[1], [0], [0], [1], [0, 0, 1, 1], [], []>} : vector<8x8xf32>, vector<8x8xf32>, vector<8x8xf32> -> vector<8x8xf32>
    %16 = vector.broadcast %10 : vector<1x8xf32> to vector<8x8xf32>
    %17 = arith.addf %15, %16 : vector<8x8xf32>
    %cst_23 = arith.constant dense<0.000000e+00> : vector<8x8xf32>
    %18 = tpu.matmul %6, %8, %cst_23 {dimension_numbers = #tpu.dot_dimension_numbers<[1], [0], [0], [1], [0, 0, 1, 1], [], []>} : vector<8x8xf32>, vector<8x8xf32>, vector<8x8xf32> -> vector<8x8xf32>
    %19 = vector.broadcast %11 : vector<1x8xf32> to vector<8x8xf32>
    %20 = arith.addf %18, %19 : vector<8x8xf32>
    %cst_24 = arith.constant dense<0.000000e+00> : vector<8x8xf32>
    %21 = tpu.matmul %6, %9, %cst_24 {dimension_numbers = #tpu.dot_dimension_numbers<[1], [0], [0], [1], [0, 0, 1, 1], [], []>} : vector<8x8xf32>, vector<8x8xf32>, vector<8x8xf32> -> vector<8x8xf32>
    %22 = vector.broadcast %12 : vector<1x8xf32> to vector<8x8xf32>
    %23 = arith.addf %21, %22 : vector<8x8xf32>
    %cst_25 = arith.constant dense<0.000000e+00> : vector<8x8xf32>
    %24 = tpu.matmul %17, %20, %cst_25 {dimension_numbers = #tpu.dot_dimension_numbers<[1], [1], [0], [0], [0, 0, 1, 0], [], []>} : vector<8x8xf32>, vector<8x8xf32>, vector<8x8xf32> -> vector<8x8xf32>
    %cst_26 = arith.constant 0.353553385 : f32
    %25 = vector.broadcast %cst_26 : f32 to vector<8x8xf32>
    %26 = arith.mulf %24, %25 : vector<8x8xf32>
    %cst_27 = arith.constant dense<0xFF800000> : vector<8xf32>
    %27 = vector.multi_reduction <maximumf>, %26, %cst_27 [1] : vector<8x8xf32> to vector<8xf32>
    %28 = vector.shape_cast %27 : vector<8xf32> to vector<8x1xf32>
    %29 = vector.broadcast %28 : vector<8x1xf32> to vector<8x8xf32>
    %30 = arith.subf %26, %29 : vector<8x8xf32>
    %31 = math.exp %30 : vector<8x8xf32>
    %cst_28 = arith.constant dense<0.000000e+00> : vector<8xf32>
    %32 = vector.multi_reduction <add>, %31, %cst_28 [1] : vector<8x8xf32> to vector<8xf32>
    %33 = vector.shape_cast %32 : vector<8xf32> to vector<8x1xf32>
    %34 = tpu.reciprocal %33 {approx = true} : vector<8x1xf32> -> vector<8x1xf32>
    %35 = vector.broadcast %34 : vector<8x1xf32> to vector<8x8xf32>
    %36 = arith.mulf %31, %35 : vector<8x8xf32>
    %cst_29 = arith.constant dense<0.000000e+00> : vector<8x8xf32>
    %37 = tpu.matmul %36, %23, %cst_29 {dimension_numbers = #tpu.dot_dimension_numbers<[1], [0], [0], [1], [0, 0, 1, 1], [], []>} : vector<8x8xf32>, vector<8x8xf32>, vector<8x8xf32> -> vector<8x8xf32>
    %cst_30 = arith.constant dense<0.000000e+00> : vector<8x8xf32>
    %38 = tpu.matmul %37, %13, %cst_30 {dimension_numbers = #tpu.dot_dimension_numbers<[1], [0], [0], [1], [0, 0, 1, 1], [], []>} : vector<8x8xf32>, vector<8x8xf32>, vector<8x8xf32> -> vector<8x8xf32>
    %39 = vector.broadcast %14 : vector<1x8xf32> to vector<8x8xf32>
    %40 = arith.addf %38, %39 : vector<8x8xf32>
    %c0_31 = arith.constant 0 : index
    %c0_32 = arith.constant 0 : index
    %41 = vector.load %arg12[%c0_31, %c0_32] : memref<8x32xf32, #tpu.memory_space<vmem>>, vector<8x32xf32>
    %cst_33 = arith.constant dense<0.000000e+00> : vector<8x32xf32>
    %42 = tpu.matmul %40, %41, %cst_33 {dimension_numbers = #tpu.dot_dimension_numbers<[0], [0], [1], [1], [0, 1, 1, 1], [], []>} : vector<8x8xf32>, vector<8x32xf32>, vector<8x32xf32> -> vector<8x32xf32>
    %c0_34 = arith.constant 0 : index
    %c0_35 = arith.constant 0 : index
    %43 = vector.load %arg13[%c0_34, %c0_35] : memref<1x32xf32, #tpu.memory_space<vmem>>, vector<1x32xf32>
    %44 = vector.broadcast %43 : vector<1x32xf32> to vector<8x32xf32>
    %45 = arith.addf %42, %44 : vector<8x32xf32>
    %c0_36 = arith.constant 0 : index
    %c0_37 = arith.constant 0 : index
    %46 = vector.load %arg14[%c0_36, %c0_37] : memref<32x32xf32, #tpu.memory_space<vmem>>, vector<32x32xf32>
    %c0_38 = arith.constant 0 : index
    %c0_39 = arith.constant 0 : index
    %47 = vector.load %arg15[%c0_38, %c0_39] : memref<32x32xf32, #tpu.memory_space<vmem>>, vector<32x32xf32>
    %c0_40 = arith.constant 0 : index
    %c0_41 = arith.constant 0 : index
    %48 = vector.load %arg16[%c0_40, %c0_41] : memref<32x32xf32, #tpu.memory_space<vmem>>, vector<32x32xf32>
    %c0_42 = arith.constant 0 : index
    %c0_43 = arith.constant 0 : index
    %49 = vector.load %arg17[%c0_42, %c0_43] : memref<1x32xf32, #tpu.memory_space<vmem>>, vector<1x32xf32>
    %c0_44 = arith.constant 0 : index
    %c0_45 = arith.constant 0 : index
    %50 = vector.load %arg18[%c0_44, %c0_45] : memref<1x32xf32, #tpu.memory_space<vmem>>, vector<1x32xf32>
    %c0_46 = arith.constant 0 : index
    %c0_47 = arith.constant 0 : index
    %51 = vector.load %arg19[%c0_46, %c0_47] : memref<1x32xf32, #tpu.memory_space<vmem>>, vector<1x32xf32>
    %c0_48 = arith.constant 0 : index
    %c0_49 = arith.constant 0 : index
    %52 = vector.load %arg20[%c0_48, %c0_49] : memref<32x32xf32, #tpu.memory_space<vmem>>, vector<32x32xf32>
    %c0_50 = arith.constant 0 : index
    %c0_51 = arith.constant 0 : index
    %53 = vector.load %arg21[%c0_50, %c0_51] : memref<1x32xf32, #tpu.memory_space<vmem>>, vector<1x32xf32>
    %cst_52 = arith.constant dense<0.000000e+00> : vector<8x32xf32>
    %54 = tpu.matmul %45, %46, %cst_52 {dimension_numbers = #tpu.dot_dimension_numbers<[1], [0], [0], [1], [0, 0, 1, 1], [], []>} : vector<8x32xf32>, vector<32x32xf32>, vector<8x32xf32> -> vector<8x32xf32>
    %55 = vector.broadcast %49 : vector<1x32xf32> to vector<8x32xf32>
    %56 = arith.addf %54, %55 : vector<8x32xf32>
    %cst_53 = arith.constant dense<0.000000e+00> : vector<8x32xf32>
    %57 = tpu.matmul %45, %47, %cst_53 {dimension_numbers = #tpu.dot_dimension_numbers<[1], [0], [0], [1], [0, 0, 1, 1], [], []>} : vector<8x32xf32>, vector<32x32xf32>, vector<8x32xf32> -> vector<8x32xf32>
    %58 = vector.broadcast %50 : vector<1x32xf32> to vector<8x32xf32>
    %59 = arith.addf %57, %58 : vector<8x32xf32>
    %cst_54 = arith.constant dense<0.000000e+00> : vector<8x32xf32>
    %60 = tpu.matmul %45, %48, %cst_54 {dimension_numbers = #tpu.dot_dimension_numbers<[1], [0], [0], [1], [0, 0, 1, 1], [], []>} : vector<8x32xf32>, vector<32x32xf32>, vector<8x32xf32> -> vector<8x32xf32>
    %61 = vector.broadcast %51 : vector<1x32xf32> to vector<8x32xf32>
    %62 = arith.addf %60, %61 : vector<8x32xf32>
    %cst_55 = arith.constant dense<0.000000e+00> : vector<8x8xf32>
    %63 = tpu.matmul %56, %59, %cst_55 {dimension_numbers = #tpu.dot_dimension_numbers<[1], [1], [0], [0], [0, 0, 1, 0], [], []>} : vector<8x32xf32>, vector<8x32xf32>, vector<8x8xf32> -> vector<8x8xf32>
    %cst_56 = arith.constant 0.176776692 : f32
    %64 = vector.broadcast %cst_56 : f32 to vector<8x8xf32>
    %65 = arith.mulf %63, %64 : vector<8x8xf32>
    %cst_57 = arith.constant dense<0xFF800000> : vector<8xf32>
    %66 = vector.multi_reduction <maximumf>, %65, %cst_57 [1] : vector<8x8xf32> to vector<8xf32>
    %67 = vector.shape_cast %66 : vector<8xf32> to vector<8x1xf32>
    %68 = vector.broadcast %67 : vector<8x1xf32> to vector<8x8xf32>
    %69 = arith.subf %65, %68 : vector<8x8xf32>
    %70 = math.exp %69 : vector<8x8xf32>
    %cst_58 = arith.constant dense<0.000000e+00> : vector<8xf32>
    %71 = vector.multi_reduction <add>, %70, %cst_58 [1] : vector<8x8xf32> to vector<8xf32>
    %72 = vector.shape_cast %71 : vector<8xf32> to vector<8x1xf32>
    %73 = tpu.reciprocal %72 {approx = true} : vector<8x1xf32> -> vector<8x1xf32>
    %74 = vector.broadcast %73 : vector<8x1xf32> to vector<8x8xf32>
    %75 = arith.mulf %70, %74 : vector<8x8xf32>
    %cst_59 = arith.constant dense<0.000000e+00> : vector<8x32xf32>
    %76 = tpu.matmul %75, %62, %cst_59 {dimension_numbers = #tpu.dot_dimension_numbers<[1], [0], [0], [1], [0, 0, 1, 1], [], []>} : vector<8x8xf32>, vector<8x32xf32>, vector<8x32xf32> -> vector<8x32xf32>
    %cst_60 = arith.constant dense<0.000000e+00> : vector<8x32xf32>
    %77 = tpu.matmul %76, %52, %cst_60 {dimension_numbers = #tpu.dot_dimension_numbers<[1], [0], [0], [1], [0, 0, 1, 1], [], []>} : vector<8x32xf32>, vector<32x32xf32>, vector<8x32xf32> -> vector<8x32xf32>
    %78 = vector.broadcast %53 : vector<1x32xf32> to vector<8x32xf32>
    %79 = arith.addf %77, %78 : vector<8x32xf32>
    %cst_61 = arith.constant 0.000000e+00 : f32
    %80 = vector.broadcast %cst_61 : f32 to vector<8x32xf32>
    %81 = arith.maximumf %79, %80 : vector<8x32xf32>
    %c0_62 = arith.constant 0 : index
    %c0_63 = arith.constant 0 : index
    %82 = vector.load %arg22[%c0_62, %c0_63] : memref<8x16xf32, #tpu.memory_space<vmem>>, vector<8x16xf32>
    %cst_64 = arith.constant dense<0.000000e+00> : vector<32x16xf32>
    %83 = tpu.matmul %81, %82, %cst_64 {dimension_numbers = #tpu.dot_dimension_numbers<[0], [0], [1], [1], [0, 1, 1, 1], [], []>} : vector<8x32xf32>, vector<8x16xf32>, vector<32x16xf32> -> vector<32x16xf32>
    %c0_65 = arith.constant 0 : index
    %c0_66 = arith.constant 0 : index
    %84 = vector.load %arg23[%c0_65, %c0_66] : memref<1x16xf32, #tpu.memory_space<vmem>>, vector<1x16xf32>
    %85 = vector.broadcast %84 : vector<1x16xf32> to vector<32x16xf32>
    %86 = arith.addf %83, %85 : vector<32x16xf32>
    %c0_67 = arith.constant 0 : index
    %c0_68 = arith.constant 0 : index
    %87 = vector.load %arg24[%c0_67, %c0_68] : memref<16x16xf32, #tpu.memory_space<vmem>>, vector<16x16xf32>
    %c0_69 = arith.constant 0 : index
    %c0_70 = arith.constant 0 : index
    %88 = vector.load %arg25[%c0_69, %c0_70] : memref<16x16xf32, #tpu.memory_space<vmem>>, vector<16x16xf32>
    %c0_71 = arith.constant 0 : index
    %c0_72 = arith.constant 0 : index
    %89 = vector.load %arg26[%c0_71, %c0_72] : memref<16x16xf32, #tpu.memory_space<vmem>>, vector<16x16xf32>
    %c0_73 = arith.constant 0 : index
    %c0_74 = arith.constant 0 : index
    %90 = vector.load %arg27[%c0_73, %c0_74] : memref<1x16xf32, #tpu.memory_space<vmem>>, vector<1x16xf32>
    %c0_75 = arith.constant 0 : index
    %c0_76 = arith.constant 0 : index
    %91 = vector.load %arg28[%c0_75, %c0_76] : memref<1x16xf32, #tpu.memory_space<vmem>>, vector<1x16xf32>
    %c0_77 = arith.constant 0 : index
    %c0_78 = arith.constant 0 : index
    %92 = vector.load %arg29[%c0_77, %c0_78] : memref<1x16xf32, #tpu.memory_space<vmem>>, vector<1x16xf32>
    %c0_79 = arith.constant 0 : index
    %c0_80 = arith.constant 0 : index
    %93 = vector.load %arg30[%c0_79, %c0_80] : memref<16x16xf32, #tpu.memory_space<vmem>>, vector<16x16xf32>
    %c0_81 = arith.constant 0 : index
    %c0_82 = arith.constant 0 : index
    %94 = vector.load %arg31[%c0_81, %c0_82] : memref<1x16xf32, #tpu.memory_space<vmem>>, vector<1x16xf32>
    %cst_83 = arith.constant dense<0.000000e+00> : vector<32x16xf32>
    %95 = tpu.matmul %86, %87, %cst_83 {dimension_numbers = #tpu.dot_dimension_numbers<[1], [0], [0], [1], [0, 0, 1, 1], [], []>} : vector<32x16xf32>, vector<16x16xf32>, vector<32x16xf32> -> vector<32x16xf32>
    %96 = vector.broadcast %90 : vector<1x16xf32> to vector<32x16xf32>
    %97 = arith.addf %95, %96 : vector<32x16xf32>
    %cst_84 = arith.constant dense<0.000000e+00> : vector<32x16xf32>
    %98 = tpu.matmul %86, %88, %cst_84 {dimension_numbers = #tpu.dot_dimension_numbers<[1], [0], [0], [1], [0, 0, 1, 1], [], []>} : vector<32x16xf32>, vector<16x16xf32>, vector<32x16xf32> -> vector<32x16xf32>
    %99 = vector.broadcast %91 : vector<1x16xf32> to vector<32x16xf32>
    %100 = arith.addf %98, %99 : vector<32x16xf32>
    %cst_85 = arith.constant dense<0.000000e+00> : vector<32x16xf32>
    %101 = tpu.matmul %86, %89, %cst_85 {dimension_numbers = #tpu.dot_dimension_numbers<[1], [0], [0], [1], [0, 0, 1, 1], [], []>} : vector<32x16xf32>, vector<16x16xf32>, vector<32x16xf32> -> vector<32x16xf32>
    %102 = vector.broadcast %92 : vector<1x16xf32> to vector<32x16xf32>
    %103 = arith.addf %101, %102 : vector<32x16xf32>
    %cst_86 = arith.constant dense<0.000000e+00> : vector<32x32xf32>
    %104 = tpu.matmul %97, %100, %cst_86 {dimension_numbers = #tpu.dot_dimension_numbers<[1], [1], [0], [0], [0, 0, 1, 0], [], []>} : vector<32x16xf32>, vector<32x16xf32>, vector<32x32xf32> -> vector<32x32xf32>
    %cst_87 = arith.constant 2.500000e-01 : f32
    %105 = vector.broadcast %cst_87 : f32 to vector<32x32xf32>
    %106 = arith.mulf %104, %105 : vector<32x32xf32>
    %cst_88 = arith.constant dense<0xFF800000> : vector<32xf32>
    %107 = vector.multi_reduction <maximumf>, %106, %cst_88 [1] : vector<32x32xf32> to vector<32xf32>
    %108 = vector.shape_cast %107 : vector<32xf32> to vector<32x1xf32>
    %109 = vector.broadcast %108 : vector<32x1xf32> to vector<32x32xf32>
    %110 = arith.subf %106, %109 : vector<32x32xf32>
    %111 = math.exp %110 : vector<32x32xf32>
    %cst_89 = arith.constant dense<0.000000e+00> : vector<32xf32>
    %112 = vector.multi_reduction <add>, %111, %cst_89 [1] : vector<32x32xf32> to vector<32xf32>
    %113 = vector.shape_cast %112 : vector<32xf32> to vector<32x1xf32>
    %114 = tpu.reciprocal %113 {approx = true} : vector<32x1xf32> -> vector<32x1xf32>
    %115 = vector.broadcast %114 : vector<32x1xf32> to vector<32x32xf32>
    %116 = arith.mulf %111, %115 : vector<32x32xf32>
    %cst_90 = arith.constant dense<0.000000e+00> : vector<32x16xf32>
    %117 = tpu.matmul %116, %103, %cst_90 {dimension_numbers = #tpu.dot_dimension_numbers<[1], [0], [0], [1], [0, 0, 1, 1], [], []>} : vector<32x32xf32>, vector<32x16xf32>, vector<32x16xf32> -> vector<32x16xf32>
    %cst_91 = arith.constant dense<0.000000e+00> : vector<32x16xf32>
    %118 = tpu.matmul %117, %93, %cst_91 {dimension_numbers = #tpu.dot_dimension_numbers<[1], [0], [0], [1], [0, 0, 1, 1], [], []>} : vector<32x16xf32>, vector<16x16xf32>, vector<32x16xf32> -> vector<32x16xf32>
    %119 = vector.broadcast %94 : vector<1x16xf32> to vector<32x16xf32>
    %120 = arith.addf %118, %119 : vector<32x16xf32>
    %c0_92 = arith.constant 0 : index
    %c0_93 = arith.constant 0 : index
    %121 = vector.load %arg32[%c0_92, %c0_93] : memref<32x8xf32, #tpu.memory_space<vmem>>, vector<32x8xf32>
    %cst_94 = arith.constant dense<0.000000e+00> : vector<16x8xf32>
    %122 = tpu.matmul %120, %121, %cst_94 {dimension_numbers = #tpu.dot_dimension_numbers<[0], [0], [1], [1], [0, 1, 1, 1], [], []>} : vector<32x16xf32>, vector<32x8xf32>, vector<16x8xf32> -> vector<16x8xf32>
    %c0_95 = arith.constant 0 : index
    %c0_96 = arith.constant 0 : index
    %123 = vector.load %arg33[%c0_95, %c0_96] : memref<1x8xf32, #tpu.memory_space<vmem>>, vector<1x8xf32>
    %124 = vector.broadcast %123 : vector<1x8xf32> to vector<16x8xf32>
    %125 = arith.addf %122, %124 : vector<16x8xf32>
    %c0_97 = arith.constant 0 : index
    %c0_98 = arith.constant 0 : index
    %126 = vector.load %arg34[%c0_97, %c0_98] : memref<8x8xf32, #tpu.memory_space<vmem>>, vector<8x8xf32>
    %c0_99 = arith.constant 0 : index
    %c0_100 = arith.constant 0 : index
    %127 = vector.load %arg35[%c0_99, %c0_100] : memref<8x8xf32, #tpu.memory_space<vmem>>, vector<8x8xf32>
    %c0_101 = arith.constant 0 : index
    %c0_102 = arith.constant 0 : index
    %128 = vector.load %arg36[%c0_101, %c0_102] : memref<8x8xf32, #tpu.memory_space<vmem>>, vector<8x8xf32>
    %c0_103 = arith.constant 0 : index
    %c0_104 = arith.constant 0 : index
    %129 = vector.load %arg37[%c0_103, %c0_104] : memref<1x8xf32, #tpu.memory_space<vmem>>, vector<1x8xf32>
    %c0_105 = arith.constant 0 : index
    %c0_106 = arith.constant 0 : index
    %130 = vector.load %arg38[%c0_105, %c0_106] : memref<1x8xf32, #tpu.memory_space<vmem>>, vector<1x8xf32>
    %c0_107 = arith.constant 0 : index
    %c0_108 = arith.constant 0 : index
    %131 = vector.load %arg39[%c0_107, %c0_108] : memref<1x8xf32, #tpu.memory_space<vmem>>, vector<1x8xf32>
    %c0_109 = arith.constant 0 : index
    %c0_110 = arith.constant 0 : index
    %132 = vector.load %arg40[%c0_109, %c0_110] : memref<8x8xf32, #tpu.memory_space<vmem>>, vector<8x8xf32>
    %c0_111 = arith.constant 0 : index
    %c0_112 = arith.constant 0 : index
    %133 = vector.load %arg41[%c0_111, %c0_112] : memref<1x8xf32, #tpu.memory_space<vmem>>, vector<1x8xf32>
    %cst_113 = arith.constant dense<0.000000e+00> : vector<16x8xf32>
    %134 = tpu.matmul %125, %126, %cst_113 {dimension_numbers = #tpu.dot_dimension_numbers<[1], [0], [0], [1], [0, 0, 1, 1], [], []>} : vector<16x8xf32>, vector<8x8xf32>, vector<16x8xf32> -> vector<16x8xf32>
    %135 = vector.broadcast %129 : vector<1x8xf32> to vector<16x8xf32>
    %136 = arith.addf %134, %135 : vector<16x8xf32>
    %cst_114 = arith.constant dense<0.000000e+00> : vector<16x8xf32>
    %137 = tpu.matmul %125, %127, %cst_114 {dimension_numbers = #tpu.dot_dimension_numbers<[1], [0], [0], [1], [0, 0, 1, 1], [], []>} : vector<16x8xf32>, vector<8x8xf32>, vector<16x8xf32> -> vector<16x8xf32>
    %138 = vector.broadcast %130 : vector<1x8xf32> to vector<16x8xf32>
    %139 = arith.addf %137, %138 : vector<16x8xf32>
    %cst_115 = arith.constant dense<0.000000e+00> : vector<16x8xf32>
    %140 = tpu.matmul %125, %128, %cst_115 {dimension_numbers = #tpu.dot_dimension_numbers<[1], [0], [0], [1], [0, 0, 1, 1], [], []>} : vector<16x8xf32>, vector<8x8xf32>, vector<16x8xf32> -> vector<16x8xf32>
    %141 = vector.broadcast %131 : vector<1x8xf32> to vector<16x8xf32>
    %142 = arith.addf %140, %141 : vector<16x8xf32>
    %cst_116 = arith.constant dense<0.000000e+00> : vector<16x16xf32>
    %143 = tpu.matmul %136, %139, %cst_116 {dimension_numbers = #tpu.dot_dimension_numbers<[1], [1], [0], [0], [0, 0, 1, 0], [], []>} : vector<16x8xf32>, vector<16x8xf32>, vector<16x16xf32> -> vector<16x16xf32>
    %cst_117 = arith.constant 0.353553385 : f32
    %144 = vector.broadcast %cst_117 : f32 to vector<16x16xf32>
    %145 = arith.mulf %143, %144 : vector<16x16xf32>
    %cst_118 = arith.constant dense<0xFF800000> : vector<16xf32>
    %146 = vector.multi_reduction <maximumf>, %145, %cst_118 [1] : vector<16x16xf32> to vector<16xf32>
    %147 = vector.shape_cast %146 : vector<16xf32> to vector<16x1xf32>
    %148 = vector.broadcast %147 : vector<16x1xf32> to vector<16x16xf32>
    %149 = arith.subf %145, %148 : vector<16x16xf32>
    %150 = math.exp %149 : vector<16x16xf32>
    %cst_119 = arith.constant dense<0.000000e+00> : vector<16xf32>
    %151 = vector.multi_reduction <add>, %150, %cst_119 [1] : vector<16x16xf32> to vector<16xf32>
    %152 = vector.shape_cast %151 : vector<16xf32> to vector<16x1xf32>
    %153 = tpu.reciprocal %152 {approx = true} : vector<16x1xf32> -> vector<16x1xf32>
    %154 = vector.broadcast %153 : vector<16x1xf32> to vector<16x16xf32>
    %155 = arith.mulf %150, %154 : vector<16x16xf32>
    %cst_120 = arith.constant dense<0.000000e+00> : vector<16x8xf32>
    %156 = tpu.matmul %155, %142, %cst_120 {dimension_numbers = #tpu.dot_dimension_numbers<[1], [0], [0], [1], [0, 0, 1, 1], [], []>} : vector<16x16xf32>, vector<16x8xf32>, vector<16x8xf32> -> vector<16x8xf32>
    %cst_121 = arith.constant dense<0.000000e+00> : vector<16x8xf32>
    %157 = tpu.matmul %156, %132, %cst_121 {dimension_numbers = #tpu.dot_dimension_numbers<[1], [0], [0], [1], [0, 0, 1, 1], [], []>} : vector<16x8xf32>, vector<8x8xf32>, vector<16x8xf32> -> vector<16x8xf32>
    %158 = vector.broadcast %133 : vector<1x8xf32> to vector<16x8xf32>
    %159 = arith.addf %157, %158 : vector<16x8xf32>
    %c0_122 = arith.constant 0 : index
    %c0_123 = arith.constant 0 : index
    %c0_124 = arith.constant 0 : index
    %160 = vector.load %arg42[%c0_122, %c0_123, %c0_124] : memref<1x16x8xf32, #tpu.memory_space<vmem>>, vector<1x16x8xf32>
    %161 = vector.shape_cast %160 : vector<1x16x8xf32> to vector<16x8xf32>
    %162 = vector.shape_cast %159 : vector<16x8xf32> to vector<1x16x8xf32>
    tpu.vector_store %arg42[%c0_122, %c0_123, %c0_124], %162 {strides = array<i32>} : memref<1x16x8xf32, #tpu.memory_space<vmem>>, vector<1x16x8xf32>,
    return
  }
  func.func @transform_0(%arg0: i32) -> (i32, i32, i32) {
    %c0_i32 = arith.constant 0 : i32
    %c0_i32_0 = arith.constant 0 : i32
    %c0_i32_1 = arith.constant 0 : i32
    return %arg0, %c0_i32, %c0_i32_0 : i32, i32, i32
  }
  func.func @transform_1(%arg0: i32) -> (i32, i32) {
    %c0_i32 = arith.constant 0 : i32
    %c0_i32_0 = arith.constant 0 : i32
    %c0_i32_1 = arith.constant 0 : i32
    return %c0_i32, %c0_i32_0 : i32, i32
  }
  func.func @transform_2(%arg0: i32) -> (i32, i32) {
    %c0_i32 = arith.constant 0 : i32
    %c0_i32_0 = arith.constant 0 : i32
    %c0_i32_1 = arith.constant 0 : i32
    return %c0_i32, %c0_i32_0 : i32, i32
  }
  func.func @transform_3(%arg0: i32) -> (i32, i32) {
    %c0_i32 = arith.constant 0 : i32
    %c0_i32_0 = arith.constant 0 : i32
    %c0_i32_1 = arith.constant 0 : i32
    return %c0_i32, %c0_i32_0 : i32, i32
  }
  func.func @transform_4(%arg0: i32) -> (i32, i32) {
    %c0_i32 = arith.constant 0 : i32
    %c0_i32_0 = arith.constant 0 : i32
    %c0_i32_1 = arith.constant 0 : i32
    return %c0_i32, %c0_i32_0 : i32, i32
  }
  func.func @transform_5(%arg0: i32) -> (i32, i32) {
    %c0_i32 = arith.constant 0 : i32
    %c0_i32_0 = arith.constant 0 : i32
    %c0_i32_1 = arith.constant 0 : i32
    return %c0_i32, %c0_i32_0 : i32, i32
  }
  func.func @transform_6(%arg0: i32) -> (i32, i32) {
    %c0_i32 = arith.constant 0 : i32
    %c0_i32_0 = arith.constant 0 : i32
    %c0_i32_1 = arith.constant 0 : i32
    return %c0_i32, %c0_i32_0 : i32, i32
  }
  func.func @transform_7(%arg0: i32) -> (i32, i32) {
    %c0_i32 = arith.constant 0 : i32
    %c0_i32_0 = arith.constant 0 : i32
    %c0_i32_1 = arith.constant 0 : i32
    return %c0_i32, %c0_i32_0 : i32, i32
  }
  func.func @transform_8(%arg0: i32) -> (i32, i32) {
    %c0_i32 = arith.constant 0 : i32
    %c0_i32_0 = arith.constant 0 : i32
    %c0_i32_1 = arith.constant 0 : i32
    return %c0_i32, %c0_i32_0 : i32, i32
  }
  func.func @transform_9(%arg0: i32) -> (i32, i32) {
    %c0_i32 = arith.constant 0 : i32
    %c0_i32_0 = arith.constant 0 : i32
    %c0_i32_1 = arith.constant 0 : i32
    return %c0_i32, %c0_i32_0 : i32, i32
  }
  func.func @transform_10(%arg0: i32) -> (i32, i32) {
    %c0_i32 = arith.constant 0 : i32
    %c0_i32_0 = arith.constant 0 : i32
    %c0_i32_1 = arith.constant 0 : i32
    return %c0_i32, %c0_i32_0 : i32, i32
  }
  func.func @transform_11(%arg0: i32) -> (i32, i32) {
    %c0_i32 = arith.constant 0 : i32
    %c0_i32_0 = arith.constant 0 : i32
    %c0_i32_1 = arith.constant 0 : i32
    return %c0_i32, %c0_i32_0 : i32, i32
  }
  func.func @transform_12(%arg0: i32) -> (i32, i32) {
    %c0_i32 = arith.constant 0 : i32
    %c0_i32_0 = arith.constant 0 : i32
    %c0_i32_1 = arith.constant 0 : i32
    return %c0_i32, %c0_i32_0 : i32, i32
  }
  func.func @transform_13(%arg0: i32) -> (i32, i32) {
    %c0_i32 = arith.constant 0 : i32
    %c0_i32_0 = arith.constant 0 : i32
    %c0_i32_1 = arith.constant 0 : i32
    return %c0_i32, %c0_i32_0 : i32, i32
  }
  func.func @transform_14(%arg0: i32) -> (i32, i32) {
    %c0_i32 = arith.constant 0 : i32
    %c0_i32_0 = arith.constant 0 : i32
    %c0_i32_1 = arith.constant 0 : i32
    return %c0_i32, %c0_i32_0 : i32, i32
  }
  func.func @transform_15(%arg0: i32) -> (i32, i32) {
    %c0_i32 = arith.constant 0 : i32
    %c0_i32_0 = arith.constant 0 : i32
    %c0_i32_1 = arith.constant 0 : i32
    return %c0_i32, %c0_i32_0 : i32, i32
  }
  func.func @transform_16(%arg0: i32) -> (i32, i32) {
    %c0_i32 = arith.constant 0 : i32
    %c0_i32_0 = arith.constant 0 : i32
    %c0_i32_1 = arith.constant 0 : i32
    return %c0_i32, %c0_i32_0 : i32, i32
  }
  func.func @transform_17(%arg0: i32) -> (i32, i32) {
    %c0_i32 = arith.constant 0 : i32
    %c0_i32_0 = arith.constant 0 : i32
    %c0_i32_1 = arith.constant 0 : i32
    return %c0_i32, %c0_i32_0 : i32, i32
  }
  func.func @transform_18(%arg0: i32) -> (i32, i32) {
    %c0_i32 = arith.constant 0 : i32
    %c0_i32_0 = arith.constant 0 : i32
    %c0_i32_1 = arith.constant 0 : i32
    return %c0_i32, %c0_i32_0 : i32, i32
  }
  func.func @transform_19(%arg0: i32) -> (i32, i32) {
    %c0_i32 = arith.constant 0 : i32
    %c0_i32_0 = arith.constant 0 : i32
    %c0_i32_1 = arith.constant 0 : i32
    return %c0_i32, %c0_i32_0 : i32, i32
  }
  func.func @transform_20(%arg0: i32) -> (i32, i32) {
    %c0_i32 = arith.constant 0 : i32
    %c0_i32_0 = arith.constant 0 : i32
    %c0_i32_1 = arith.constant 0 : i32
    return %c0_i32, %c0_i32_0 : i32, i32
  }
  func.func @transform_21(%arg0: i32) -> (i32, i32) {
    %c0_i32 = arith.constant 0 : i32
    %c0_i32_0 = arith.constant 0 : i32
    %c0_i32_1 = arith.constant 0 : i32
    return %c0_i32, %c0_i32_0 : i32, i32
  }
  func.func @transform_22(%arg0: i32) -> (i32, i32) {
    %c0_i32 = arith.constant 0 : i32
    %c0_i32_0 = arith.constant 0 : i32
    %c0_i32_1 = arith.constant 0 : i32
    return %c0_i32, %c0_i32_0 : i32, i32
  }
  func.func @transform_23(%arg0: i32) -> (i32, i32) {
    %c0_i32 = arith.constant 0 : i32
    %c0_i32_0 = arith.constant 0 : i32
    %c0_i32_1 = arith.constant 0 : i32
    return %c0_i32, %c0_i32_0 : i32, i32
  }
  func.func @transform_24(%arg0: i32) -> (i32, i32) {
    %c0_i32 = arith.constant 0 : i32
    %c0_i32_0 = arith.constant 0 : i32
    %c0_i32_1 = arith.constant 0 : i32
    return %c0_i32, %c0_i32_0 : i32, i32
  }
  func.func @transform_25(%arg0: i32) -> (i32, i32) {
    %c0_i32 = arith.constant 0 : i32
    %c0_i32_0 = arith.constant 0 : i32
    %c0_i32_1 = arith.constant 0 : i32
    return %c0_i32, %c0_i32_0 : i32, i32
  }
  func.func @transform_26(%arg0: i32) -> (i32, i32) {
    %c0_i32 = arith.constant 0 : i32
    %c0_i32_0 = arith.constant 0 : i32
    %c0_i32_1 = arith.constant 0 : i32
    return %c0_i32, %c0_i32_0 : i32, i32
  }
  func.func @transform_27(%arg0: i32) -> (i32, i32) {
    %c0_i32 = arith.constant 0 : i32
    %c0_i32_0 = arith.constant 0 : i32
    %c0_i32_1 = arith.constant 0 : i32
    return %c0_i32, %c0_i32_0 : i32, i32
  }
  func.func @transform_28(%arg0: i32) -> (i32, i32) {
    %c0_i32 = arith.constant 0 : i32
    %c0_i32_0 = arith.constant 0 : i32
    %c0_i32_1 = arith.constant 0 : i32
    return %c0_i32, %c0_i32_0 : i32, i32
  }
  func.func @transform_29(%arg0: i32) -> (i32, i32) {
    %c0_i32 = arith.constant 0 : i32
    %c0_i32_0 = arith.constant 0 : i32
    %c0_i32_1 = arith.constant 0 : i32
    return %c0_i32, %c0_i32_0 : i32, i32
  }
  func.func @transform_30(%arg0: i32) -> (i32, i32) {
    %c0_i32 = arith.constant 0 : i32
    %c0_i32_0 = arith.constant 0 : i32
    %c0_i32_1 = arith.constant 0 : i32
    return %c0_i32, %c0_i32_0 : i32, i32
  }
  func.func @transform_31(%arg0: i32) -> (i32, i32) {
    %c0_i32 = arith.constant 0 : i32
    %c0_i32_0 = arith.constant 0 : i32
    %c0_i32_1 = arith.constant 0 : i32
    return %c0_i32, %c0_i32_0 : i32, i32
  }
  func.func @transform_32(%arg0: i32) -> (i32, i32) {
    %c0_i32 = arith.constant 0 : i32
    %c0_i32_0 = arith.constant 0 : i32
    %c0_i32_1 = arith.constant 0 : i32
    return %c0_i32, %c0_i32_0 : i32, i32
  }
  func.func @transform_33(%arg0: i32) -> (i32, i32) {
    %c0_i32 = arith.constant 0 : i32
    %c0_i32_0 = arith.constant 0 : i32
    %c0_i32_1 = arith.constant 0 : i32
    return %c0_i32, %c0_i32_0 : i32, i32
  }
  func.func @transform_34(%arg0: i32) -> (i32, i32) {
    %c0_i32 = arith.constant 0 : i32
    %c0_i32_0 = arith.constant 0 : i32
    %c0_i32_1 = arith.constant 0 : i32
    return %c0_i32, %c0_i32_0 : i32, i32
  }
  func.func @transform_35(%arg0: i32) -> (i32, i32) {
    %c0_i32 = arith.constant 0 : i32
    %c0_i32_0 = arith.constant 0 : i32
    %c0_i32_1 = arith.constant 0 : i32
    return %c0_i32, %c0_i32_0 : i32, i32
  }
  func.func @transform_36(%arg0: i32) -> (i32, i32) {
    %c0_i32 = arith.constant 0 : i32
    %c0_i32_0 = arith.constant 0 : i32
    %c0_i32_1 = arith.constant 0 : i32
    return %c0_i32, %c0_i32_0 : i32, i32
  }
  func.func @transform_37(%arg0: i32) -> (i32, i32) {
    %c0_i32 = arith.constant 0 : i32
    %c0_i32_0 = arith.constant 0 : i32
    %c0_i32_1 = arith.constant 0 : i32
    return %c0_i32, %c0_i32_0 : i32, i32
  }
  func.func @transform_38(%arg0: i32) -> (i32, i32) {
    %c0_i32 = arith.constant 0 : i32
    %c0_i32_0 = arith.constant 0 : i32
    %c0_i32_1 = arith.constant 0 : i32
    return %c0_i32, %c0_i32_0 : i32, i32
  }
  func.func @transform_39(%arg0: i32) -> (i32, i32) {
    %c0_i32 = arith.constant 0 : i32
    %c0_i32_0 = arith.constant 0 : i32
    %c0_i32_1 = arith.constant 0 : i32
    return %c0_i32, %c0_i32_0 : i32, i32
  }
  func.func @transform_40(%arg0: i32) -> (i32, i32) {
    %c0_i32 = arith.constant 0 : i32
    %c0_i32_0 = arith.constant 0 : i32
    %c0_i32_1 = arith.constant 0 : i32
    return %c0_i32, %c0_i32_0 : i32, i32
  }
  func.func @transform_41(%arg0: i32) -> (i32, i32, i32) {
    %c0_i32 = arith.constant 0 : i32
    %c0_i32_0 = arith.constant 0 : i32
    %c0_i32_1 = arith.constant 0 : i32
    return %arg0, %c0_i32, %c0_i32_0 : i32, i32, i32
  }
}

</mosaic_0001>

<llo_original>
// kernel: tpu_custom_call.1
$region0: #{tpu_custom_call.1}
  #allocation0 [shape = 'u32[]', space=smem, size = 0x4, offset = 0x4, fixed_abs, tag = 'smem constant byte address 0x4 - core index']
  #allocation1 [shape = 'u32[144,128]{1,0:T(1,128)}', space=vmem, size = 0x12000, scoped, tag = 'internal scratch']
  %s0 = inlined_call_operand.smem [shape: u32[42], index: -1, kind: input, shape index: {}]
  %s1 = sld [smem:[%s0]]
  %s2 = scalar_lea.smem %s0, 1
  %s3 = sld [smem:[%s2]]
  %s4 = scalar_lea.smem %s0, 2
  %s5 = sld [smem:[%s4]]
  %s6 = scalar_lea.smem %s0, 3
  %s7 = sld [smem:[%s6]]
  %s8 = scalar_lea.smem %s0, 4
  %s9 = sld [smem:[%s8]]
  %s10 = scalar_lea.smem %s0, 5
  %s11 = sld [smem:[%s10]]
  %s12 = scalar_lea.smem %s0, 6
  %s13 = sld [smem:[%s12]]
  %s14 = scalar_lea.smem %s0, 7
  %s15 = sld [smem:[%s14]]
  %s16 = scalar_lea.smem %s0, 8
  %s17 = sld [smem:[%s16]]
  %s18 = scalar_lea.smem %s0, 9
  %s19 = sld [smem:[%s18]]
  %s20 = scalar_lea.smem %s0, 10
  %s21 = sld [smem:[%s20]]
  %s22 = scalar_lea.smem %s0, 11
  %s23 = sld [smem:[%s22]]
  %s24 = scalar_lea.smem %s0, 12
  %s25 = sld [smem:[%s24]]
  %s26 = scalar_lea.smem %s0, 13
  %s27 = sld [smem:[%s26]]
  %s28 = scalar_lea.smem %s0, 14
  %s29 = sld [smem:[%s28]]
  %s30 = scalar_lea.smem %s0, 15
  %s31 = sld [smem:[%s30]]
  %s32 = scalar_lea.smem %s0, 16
  %s33 = sld [smem:[%s32]]
  %s34 = scalar_lea.smem %s0, 17
  %s35 = sld [smem:[%s34]]
  %s36 = scalar_lea.smem %s0, 18
  %s37 = sld [smem:[%s36]]
  %s38 = scalar_lea.smem %s0, 19
  %s39 = sld [smem:[%s38]]
  %s40 = scalar_lea.smem %s0, 20
  %s41 = sld [smem:[%s40]]
  %s42 = scalar_lea.smem %s0, 21
  %s43 = sld [smem:[%s42]]
  %s44 = scalar_lea.smem %s0, 22
  %s45 = sld [smem:[%s44]]
  %s46 = scalar_lea.smem %s0, 23
  %s47 = sld [smem:[%s46]]
  %s48 = scalar_lea.smem %s0, 24
  %s49 = sld [smem:[%s48]]
  %s50 = scalar_lea.smem %s0, 25
  %s51 = sld [smem:[%s50]]
  %s52 = scalar_lea.smem %s0, 26
  %s53 = sld [smem:[%s52]]
  %s54 = scalar_lea.smem %s0, 27
  %s55 = sld [smem:[%s54]]
  %s56 = scalar_lea.smem %s0, 28
  %s57 = sld [smem:[%s56]]
  %s58 = scalar_lea.smem %s0, 29
  %s59 = sld [smem:[%s58]]
  %s60 = scalar_lea.smem %s0, 30
  %s61 = sld [smem:[%s60]]
  %s62 = scalar_lea.smem %s0, 31
  %s63 = sld [smem:[%s62]]
  %s64 = scalar_lea.smem %s0, 32
  %s65 = sld [smem:[%s64]]
  %s66 = scalar_lea.smem %s0, 33
  %s67 = sld [smem:[%s66]]
  %s68 = scalar_lea.smem %s0, 34
  %s69 = sld [smem:[%s68]]
  %s70 = scalar_lea.smem %s0, 35
  %s71 = sld [smem:[%s70]]
  %s72 = scalar_lea.smem %s0, 36
  %s73 = sld [smem:[%s72]]
  %s74 = scalar_lea.smem %s0, 37
  %s75 = sld [smem:[%s74]]
  %s76 = scalar_lea.smem %s0, 38
  %s77 = sld [smem:[%s76]]
  %s78 = scalar_lea.smem %s0, 39
  %s79 = sld [smem:[%s78]]
  %s80 = scalar_lea.smem %s0, 40
  %s81 = sld [smem:[%s80]]
  %s82 = scalar_lea.smem %s0, 41
  %s83 = sld [smem:[%s82]]
  %s84 = sld [smem:[#allocation0]]
  $region281: #{tpu_custom_call.1} parent=0
    _
  %s86 = ssub.s32 1, %s84
  %s87 = scalar_select 0, %s86, %s84
  $region1: #{tpu_custom_call.1} parent=0
    #allocation2 [shape = 'u8[512]{0}', space=vmem, size = 0x400, scoped, tag = 'input window, operand 2, single buffered']
    #allocation3 [shape = 's32[2]{0}', space=sflag, size = 0x8, scoped, tag = 'scoped memory for tpu_custom_call.1']
    #allocation4 [shape = 'u8[4096]{0}', space=vmem, size = 0x1000, scoped, tag = 'input window, operand 3, single buffered']
    #allocation5 [shape = 's32[1]{0}', space=sflag, size = 0x4, scoped, tag = 'scoped memory for tpu_custom_call.1']
    #allocation6 [shape = 'u8[4096]{0}', space=vmem, size = 0x1000, scoped, tag = 'input window, operand 4, single buffered']
    #allocation7 [shape = 'u8[4096]{0}', space=vmem, size = 0x1000, scoped, tag = 'input window, operand 5, single buffered']
    #allocation8 [shape = 's32[1]{0}', space=sflag, size = 0x4, scoped, tag = 'scoped memory for tpu_custom_call.1']
    #allocation9 [shape = 'u8[512]{0}', space=vmem, size = 0x400, scoped, tag = 'input window, operand 6, single buffered']
    #allocation10 [shape = 'u8[512]{0}', space=vmem, size = 0x400, scoped, tag = 'input window, operand 7, single buffered']
    #allocation11 [shape = 's32[1]{0}', space=sflag, size = 0x4, scoped, tag = 'scoped memory for tpu_custom_call.1']
    #allocation12 [shape = 'u8[512]{0}', space=vmem, size = 0x400, scoped, tag = 'input window, operand 8, single buffered']
    #allocation13 [shape = 'u8[4096]{0}', space=vmem, size = 0x1000, scoped, tag = 'input window, operand 9, single buffered']
    #allocation14 [shape = 's32[1]{0}', space=sflag, size = 0x4, scoped, tag = 'scoped memory for tpu_custom_call.1']
    #allocation15 [shape = 'u8[512]{0}', space=vmem, size = 0x400, scoped, tag = 'input window, operand 10, single buffered']
    #allocation16 [shape = 'u8[4096]{0}', space=vmem, size = 0x1000, scoped, tag = 'input window, operand 11, single buffered']
    #allocation17 [shape = 's32[1]{0}', space=sflag, size = 0x4, scoped, tag = 'scoped memory for tpu_custom_call.1']
    #allocation18 [shape = 'u8[512]{0}', space=vmem, size = 0x400, scoped, tag = 'input window, operand 12, single buffered']
    #allocation19 [shape = 'u8[512]{0}', space=vmem, size = 0x400, scoped, tag = 'input window, operand 16, single buffered']
    #allocation20 [shape = 's32[1]{0}', space=sflag, size = 0x4, scoped, tag = 'scoped memory for tpu_custom_call.1']
    #allocation21 [shape = 'u8[512]{0}', space=vmem, size = 0x400, scoped, tag = 'input window, operand 17, single buffered']
    #allocation22 [shape = 'u8[512]{0}', space=vmem, size = 0x400, scoped, tag = 'input window, operand 20, single buffered']
    #allocation23 [shape = 's32[1]{0}', space=sflag, size = 0x4, scoped, tag = 'scoped memory for tpu_custom_call.1']
    #allocation24 [shape = 'u8[4096]{0}', space=vmem, size = 0x1000, scoped, tag = 'input window, operand 21, single buffered']
    #allocation25 [shape = 'u8[512]{0}', space=vmem, size = 0x400, scoped, tag = 'input window, operand 22, single buffered']
    #allocation26 [shape = 's32[1]{0}', space=sflag, size = 0x4, scoped, tag = 'scoped memory for tpu_custom_call.1']
    #allocation27 [shape = 'u8[512]{0}', space=vmem, size = 0x400, scoped, tag = 'input window, operand 26, single buffered']
    #allocation28 [shape = 'u8[512]{0}', space=vmem, size = 0x400, scoped, tag = 'input window, operand 27, single buffered']
    #allocation29 [shape = 's32[1]{0}', space=sflag, size = 0x4, scoped, tag = 'scoped memory for tpu_custom_call.1']
    #allocation30 [shape = 'u8[512]{0}', space=vmem, size = 0x400, scoped, tag = 'input window, operand 28, single buffered']
    #allocation31 [shape = 'u8[512]{0}', space=vmem, size = 0x400, scoped, tag = 'input window, operand 30, single buffered']
    #allocation32 [shape = 's32[1]{0}', space=sflag, size = 0x4, scoped, tag = 'scoped memory for tpu_custom_call.1']
    #allocation33 [shape = 'u8[512]{0}', space=vmem, size = 0x400, scoped, tag = 'input window, operand 32, single buffered']
    %88 = vsyncpa [#allocation3], 0
    %89 = vsyncpa [#allocation5], 0
    %90 = vsyncpa [#allocation8], 0
    %91 = vsyncpa [#allocation11], 0
    %92 = vsyncpa [#allocation14], 0
    %93 = vsyncpa [#allocation17], 0
    %94 = vsyncpa [#allocation20], 0
    %95 = vsyncpa [#allocation23], 0
    %96 = vsyncpa [#allocation26], 0
    %97 = vsyncpa [#allocation29], 0
    %98 = vsyncpa [#allocation32], 0
    loop: start=0, step=1, limit=4
    $region2: #{tpu_custom_call.1} parent=1 // loop_pre_header
      _
    $region3: #{tpu_custom_call.1} parent=1 // loop_header
      %s100 = sphi 0, %s104
      %p101 = scmp.ge.s32.totalorder %s100, 4
      %s110 = sphi 0, %s112
      %s113 = sphi 0, %s110
      %s114 = sphi 0, %s113
      %s130 = sphi 0, %s114
      %s134 = sphi 0, %s134
      %s136 = sphi 0, %s134
      %s137 = sphi 0, %s136
      %s151 = sphi 0, %s137
      %s155 = sphi 0, %s155
      %s157 = sphi 0, %s155
      %s158 = sphi 0, %s157
      %s172 = sphi 0, %s158
      %s176 = sphi 0, %s176
      %s178 = sphi 0, %s176
      %s179 = sphi 0, %s178
      %s193 = sphi 0, %s179
      %s197 = sphi 0, %s197
      %s199 = sphi 0, %s197
      %s200 = sphi 0, %s199
      %s214 = sphi 0, %s200
      %s218 = sphi 0, %s218
      %s220 = sphi 0, %s218
      %s221 = sphi 0, %s220
      %s235 = sphi 0, %s221
      %s239 = sphi 0, %s239
      %s241 = sphi 0, %s239
      %s242 = sphi 0, %s241
      %s256 = sphi 0, %s242
      %s260 = sphi 0, %s260
      %s262 = sphi 0, %s260
      %s263 = sphi 0, %s262
      %s277 = sphi 0, %s263
      %s281 = sphi 0, %s281
      %s283 = sphi 0, %s281
      %s284 = sphi 0, %s283
      %s298 = sphi 0, %s284
      %s302 = sphi 0, %s302
      %s304 = sphi 0, %s302
      %s305 = sphi 0, %s304
      %s319 = sphi 0, %s305
      %s323 = sphi 0, %s323
      %s325 = sphi 0, %s323
      %s326 = sphi 0, %s325
      %s340 = sphi 0, %s326
      %s344 = sphi 0, %s344
      %s346 = sphi 0, %s344
      %s347 = sphi 0, %s346
      %s361 = sphi 0, %s347
      %s365 = sphi 0, %s365
      %s367 = sphi 0, %s365
      %s368 = sphi 0, %s367
      %s382 = sphi 0, %s368
      %s386 = sphi 0, %s386
      %s388 = sphi 0, %s386
      %s389 = sphi 0, %s388
      %s403 = sphi 0, %s389
      %s407 = sphi 0, %s407
      %s409 = sphi 0, %s407
      %s410 = sphi 0, %s409
      %s424 = sphi 0, %s410
      %s428 = sphi 0, %s428
      %s430 = sphi 0, %s428
      %s431 = sphi 0, %s430
      %s445 = sphi 0, %s431
      %s449 = sphi 0, %s449
      %s451 = sphi 0, %s449
      %s452 = sphi 0, %s451
      %s466 = sphi 0, %s452
      %s470 = sphi 0, %s470
      %s472 = sphi 0, %s470
      %s473 = sphi 0, %s472
      %s487 = sphi 0, %s473
      %s491 = sphi 0, %s491
      %s493 = sphi 0, %s491
      %s494 = sphi 0, %s493
      %s508 = sphi 0, %s494
      %s512 = sphi 0, %s512
      %s514 = sphi 0, %s512
      %s515 = sphi 0, %s514
      %s529 = sphi 0, %s515
      %s533 = sphi 0, %s533
      %s535 = sphi 0, %s533
      %s536 = sphi 0, %s535
      %s550 = sphi 0, %s536
      %s554 = sphi 0, %s554
      %s556 = sphi 0, %s554
      %s557 = sphi 0, %s556
      %s571 = sphi 0, %s557
      %s575 = sphi 0, %s575
      %s577 = sphi 0, %s575
      %s578 = sphi 0, %s577
      %s592 = sphi 0, %s578
      %s596 = sphi 0, %s596
      %s598 = sphi 0, %s596
      %s599 = sphi 0, %s598
      %s613 = sphi 0, %s599
      %s617 = sphi 0, %s617
      %s619 = sphi 0, %s617
      %s620 = sphi 0, %s619
      %s634 = sphi 0, %s620
      %s638 = sphi 0, %s638
      %s640 = sphi 0, %s638
      %s641 = sphi 0, %s640
      %s655 = sphi 0, %s641
      %s659 = sphi 0, %s659
      %s661 = sphi 0, %s659
      %s662 = sphi 0, %s661
      %s676 = sphi 0, %s662
      %s680 = sphi 0, %s680
      %s682 = sphi 0, %s680
      %s683 = sphi 0, %s682
      %s697 = sphi 0, %s683
      %s701 = sphi 0, %s701
      %s703 = sphi 0, %s701
      %s704 = sphi 0, %s703
      %s718 = sphi 0, %s704
      %s722 = sphi 0, %s722
      %s724 = sphi 0, %s722
      %s725 = sphi 0, %s724
      %s739 = sphi 0, %s725
      %s743 = sphi 0, %s743
      %s745 = sphi 0, %s743
      %s746 = sphi 0, %s745
      %s760 = sphi 0, %s746
      %s764 = sphi 0, %s764
      %s766 = sphi 0, %s764
      %s767 = sphi 0, %s766
      %s781 = sphi 0, %s767
      %s785 = sphi 0, %s785
      %s787 = sphi 0, %s785
      %s788 = sphi 0, %s787
      %s802 = sphi 0, %s788
      %s806 = sphi 0, %s806
      %s808 = sphi 0, %s806
      %s809 = sphi 0, %s808
      %s823 = sphi 0, %s809
      %s827 = sphi 0, %s827
      %s829 = sphi 0, %s827
      %s830 = sphi 0, %s829
      %s844 = sphi 0, %s830
      %s848 = sphi 0, %s848
      %s850 = sphi 0, %s848
      %s851 = sphi 0, %s850
      %s865 = sphi 0, %s851
      %s869 = sphi 0, %s869
      %s871 = sphi 0, %s869
      %s872 = sphi 0, %s871
      %s886 = sphi 0, %s872
      %s890 = sphi 0, %s890
      %s892 = sphi 0, %s890
      %s893 = sphi 0, %s892
      %s907 = sphi 0, %s893
      %s911 = sphi 0, %s911
      %s913 = sphi 0, %s911
      %s914 = sphi 0, %s913
      %s928 = sphi 0, %s914
      %s932 = sphi 0, %s932
      %s934 = sphi 0, %s932
      %s935 = sphi 0, %s934
      %s949 = sphi 0, %s935
      %s953 = sphi 0, %s953
      %s955 = sphi 0, %s953
      %s956 = sphi 0, %s955
      %s970 = sphi 0, %s956
      %s976 = sphi 0, %s978
      %s979 = sphi 0, %s976
      %s980 = sphi 0, %s979
      %s996 = sphi 0, %s980
    $region4: #{tpu_custom_call.1} parent=1 // loop_header_branch
      %103 = sbr.rel (%p101) target = $region8
    $region5: #{tpu_custom_call.1} parent=1 // loop_body
      %s105 = ssub.s32 %s100, 1
      %s106 = ssub.s32 %s100, 2
      %s107 = sadd.s32 %s100, 1
      %s108 = ssub.s32 %s100, %s107
      %p109 = scmp.eq.s32.totalorder %s108, 0
      %s111 = sadd.s32 %s110, 1
      %s112 = scalar_select %p109, %s110, %s111
      %p115 = pneg %p109
      %p116 = scmp.eq.s32.totalorder %s100, 1
      %p117 = por %p115, %p116
      %p118 = scmp.ne.s32.totalorder %s110, %s113
      %p119 = scmp.eq.s32.totalorder %s100, 0
      %p120 = por %p118, %p119
      %p121 = scmp.ne.s32.totalorder %s110, %s113
      %p122 = scmp.eq.s32.totalorder %s105, 1
      %p123 = por %p121, %p122
      %p124 = scmp.ne.s32.totalorder %s113, %s114
      %p125 = scmp.eq.s32.totalorder %s105, 0
      %p126 = por %p124, %p125
      %p127 = scmp.ne.s32.totalorder %s113, %s114
      %p128 = scmp.eq.s32.totalorder %s106, 1
      %p129 = por %p127, %p128
      %p131 = scmp.ne.s32.totalorder %s114, %s130
      %p132 = scmp.eq.s32.totalorder %s106, 0
      %p133 = por %p131, %p132
      %s135 = sadd.s32 %s134, 1
      %p138 = scmp.eq.s32.totalorder %s100, 1
      %p139 = scmp.ne.s32.totalorder %s134, %s136
      %p140 = scmp.eq.s32.totalorder %s100, 0
      %p141 = por %p139, %p140
      %p142 = scmp.ne.s32.totalorder %s134, %s136
      %p143 = scmp.eq.s32.totalorder %s105, 1
      %p144 = por %p142, %p143
      %p145 = scmp.ne.s32.totalorder %s136, %s137
      %p146 = scmp.eq.s32.totalorder %s105, 0
      %p147 = por %p145, %p146
      %p148 = scmp.ne.s32.totalorder %s136, %s137
      %p149 = scmp.eq.s32.totalorder %s106, 1
      %p150 = por %p148, %p149
      %p152 = scmp.ne.s32.totalorder %s137, %s151
      %p153 = scmp.eq.s32.totalorder %s106, 0
      %p154 = por %p152, %p153
      %s156 = sadd.s32 %s155, 1
      %p159 = scmp.eq.s32.totalorder %s100, 1
      %p160 = scmp.ne.s32.totalorder %s155, %s157
      %p161 = scmp.eq.s32.totalorder %s100, 0
      %p162 = por %p160, %p161
      %p163 = scmp.ne.s32.totalorder %s155, %s157
      %p164 = scmp.eq.s32.totalorder %s105, 1
      %p165 = por %p163, %p164
      %p166 = scmp.ne.s32.totalorder %s157, %s158
      %p167 = scmp.eq.s32.totalorder %s105, 0
      %p168 = por %p166, %p167
      %p169 = scmp.ne.s32.totalorder %s157, %s158
      %p170 = scmp.eq.s32.totalorder %s106, 1
      %p171 = por %p169, %p170
      %p173 = scmp.ne.s32.totalorder %s158, %s172
      %p174 = scmp.eq.s32.totalorder %s106, 0
      %p175 = por %p173, %p174
      %s177 = sadd.s32 %s176, 1
      %p180 = scmp.eq.s32.totalorder %s100, 1
      %p181 = scmp.ne.s32.totalorder %s176, %s178
      %p182 = scmp.eq.s32.totalorder %s100, 0
      %p183 = por %p181, %p182
      %p184 = scmp.ne.s32.totalorder %s176, %s178
      %p185 = scmp.eq.s32.totalorder %s105, 1
      %p186 = por %p184, %p185
      %p187 = scmp.ne.s32.totalorder %s178, %s179
      %p188 = scmp.eq.s32.totalorder %s105, 0
      %p189 = por %p187, %p188
      %p190 = scmp.ne.s32.totalorder %s178, %s179
      %p191 = scmp.eq.s32.totalorder %s106, 1
      %p192 = por %p190, %p191
      %p194 = scmp.ne.s32.totalorder %s179, %s193
      %p195 = scmp.eq.s32.totalorder %s106, 0
      %p196 = por %p194, %p195
      %s198 = sadd.s32 %s197, 1
      %p201 = scmp.eq.s32.totalorder %s100, 1
      %p202 = scmp.ne.s32.totalorder %s197, %s199
      %p203 = scmp.eq.s32.totalorder %s100, 0
      %p204 = por %p202, %p203
      %p205 = scmp.ne.s32.totalorder %s197, %s199
      %p206 = scmp.eq.s32.totalorder %s105, 1
      %p207 = por %p205, %p206
      %p208 = scmp.ne.s32.totalorder %s199, %s200
      %p209 = scmp.eq.s32.totalorder %s105, 0
      %p210 = por %p208, %p209
      %p211 = scmp.ne.s32.totalorder %s199, %s200
      %p212 = scmp.eq.s32.totalorder %s106, 1
      %p213 = por %p211, %p212
      %p215 = scmp.ne.s32.totalorder %s200, %s214
      %p216 = scmp.eq.s32.totalorder %s106, 0
      %p217 = por %p215, %p216
      %s219 = sadd.s32 %s218, 1
      %p222 = scmp.eq.s32.totalorder %s100, 1
      %p223 = scmp.ne.s32.totalorder %s218, %s220
      %p224 = scmp.eq.s32.totalorder %s100, 0
      %p225 = por %p223, %p224
      %p226 = scmp.ne.s32.totalorder %s218, %s220
      %p227 = scmp.eq.s32.totalorder %s105, 1
      %p228 = por %p226, %p227
      %p229 = scmp.ne.s32.totalorder %s220, %s221
      %p230 = scmp.eq.s32.totalorder %s105, 0
      %p231 = por %p229, %p230
      %p232 = scmp.ne.s32.totalorder %s220, %s221
      %p233 = scmp.eq.s32.totalorder %s106, 1
      %p234 = por %p232, %p233
      %p236 = scmp.ne.s32.totalorder %s221, %s235
      %p237 = scmp.eq.s32.totalorder %s106, 0
      %p238 = por %p236, %p237
      %s240 = sadd.s32 %s239, 1
      %p243 = scmp.eq.s32.totalorder %s100, 1
      %p244 = scmp.ne.s32.totalorder %s239, %s241
      %p245 = scmp.eq.s32.totalorder %s100, 0
      %p246 = por %p244, %p245
      %p247 = scmp.ne.s32.totalorder %s239, %s241
      %p248 = scmp.eq.s32.totalorder %s105, 1
      %p249 = por %p247, %p248
      %p250 = scmp.ne.s32.totalorder %s241, %s242
      %p251 = scmp.eq.s32.totalorder %s105, 0
      %p252 = por %p250, %p251
      %p253 = scmp.ne.s32.totalorder %s241, %s242
      %p254 = scmp.eq.s32.totalorder %s106, 1
      %p255 = por %p253, %p254
      %p257 = scmp.ne.s32.totalorder %s242, %s256
      %p258 = scmp.eq.s32.totalorder %s106, 0
      %p259 = por %p257, %p258
      %s261 = sadd.s32 %s260, 1
      %p264 = scmp.eq.s32.totalorder %s100, 1
      %p265 = scmp.ne.s32.totalorder %s260, %s262
      %p266 = scmp.eq.s32.totalorder %s100, 0
      %p267 = por %p265, %p266
      %p268 = scmp.ne.s32.totalorder %s260, %s262
      %p269 = scmp.eq.s32.totalorder %s105, 1
      %p270 = por %p268, %p269
      %p271 = scmp.ne.s32.totalorder %s262, %s263
      %p272 = scmp.eq.s32.totalorder %s105, 0
      %p273 = por %p271, %p272
      %p274 = scmp.ne.s32.totalorder %s262, %s263
      %p275 = scmp.eq.s32.totalorder %s106, 1
      %p276 = por %p274, %p275
      %p278 = scmp.ne.s32.totalorder %s263, %s277
      %p279 = scmp.eq.s32.totalorder %s106, 0
      %p280 = por %p278, %p279
      %s282 = sadd.s32 %s281, 1
      %p285 = scmp.eq.s32.totalorder %s100, 1
      %p286 = scmp.ne.s32.totalorder %s281, %s283
      %p287 = scmp.eq.s32.totalorder %s100, 0
      %p288 = por %p286, %p287
      %p289 = scmp.ne.s32.totalorder %s281, %s283
      %p290 = scmp.eq.s32.totalorder %s105, 1
      %p291 = por %p289, %p290
      %p292 = scmp.ne.s32.totalorder %s283, %s284
      %p293 = scmp.eq.s32.totalorder %s105, 0
      %p294 = por %p292, %p293
      %p295 = scmp.ne.s32.totalorder %s283, %s284
      %p296 = scmp.eq.s32.totalorder %s106, 1
      %p297 = por %p295, %p296
      %p299 = scmp.ne.s32.totalorder %s284, %s298
      %p300 = scmp.eq.s32.totalorder %s106, 0
      %p301 = por %p299, %p300
      %s303 = sadd.s32 %s302, 1
      %p306 = scmp.eq.s32.totalorder %s100, 1
      %p307 = scmp.ne.s32.totalorder %s302, %s304
      %p308 = scmp.eq.s32.totalorder %s100, 0
      %p309 = por %p307, %p308
      %p310 = scmp.ne.s32.totalorder %s302, %s304
      %p311 = scmp.eq.s32.totalorder %s105, 1
      %p312 = por %p310, %p311
      %p313 = scmp.ne.s32.totalorder %s304, %s305
      %p314 = scmp.eq.s32.totalorder %s105, 0
      %p315 = por %p313, %p314
      %p316 = scmp.ne.s32.totalorder %s304, %s305
      %p317 = scmp.eq.s32.totalorder %s106, 1
      %p318 = por %p316, %p317
      %p320 = scmp.ne.s32.totalorder %s305, %s319
      %p321 = scmp.eq.s32.totalorder %s106, 0
      %p322 = por %p320, %p321
      %s324 = sadd.s32 %s323, 1
      %p327 = scmp.eq.s32.totalorder %s100, 1
      %p328 = scmp.ne.s32.totalorder %s323, %s325
      %p329 = scmp.eq.s32.totalorder %s100, 0
      %p330 = por %p328, %p329
      %p331 = scmp.ne.s32.totalorder %s323, %s325
      %p332 = scmp.eq.s32.totalorder %s105, 1
      %p333 = por %p331, %p332
      %p334 = scmp.ne.s32.totalorder %s325, %s326
      %p335 = scmp.eq.s32.totalorder %s105, 0
      %p336 = por %p334, %p335
      %p337 = scmp.ne.s32.totalorder %s325, %s326
      %p338 = scmp.eq.s32.totalorder %s106, 1
      %p339 = por %p337, %p338
      %p341 = scmp.ne.s32.totalorder %s326, %s340
      %p342 = scmp.eq.s32.totalorder %s106, 0
      %p343 = por %p341, %p342
      %s345 = sadd.s32 %s344, 1
      %p348 = scmp.eq.s32.totalorder %s100, 1
      %p349 = scmp.ne.s32.totalorder %s344, %s346
      %p350 = scmp.eq.s32.totalorder %s100, 0
      %p351 = por %p349, %p350
      %p352 = scmp.ne.s32.totalorder %s344, %s346
      %p353 = scmp.eq.s32.totalorder %s105, 1
      %p354 = por %p352, %p353
      %p355 = scmp.ne.s32.totalorder %s346, %s347
      %p356 = scmp.eq.s32.totalorder %s105, 0
      %p357 = por %p355, %p356
      %p358 = scmp.ne.s32.totalorder %s346, %s347
      %p359 = scmp.eq.s32.totalorder %s106, 1
      %p360 = por %p358, %p359
      %p362 = scmp.ne.s32.totalorder %s347, %s361
      %p363 = scmp.eq.s32.totalorder %s106, 0
      %p364 = por %p362, %p363
      %s366 = sadd.s32 %s365, 1
      %p369 = scmp.eq.s32.totalorder %s100, 1
      %p370 = scmp.ne.s32.totalorder %s365, %s367
      %p371 = scmp.eq.s32.totalorder %s100, 0
      %p372 = por %p370, %p371
      %p373 = scmp.ne.s32.totalorder %s365, %s367
      %p374 = scmp.eq.s32.totalorder %s105, 1
      %p375 = por %p373, %p374
      %p376 = scmp.ne.s32.totalorder %s367, %s368
      %p377 = scmp.eq.s32.totalorder %s105, 0
      %p378 = por %p376, %p377
      %p379 = scmp.ne.s32.totalorder %s367, %s368
      %p380 = scmp.eq.s32.totalorder %s106, 1
      %p381 = por %p379, %p380
      %p383 = scmp.ne.s32.totalorder %s368, %s382
      %p384 = scmp.eq.s32.totalorder %s106, 0
      %p385 = por %p383, %p384
      %s387 = sadd.s32 %s386, 1
      %p390 = scmp.eq.s32.totalorder %s100, 1
      %p391 = scmp.ne.s32.totalorder %s386, %s388
      %p392 = scmp.eq.s32.totalorder %s100, 0
      %p393 = por %p391, %p392
      %p394 = scmp.ne.s32.totalorder %s386, %s388
      %p395 = scmp.eq.s32.totalorder %s105, 1
      %p396 = por %p394, %p395
      %p397 = scmp.ne.s32.totalorder %s388, %s389
      %p398 = scmp.eq.s32.totalorder %s105, 0
      %p399 = por %p397, %p398
      %p400 = scmp.ne.s32.totalorder %s388, %s389
      %p401 = scmp.eq.s32.totalorder %s106, 1
      %p402 = por %p400, %p401
      %p404 = scmp.ne.s32.totalorder %s389, %s403
      %p405 = scmp.eq.s32.totalorder %s106, 0
      %p406 = por %p404, %p405
      %s408 = sadd.s32 %s407, 1
      %p411 = scmp.eq.s32.totalorder %s100, 1
      %p412 = scmp.ne.s32.totalorder %s407, %s409
      %p413 = scmp.eq.s32.totalorder %s100, 0
      %p414 = por %p412, %p413
      %p415 = scmp.ne.s32.totalorder %s407, %s409
      %p416 = scmp.eq.s32.totalorder %s105, 1
      %p417 = por %p415, %p416
      %p418 = scmp.ne.s32.totalorder %s409, %s410
      %p419 = scmp.eq.s32.totalorder %s105, 0
      %p420 = por %p418, %p419
      %p421 = scmp.ne.s32.totalorder %s409, %s410
      %p422 = scmp.eq.s32.totalorder %s106, 1
      %p423 = por %p421, %p422
      %p425 = scmp.ne.s32.totalorder %s410, %s424
      %p426 = scmp.eq.s32.totalorder %s106, 0
      %p427 = por %p425, %p426
      %s429 = sadd.s32 %s428, 1
      %p432 = scmp.eq.s32.totalorder %s100, 1
      %p433 = scmp.ne.s32.totalorder %s428, %s430
      %p434 = scmp.eq.s32.totalorder %s100, 0
      %p435 = por %p433, %p434
      %p436 = scmp.ne.s32.totalorder %s428, %s430
      %p437 = scmp.eq.s32.totalorder %s105, 1
      %p438 = por %p436, %p437
      %p439 = scmp.ne.s32.totalorder %s430, %s431
      %p440 = scmp.eq.s32.totalorder %s105, 0
      %p441 = por %p439, %p440
      %p442 = scmp.ne.s32.totalorder %s430, %s431
      %p443 = scmp.eq.s32.totalorder %s106, 1
      %p444 = por %p442, %p443
      %p446 = scmp.ne.s32.totalorder %s431, %s445
      %p447 = scmp.eq.s32.totalorder %s106, 0
      %p448 = por %p446, %p447
      %s450 = sadd.s32 %s449, 1
      %p453 = scmp.eq.s32.totalorder %s100, 1
      %p454 = scmp.ne.s32.totalorder %s449, %s451
      %p455 = scmp.eq.s32.totalorder %s100, 0
      %p456 = por %p454, %p455
      %p457 = scmp.ne.s32.totalorder %s449, %s451
      %p458 = scmp.eq.s32.totalorder %s105, 1
      %p459 = por %p457, %p458
      %p460 = scmp.ne.s32.totalorder %s451, %s452
      %p461 = scmp.eq.s32.totalorder %s105, 0
      %p462 = por %p460, %p461
      %p463 = scmp.ne.s32.totalorder %s451, %s452
      %p464 = scmp.eq.s32.totalorder %s106, 1
      %p465 = por %p463, %p464
      %p467 = scmp.ne.s32.totalorder %s452, %s466
      %p468 = scmp.eq.s32.totalorder %s106, 0
      %p469 = por %p467, %p468
      %s471 = sadd.s32 %s470, 1
      %p474 = scmp.eq.s32.totalorder %s100, 1
      %p475 = scmp.ne.s32.totalorder %s470, %s472
      %p476 = scmp.eq.s32.totalorder %s100, 0
      %p477 = por %p475, %p476
      %p478 = scmp.ne.s32.totalorder %s470, %s472
      %p479 = scmp.eq.s32.totalorder %s105, 1
      %p480 = por %p478, %p479
      %p481 = scmp.ne.s32.totalorder %s472, %s473
      %p482 = scmp.eq.s32.totalorder %s105, 0
      %p483 = por %p481, %p482
      %p484 = scmp.ne.s32.totalorder %s472, %s473
      %p485 = scmp.eq.s32.totalorder %s106, 1
      %p486 = por %p484, %p485
      %p488 = scmp.ne.s32.totalorder %s473, %s487
      %p489 = scmp.eq.s32.totalorder %s106, 0
      %p490 = por %p488, %p489
      %s492 = sadd.s32 %s491, 1
      %p495 = scmp.eq.s32.totalorder %s100, 1
      %p496 = scmp.ne.s32.totalorder %s491, %s493
      %p497 = scmp.eq.s32.totalorder %s100, 0
      %p498 = por %p496, %p497
      %p499 = scmp.ne.s32.totalorder %s491, %s493
      %p500 = scmp.eq.s32.totalorder %s105, 1
      %p501 = por %p499, %p500
      %p502 = scmp.ne.s32.totalorder %s493, %s494
      %p503 = scmp.eq.s32.totalorder %s105, 0
      %p504 = por %p502, %p503
      %p505 = scmp.ne.s32.totalorder %s493, %s494
      %p506 = scmp.eq.s32.totalorder %s106, 1
      %p507 = por %p505, %p506
      %p509 = scmp.ne.s32.totalorder %s494, %s508
      %p510 = scmp.eq.s32.totalorder %s106, 0
      %p511 = por %p509, %p510
      %s513 = sadd.s32 %s512, 1
      %p516 = scmp.eq.s32.totalorder %s100, 1
      %p517 = scmp.ne.s32.totalorder %s512, %s514
      %p518 = scmp.eq.s32.totalorder %s100, 0
      %p519 = por %p517, %p518
      %p520 = scmp.ne.s32.totalorder %s512, %s514
      %p521 = scmp.eq.s32.totalorder %s105, 1
      %p522 = por %p520, %p521
      %p523 = scmp.ne.s32.totalorder %s514, %s515
      %p524 = scmp.eq.s32.totalorder %s105, 0
      %p525 = por %p523, %p524
      %p526 = scmp.ne.s32.totalorder %s514, %s515
      %p527 = scmp.eq.s32.totalorder %s106, 1
      %p528 = por %p526, %p527
      %p530 = scmp.ne.s32.totalorder %s515, %s529
      %p531 = scmp.eq.s32.totalorder %s106, 0
      %p532 = por %p530, %p531
      %s534 = sadd.s32 %s533, 1
      %p537 = scmp.eq.s32.totalorder %s100, 1
      %p538 = scmp.ne.s32.totalorder %s533, %s535
      %p539 = scmp.eq.s32.totalorder %s100, 0
      %p540 = por %p538, %p539
      %p541 = scmp.ne.s32.totalorder %s533, %s535
      %p542 = scmp.eq.s32.totalorder %s105, 1
      %p543 = por %p541, %p542
      %p544 = scmp.ne.s32.totalorder %s535, %s536
      %p545 = scmp.eq.s32.totalorder %s105, 0
      %p546 = por %p544, %p545
      %p547 = scmp.ne.s32.totalorder %s535, %s536
      %p548 = scmp.eq.s32.totalorder %s106, 1
      %p549 = por %p547, %p548
      %p551 = scmp.ne.s32.totalorder %s536, %s550
      %p552 = scmp.eq.s32.totalorder %s106, 0
      %p553 = por %p551, %p552
      %s555 = sadd.s32 %s554, 1
      %p558 = scmp.eq.s32.totalorder %s100, 1
      %p559 = scmp.ne.s32.totalorder %s554, %s556
      %p560 = scmp.eq.s32.totalorder %s100, 0
      %p561 = por %p559, %p560
      %p562 = scmp.ne.s32.totalorder %s554, %s556
      %p563 = scmp.eq.s32.totalorder %s105, 1
      %p564 = por %p562, %p563
      %p565 = scmp.ne.s32.totalorder %s556, %s557
      %p566 = scmp.eq.s32.totalorder %s105, 0
      %p567 = por %p565, %p566
      %p568 = scmp.ne.s32.totalorder %s556, %s557
      %p569 = scmp.eq.s32.totalorder %s106, 1
      %p570 = por %p568, %p569
      %p572 = scmp.ne.s32.totalorder %s557, %s571
      %p573 = scmp.eq.s32.totalorder %s106, 0
      %p574 = por %p572, %p573
      %s576 = sadd.s32 %s575, 1
      %p579 = scmp.eq.s32.totalorder %s100, 1
      %p580 = scmp.ne.s32.totalorder %s575, %s577
      %p581 = scmp.eq.s32.totalorder %s100, 0
      %p582 = por %p580, %p581
      %p583 = scmp.ne.s32.totalorder %s575, %s577
      %p584 = scmp.eq.s32.totalorder %s105, 1
      %p585 = por %p583, %p584
      %p586 = scmp.ne.s32.totalorder %s577, %s578
      %p587 = scmp.eq.s32.totalorder %s105, 0
      %p588 = por %p586, %p587
      %p589 = scmp.ne.s32.totalorder %s577, %s578
      %p590 = scmp.eq.s32.totalorder %s106, 1
      %p591 = por %p589, %p590
      %p593 = scmp.ne.s32.totalorder %s578, %s592
      %p594 = scmp.eq.s32.totalorder %s106, 0
      %p595 = por %p593, %p594
      %s597 = sadd.s32 %s596, 1
      %p600 = scmp.eq.s32.totalorder %s100, 1
      %p601 = scmp.ne.s32.totalorder %s596, %s598
      %p602 = scmp.eq.s32.totalorder %s100, 0
      %p603 = por %p601, %p602
      %p604 = scmp.ne.s32.totalorder %s596, %s598
      %p605 = scmp.eq.s32.totalorder %s105, 1
      %p606 = por %p604, %p605
      %p607 = scmp.ne.s32.totalorder %s598, %s599
      %p608 = scmp.eq.s32.totalorder %s105, 0
      %p609 = por %p607, %p608
      %p610 = scmp.ne.s32.totalorder %s598, %s599
      %p611 = scmp.eq.s32.totalorder %s106, 1
      %p612 = por %p610, %p611
      %p614 = scmp.ne.s32.totalorder %s599, %s613
      %p615 = scmp.eq.s32.totalorder %s106, 0
      %p616 = por %p614, %p615
      %s618 = sadd.s32 %s617, 1
      %p621 = scmp.eq.s32.totalorder %s100, 1
      %p622 = scmp.ne.s32.totalorder %s617, %s619
      %p623 = scmp.eq.s32.totalorder %s100, 0
      %p624 = por %p622, %p623
      %p625 = scmp.ne.s32.totalorder %s617, %s619
      %p626 = scmp.eq.s32.totalorder %s105, 1
      %p627 = por %p625, %p626
      %p628 = scmp.ne.s32.totalorder %s619, %s620
      %p629 = scmp.eq.s32.totalorder %s105, 0
      %p630 = por %p628, %p629
      %p631 = scmp.ne.s32.totalorder %s619, %s620
      %p632 = scmp.eq.s32.totalorder %s106, 1
      %p633 = por %p631, %p632
      %p635 = scmp.ne.s32.totalorder %s620, %s634
      %p636 = scmp.eq.s32.totalorder %s106, 0
      %p637 = por %p635, %p636
      %s639 = sadd.s32 %s638, 1
      %p642 = scmp.eq.s32.totalorder %s100, 1
      %p643 = scmp.ne.s32.totalorder %s638, %s640
      %p644 = scmp.eq.s32.totalorder %s100, 0
      %p645 = por %p643, %p644
      %p646 = scmp.ne.s32.totalorder %s638, %s640
      %p647 = scmp.eq.s32.totalorder %s105, 1
      %p648 = por %p646, %p647
      %p649 = scmp.ne.s32.totalorder %s640, %s641
      %p650 = scmp.eq.s32.totalorder %s105, 0
      %p651 = por %p649, %p650
      %p652 = scmp.ne.s32.totalorder %s640, %s641
      %p653 = scmp.eq.s32.totalorder %s106, 1
      %p654 = por %p652, %p653
      %p656 = scmp.ne.s32.totalorder %s641, %s655
      %p657 = scmp.eq.s32.totalorder %s106, 0
      %p658 = por %p656, %p657
      %s660 = sadd.s32 %s659, 1
      %p663 = scmp.eq.s32.totalorder %s100, 1
      %p664 = scmp.ne.s32.totalorder %s659, %s661
      %p665 = scmp.eq.s32.totalorder %s100, 0
      %p666 = por %p664, %p665
      %p667 = scmp.ne.s32.totalorder %s659, %s661
      %p668 = scmp.eq.s32.totalorder %s105, 1
      %p669 = por %p667, %p668
      %p670 = scmp.ne.s32.totalorder %s661, %s662
      %p671 = scmp.eq.s32.totalorder %s105, 0
      %p672 = por %p670, %p671
      %p673 = scmp.ne.s32.totalorder %s661, %s662
      %p674 = scmp.eq.s32.totalorder %s106, 1
      %p675 = por %p673, %p674
      %p677 = scmp.ne.s32.totalorder %s662, %s676
      %p678 = scmp.eq.s32.totalorder %s106, 0
      %p679 = por %p677, %p678
      %s681 = sadd.s32 %s680, 1
      %p684 = scmp.eq.s32.totalorder %s100, 1
      %p685 = scmp.ne.s32.totalorder %s680, %s682
      %p686 = scmp.eq.s32.totalorder %s100, 0
      %p687 = por %p685, %p686
      %p688 = scmp.ne.s32.totalorder %s680, %s682
      %p689 = scmp.eq.s32.totalorder %s105, 1
      %p690 = por %p688, %p689
      %p691 = scmp.ne.s32.totalorder %s682, %s683
      %p692 = scmp.eq.s32.totalorder %s105, 0
      %p693 = por %p691, %p692
      %p694 = scmp.ne.s32.totalorder %s682, %s683
      %p695 = scmp.eq.s32.totalorder %s106, 1
      %p696 = por %p694, %p695
      %p698 = scmp.ne.s32.totalorder %s683, %s697
      %p699 = scmp.eq.s32.totalorder %s106, 0
      %p700 = por %p698, %p699
      %s702 = sadd.s32 %s701, 1
      %p705 = scmp.eq.s32.totalorder %s100, 1
      %p706 = scmp.ne.s32.totalorder %s701, %s703
      %p707 = scmp.eq.s32.totalorder %s100, 0
      %p708 = por %p706, %p707
      %p709 = scmp.ne.s32.totalorder %s701, %s703
      %p710 = scmp.eq.s32.totalorder %s105, 1
      %p711 = por %p709, %p710
      %p712 = scmp.ne.s32.totalorder %s703, %s704
      %p713 = scmp.eq.s32.totalorder %s105, 0
      %p714 = por %p712, %p713
      %p715 = scmp.ne.s32.totalorder %s703, %s704
      %p716 = scmp.eq.s32.totalorder %s106, 1
      %p717 = por %p715, %p716
      %p719 = scmp.ne.s32.totalorder %s704, %s718
      %p720 = scmp.eq.s32.totalorder %s106, 0
      %p721 = por %p719, %p720
      %s723 = sadd.s32 %s722, 1
      %p726 = scmp.eq.s32.totalorder %s100, 1
      %p727 = scmp.ne.s32.totalorder %s722, %s724
      %p728 = scmp.eq.s32.totalorder %s100, 0
      %p729 = por %p727, %p728
      %p730 = scmp.ne.s32.totalorder %s722, %s724
      %p731 = scmp.eq.s32.totalorder %s105, 1
      %p732 = por %p730, %p731
      %p733 = scmp.ne.s32.totalorder %s724, %s725
      %p734 = scmp.eq.s32.totalorder %s105, 0
      %p735 = por %p733, %p734
      %p736 = scmp.ne.s32.totalorder %s724, %s725
      %p737 = scmp.eq.s32.totalorder %s106, 1
      %p738 = por %p736, %p737
      %p740 = scmp.ne.s32.totalorder %s725, %s739
      %p741 = scmp.eq.s32.totalorder %s106, 0
      %p742 = por %p740, %p741
      %s744 = sadd.s32 %s743, 1
      %p747 = scmp.eq.s32.totalorder %s100, 1
      %p748 = scmp.ne.s32.totalorder %s743, %s745
      %p749 = scmp.eq.s32.totalorder %s100, 0
      %p750 = por %p748, %p749
      %p751 = scmp.ne.s32.totalorder %s743, %s745
      %p752 = scmp.eq.s32.totalorder %s105, 1
      %p753 = por %p751, %p752
      %p754 = scmp.ne.s32.totalorder %s745, %s746
      %p755 = scmp.eq.s32.totalorder %s105, 0
      %p756 = por %p754, %p755
      %p757 = scmp.ne.s32.totalorder %s745, %s746
      %p758 = scmp.eq.s32.totalorder %s106, 1
      %p759 = por %p757, %p758
      %p761 = scmp.ne.s32.totalorder %s746, %s760
      %p762 = scmp.eq.s32.totalorder %s106, 0
      %p763 = por %p761, %p762
      %s765 = sadd.s32 %s764, 1
      %p768 = scmp.eq.s32.totalorder %s100, 1
      %p769 = scmp.ne.s32.totalorder %s764, %s766
      %p770 = scmp.eq.s32.totalorder %s100, 0
      %p771 = por %p769, %p770
      %p772 = scmp.ne.s32.totalorder %s764, %s766
      %p773 = scmp.eq.s32.totalorder %s105, 1
      %p774 = por %p772, %p773
      %p775 = scmp.ne.s32.totalorder %s766, %s767
      %p776 = scmp.eq.s32.totalorder %s105, 0
      %p777 = por %p775, %p776
      %p778 = scmp.ne.s32.totalorder %s766, %s767
      %p779 = scmp.eq.s32.totalorder %s106, 1
      %p780 = por %p778, %p779
      %p782 = scmp.ne.s32.totalorder %s767, %s781
      %p783 = scmp.eq.s32.totalorder %s106, 0
      %p784 = por %p782, %p783
      %s786 = sadd.s32 %s785, 1
      %p789 = scmp.eq.s32.totalorder %s100, 1
      %p790 = scmp.ne.s32.totalorder %s785, %s787
      %p791 = scmp.eq.s32.totalorder %s100, 0
      %p792 = por %p790, %p791
      %p793 = scmp.ne.s32.totalorder %s785, %s787
      %p794 = scmp.eq.s32.totalorder %s105, 1
      %p795 = por %p793, %p794
      %p796 = scmp.ne.s32.totalorder %s787, %s788
      %p797 = scmp.eq.s32.totalorder %s105, 0
      %p798 = por %p796, %p797
      %p799 = scmp.ne.s32.totalorder %s787, %s788
      %p800 = scmp.eq.s32.totalorder %s106, 1
      %p801 = por %p799, %p800
      %p803 = scmp.ne.s32.totalorder %s788, %s802
      %p804 = scmp.eq.s32.totalorder %s106, 0
      %p805 = por %p803, %p804
      %s807 = sadd.s32 %s806, 1
      %p810 = scmp.eq.s32.totalorder %s100, 1
      %p811 = scmp.ne.s32.totalorder %s806, %s808
      %p812 = scmp.eq.s32.totalorder %s100, 0
      %p813 = por %p811, %p812
      %p814 = scmp.ne.s32.totalorder %s806, %s808
      %p815 = scmp.eq.s32.totalorder %s105, 1
      %p816 = por %p814, %p815
      %p817 = scmp.ne.s32.totalorder %s808, %s809
      %p818 = scmp.eq.s32.totalorder %s105, 0
      %p819 = por %p817, %p818
      %p820 = scmp.ne.s32.totalorder %s808, %s809
      %p821 = scmp.eq.s32.totalorder %s106, 1
      %p822 = por %p820, %p821
      %p824 = scmp.ne.s32.totalorder %s809, %s823
      %p825 = scmp.eq.s32.totalorder %s106, 0
      %p826 = por %p824, %p825
      %s828 = sadd.s32 %s827, 1
      %p831 = scmp.eq.s32.totalorder %s100, 1
      %p832 = scmp.ne.s32.totalorder %s827, %s829
      %p833 = scmp.eq.s32.totalorder %s100, 0
      %p834 = por %p832, %p833
      %p835 = scmp.ne.s32.totalorder %s827, %s829
      %p836 = scmp.eq.s32.totalorder %s105, 1
      %p837 = por %p835, %p836
      %p838 = scmp.ne.s32.totalorder %s829, %s830
      %p839 = scmp.eq.s32.totalorder %s105, 0
      %p840 = por %p838, %p839
      %p841 = scmp.ne.s32.totalorder %s829, %s830
      %p842 = scmp.eq.s32.totalorder %s106, 1
      %p843 = por %p841, %p842
      %p845 = scmp.ne.s32.totalorder %s830, %s844
      %p846 = scmp.eq.s32.totalorder %s106, 0
      %p847 = por %p845, %p846
      %s849 = sadd.s32 %s848, 1
      %p852 = scmp.eq.s32.totalorder %s100, 1
      %p853 = scmp.ne.s32.totalorder %s848, %s850
      %p854 = scmp.eq.s32.totalorder %s100, 0
      %p855 = por %p853, %p854
      %p856 = scmp.ne.s32.totalorder %s848, %s850
      %p857 = scmp.eq.s32.totalorder %s105, 1
      %p858 = por %p856, %p857
      %p859 = scmp.ne.s32.totalorder %s850, %s851
      %p860 = scmp.eq.s32.totalorder %s105, 0
      %p861 = por %p859, %p860
      %p862 = scmp.ne.s32.totalorder %s850, %s851
      %p863 = scmp.eq.s32.totalorder %s106, 1
      %p864 = por %p862, %p863
      %p866 = scmp.ne.s32.totalorder %s851, %s865
      %p867 = scmp.eq.s32.totalorder %s106, 0
      %p868 = por %p866, %p867
      %s870 = sadd.s32 %s869, 1
      %p873 = scmp.eq.s32.totalorder %s100, 1
      %p874 = scmp.ne.s32.totalorder %s869, %s871
      %p875 = scmp.eq.s32.totalorder %s100, 0
      %p876 = por %p874, %p875
      %p877 = scmp.ne.s32.totalorder %s869, %s871
      %p878 = scmp.eq.s32.totalorder %s105, 1
      %p879 = por %p877, %p878
      %p880 = scmp.ne.s32.totalorder %s871, %s872
      %p881 = scmp.eq.s32.totalorder %s105, 0
      %p882 = por %p880, %p881
      %p883 = scmp.ne.s32.totalorder %s871, %s872
      %p884 = scmp.eq.s32.totalorder %s106, 1
      %p885 = por %p883, %p884
      %p887 = scmp.ne.s32.totalorder %s872, %s886
      %p888 = scmp.eq.s32.totalorder %s106, 0
      %p889 = por %p887, %p888
      %s891 = sadd.s32 %s890, 1
      %p894 = scmp.eq.s32.totalorder %s100, 1
      %p895 = scmp.ne.s32.totalorder %s890, %s892
      %p896 = scmp.eq.s32.totalorder %s100, 0
      %p897 = por %p895, %p896
      %p898 = scmp.ne.s32.totalorder %s890, %s892
      %p899 = scmp.eq.s32.totalorder %s105, 1
      %p900 = por %p898, %p899
      %p901 = scmp.ne.s32.totalorder %s892, %s893
      %p902 = scmp.eq.s32.totalorder %s105, 0
      %p903 = por %p901, %p902
      %p904 = scmp.ne.s32.totalorder %s892, %s893
      %p905 = scmp.eq.s32.totalorder %s106, 1
      %p906 = por %p904, %p905
      %p908 = scmp.ne.s32.totalorder %s893, %s907
      %p909 = scmp.eq.s32.totalorder %s106, 0
      %p910 = por %p908, %p909
      %s912 = sadd.s32 %s911, 1
      %p915 = scmp.eq.s32.totalorder %s100, 1
      %p916 = scmp.ne.s32.totalorder %s911, %s913
      %p917 = scmp.eq.s32.totalorder %s100, 0
      %p918 = por %p916, %p917
      %p919 = scmp.ne.s32.totalorder %s911, %s913
      %p920 = scmp.eq.s32.totalorder %s105, 1
      %p921 = por %p919, %p920
      %p922 = scmp.ne.s32.totalorder %s913, %s914
      %p923 = scmp.eq.s32.totalorder %s105, 0
      %p924 = por %p922, %p923
      %p925 = scmp.ne.s32.totalorder %s913, %s914
      %p926 = scmp.eq.s32.totalorder %s106, 1
      %p927 = por %p925, %p926
      %p929 = scmp.ne.s32.totalorder %s914, %s928
      %p930 = scmp.eq.s32.totalorder %s106, 0
      %p931 = por %p929, %p930
      %s933 = sadd.s32 %s932, 1
      %p936 = scmp.eq.s32.totalorder %s100, 1
      %p937 = scmp.ne.s32.totalorder %s932, %s934
      %p938 = scmp.eq.s32.totalorder %s100, 0
      %p939 = por %p937, %p938
      %p940 = scmp.ne.s32.totalorder %s932, %s934
      %p941 = scmp.eq.s32.totalorder %s105, 1
      %p942 = por %p940, %p941
      %p943 = scmp.ne.s32.totalorder %s934, %s935
      %p944 = scmp.eq.s32.totalorder %s105, 0
      %p945 = por %p943, %p944
      %p946 = scmp.ne.s32.totalorder %s934, %s935
      %p947 = scmp.eq.s32.totalorder %s106, 1
      %p948 = por %p946, %p947
      %p950 = scmp.ne.s32.totalorder %s935, %s949
      %p951 = scmp.eq.s32.totalorder %s106, 0
      %p952 = por %p950, %p951
      %s954 = sadd.s32 %s953, 1
      %p957 = scmp.eq.s32.totalorder %s100, 1
      %p958 = scmp.ne.s32.totalorder %s953, %s955
      %p959 = scmp.eq.s32.totalorder %s100, 0
      %p960 = por %p958, %p959
      %p961 = scmp.ne.s32.totalorder %s953, %s955
      %p962 = scmp.eq.s32.totalorder %s105, 1
      %p963 = por %p961, %p962
      %p964 = scmp.ne.s32.totalorder %s955, %s956
      %p965 = scmp.eq.s32.totalorder %s105, 0
      %p966 = por %p964, %p965
      %p967 = scmp.ne.s32.totalorder %s955, %s956
      %p968 = scmp.eq.s32.totalorder %s106, 1
      %p969 = por %p967, %p968
      %p971 = scmp.ne.s32.totalorder %s956, %s970
      %p972 = scmp.eq.s32.totalorder %s106, 0
      %p973 = por %p971, %p972
      %s974 = ssub.s32 %s100, %s107
      %p975 = scmp.eq.s32.totalorder %s974, 0
      %s977 = sadd.s32 %s976, 1
      %s978 = scalar_select %p975, %s976, %s977
      %p981 = pneg %p975
      %p982 = scmp.eq.s32.totalorder %s100, 1
      %p983 = por %p981, %p982
      %p984 = scmp.ne.s32.totalorder %s976, %s979
      %p985 = scmp.eq.s32.totalorder %s100, 0
      %p986 = por %p984, %p985
      %p987 = scmp.ne.s32.totalorder %s976, %s979
      %p988 = scmp.eq.s32.totalorder %s105, 1
      %p989 = por %p987, %p988
      %p990 = scmp.ne.s32.totalorder %s979, %s980
      %p991 = scmp.eq.s32.totalorder %s105, 0
      %p992 = por %p990, %p991
      %p993 = scmp.ne.s32.totalorder %s979, %s980
      %p994 = scmp.eq.s32.totalorder %s106, 1
      %p995 = por %p993, %p994
      %p997 = scmp.ne.s32.totalorder %s980, %s996
      %p998 = scmp.eq.s32.totalorder %s106, 0
      %p999 = por %p997, %p998
      %p1000 = scmp.le.s32.totalorder 1, %s100
      %p1001 = scmp.lt.s32.totalorder %s100, 3
      %p1002 = pnand %p1000, %p1001
      %p1003 = pneg %p1002
      // Predicated region
      $region9: #{tpu_custom_call.1} parent=5 // pred_check
        _
      $region10: #{tpu_custom_call.1} parent=5 // pred_check_branch
        %1005 = sbr.rel (%p1002) target = $region12
      $region11: #{tpu_custom_call.1} parent=5 // pred_region
        %s1006 = ssub.s32 %s100, 1
        // Predicated region
        $region13: #{tpu_custom_call.1} parent=11 // pred_check
          %p1007 = pneg %p147
        $region14: #{tpu_custom_call.1} parent=11 // pred_check_branch
          %1009 = sbr.rel (%p1007) target = $region16
        $region15: #{tpu_custom_call.1} parent=11 // pred_region
          _
        $region16: #{tpu_custom_call.1} parent=11 // pred_fallthru
          _
        // Predicated region
        $region17: #{tpu_custom_call.1} parent=11 // pred_check
          %p1010 = pneg %p168
        $region18: #{tpu_custom_call.1} parent=11 // pred_check_branch
          %1012 = sbr.rel (%p1010) target = $region20
        $region19: #{tpu_custom_call.1} parent=11 // pred_region
          %s1014 = ssub.s32 16, 16
          %1015 = vsyncadd [#allocation3], %s1014
          %s1017 = sshll.u32 [#allocation2], 4
          %s1018 = int_to_ptr.vmem [resolvable:$true] %s1017
          %1020 = dma.hbm_to_vmem [thread:$0]  %s5, 16, %s1018, [#allocation3]
        $region20: #{tpu_custom_call.1} parent=11 // pred_fallthru
          _
        // Predicated region
        $region21: #{tpu_custom_call.1} parent=11 // pred_check
          %p1021 = pneg %p189
        $region22: #{tpu_custom_call.1} parent=11 // pred_check_branch
          %1023 = sbr.rel (%p1021) target = $region24
        $region23: #{tpu_custom_call.1} parent=11 // pred_region
          %s1025 = ssub.s32 128, 128
          %1026 = vsyncadd [#allocation5], %s1025
          %s1028 = sshll.u32 [#allocation4], 4
          %s1029 = int_to_ptr.vmem [resolvable:$true] %s1028
          %1031 = dma.hbm_to_vmem [thread:$0]  %s7, 128, %s1029, [#allocation5]
        $region24: #{tpu_custom_call.1} parent=11 // pred_fallthru
          _
        // Predicated region
        $region25: #{tpu_custom_call.1} parent=11 // pred_check
          %p1032 = pneg %p210
        $region26: #{tpu_custom_call.1} parent=11 // pred_check_branch
          %1034 = sbr.rel (%p1032) target = $region28
        $region27: #{tpu_custom_call.1} parent=11 // pred_region
          %s1036 = ssub.s32 128, 128
          %1037 = vsyncadd [#allocation5], %s1036
          %s1039 = sshll.u32 [#allocation6], 4
          %s1040 = int_to_ptr.vmem [resolvable:$true] %s1039
          %1042 = dma.hbm_to_vmem [thread:$0]  %s9, 128, %s1040, [#allocation5]
        $region28: #{tpu_custom_call.1} parent=11 // pred_fallthru
          _
        // Predicated region
        $region29: #{tpu_custom_call.1} parent=11 // pred_check
          %p1043 = pneg %p231
        $region30: #{tpu_custom_call.1} parent=11 // pred_check_branch
          %1045 = sbr.rel (%p1043) target = $region32
        $region31: #{tpu_custom_call.1} parent=11 // pred_region
          %s1047 = ssub.s32 128, 128
          %1048 = vsyncadd [#allocation8], %s1047
          %s1050 = sshll.u32 [#allocation7], 4
          %s1051 = int_to_ptr.vmem [resolvable:$true] %s1050
          %1053 = dma.hbm_to_vmem [thread:$0]  %s11, 128, %s1051, [#allocation8]
        $region32: #{tpu_custom_call.1} parent=11 // pred_fallthru
          _
        // Predicated region
        $region33: #{tpu_custom_call.1} parent=11 // pred_check
          %p1054 = pneg %p252
        $region34: #{tpu_custom_call.1} parent=11 // pred_check_branch
          %1056 = sbr.rel (%p1054) target = $region36
        $region35: #{tpu_custom_call.1} parent=11 // pred_region
          %s1058 = ssub.s32 16, 16
          %1059 = vsyncadd [#allocation8], %s1058
          %s1061 = sshll.u32 [#allocation9], 4
          %s1062 = int_to_ptr.vmem [resolvable:$true] %s1061
          %1064 = dma.hbm_to_vmem [thread:$0]  %s13, 16, %s1062, [#allocation8]
        $region36: #{tpu_custom_call.1} parent=11 // pred_fallthru
          _
        // Predicated region
        $region37: #{tpu_custom_call.1} parent=11 // pred_check
          %p1065 = pneg %p273
        $region38: #{tpu_custom_call.1} parent=11 // pred_check_branch
          %1067 = sbr.rel (%p1065) target = $region40
        $region39: #{tpu_custom_call.1} parent=11 // pred_region
          %s1069 = ssub.s32 16, 16
          %1070 = vsyncadd [#allocation11], %s1069
          %s1072 = sshll.u32 [#allocation10], 4
          %s1073 = int_to_ptr.vmem [resolvable:$true] %s1072
          %1075 = dma.hbm_to_vmem [thread:$0]  %s15, 16, %s1073, [#allocation11]
        $region40: #{tpu_custom_call.1} parent=11 // pred_fallthru
          _
        // Predicated region
        $region41: #{tpu_custom_call.1} parent=11 // pred_check
          %p1076 = pneg %p294
        $region42: #{tpu_custom_call.1} parent=11 // pred_check_branch
          %1078 = sbr.rel (%p1076) target = $region44
        $region43: #{tpu_custom_call.1} parent=11 // pred_region
          %s1080 = ssub.s32 16, 16
          %1081 = vsyncadd [#allocation11], %s1080
          %s1083 = sshll.u32 [#allocation12], 4
          %s1084 = int_to_ptr.vmem [resolvable:$true] %s1083
          %1086 = dma.hbm_to_vmem [thread:$0]  %s17, 16, %s1084, [#allocation11]
        $region44: #{tpu_custom_call.1} parent=11 // pred_fallthru
          _
        // Predicated region
        $region45: #{tpu_custom_call.1} parent=11 // pred_check
          %p1087 = pneg %p315
        $region46: #{tpu_custom_call.1} parent=11 // pred_check_branch
          %1089 = sbr.rel (%p1087) target = $region48
        $region47: #{tpu_custom_call.1} parent=11 // pred_region
          %s1091 = ssub.s32 128, 128
          %1092 = vsyncadd [#allocation14], %s1091
          %s1094 = sshll.u32 [#allocation13], 4
          %s1095 = int_to_ptr.vmem [resolvable:$true] %s1094
          %1097 = dma.hbm_to_vmem [thread:$0]  %s19, 128, %s1095, [#allocation14]
        $region48: #{tpu_custom_call.1} parent=11 // pred_fallthru
          _
        // Predicated region
        $region49: #{tpu_custom_call.1} parent=11 // pred_check
          %p1098 = pneg %p336
        $region50: #{tpu_custom_call.1} parent=11 // pred_check_branch
          %1100 = sbr.rel (%p1098) target = $region52
        $region51: #{tpu_custom_call.1} parent=11 // pred_region
          %s1102 = ssub.s32 16, 16
          %1103 = vsyncadd [#allocation14], %s1102
          %s1105 = sshll.u32 [#allocation15], 4
          %s1106 = int_to_ptr.vmem [resolvable:$true] %s1105
          %1108 = dma.hbm_to_vmem [thread:$0]  %s21, 16, %s1106, [#allocation14]
        $region52: #{tpu_custom_call.1} parent=11 // pred_fallthru
          _
        // Predicated region
        $region53: #{tpu_custom_call.1} parent=11 // pred_check
          %p1109 = pneg %p357
        $region54: #{tpu_custom_call.1} parent=11 // pred_check_branch
          %1111 = sbr.rel (%p1109) target = $region56
        $region55: #{tpu_custom_call.1} parent=11 // pred_region
          %s1113 = ssub.s32 128, 128
          %1114 = vsyncadd [#allocation17], %s1113
          %s1116 = sshll.u32 [#allocation16], 4
          %s1117 = int_to_ptr.vmem [resolvable:$true] %s1116
          %1119 = dma.hbm_to_vmem [thread:$0]  %s23, 128, %s1117, [#allocation17]
        $region56: #{tpu_custom_call.1} parent=11 // pred_fallthru
          _
        // Predicated region
        $region57: #{tpu_custom_call.1} parent=11 // pred_check
          %p1120 = pneg %p378
        $region58: #{tpu_custom_call.1} parent=11 // pred_check_branch
          %1122 = sbr.rel (%p1120) target = $region60
        $region59: #{tpu_custom_call.1} parent=11 // pred_region
          %s1124 = ssub.s32 16, 16
          %1125 = vsyncadd [#allocation17], %s1124
          %s1127 = sshll.u32 [#allocation18], 4
          %s1128 = int_to_ptr.vmem [resolvable:$true] %s1127
          %1130 = dma.hbm_to_vmem [thread:$0]  %s25, 16, %s1128, [#allocation17]
        $region60: #{tpu_custom_call.1} parent=11 // pred_fallthru
          _
        // Predicated region
        $region61: #{tpu_custom_call.1} parent=11 // pred_check
          %p1131 = pneg %p399
        $region62: #{tpu_custom_call.1} parent=11 // pred_check_branch
          %1133 = sbr.rel (%p1131) target = $region64
        $region63: #{tpu_custom_call.1} parent=11 // pred_region
          _
        $region64: #{tpu_custom_call.1} parent=11 // pred_fallthru
          _
        // Predicated region
        $region65: #{tpu_custom_call.1} parent=11 // pred_check
          %p1134 = pneg %p420
        $region66: #{tpu_custom_call.1} parent=11 // pred_check_branch
          %1136 = sbr.rel (%p1134) target = $region68
        $region67: #{tpu_custom_call.1} parent=11 // pred_region
          _
        $region68: #{tpu_custom_call.1} parent=11 // pred_fallthru
          _
        // Predicated region
        $region69: #{tpu_custom_call.1} parent=11 // pred_check
          %p1137 = pneg %p441
        $region70: #{tpu_custom_call.1} parent=11 // pred_check_branch
          %1139 = sbr.rel (%p1137) target = $region72
        $region71: #{tpu_custom_call.1} parent=11 // pred_region
          _
        $region72: #{tpu_custom_call.1} parent=11 // pred_fallthru
          _
        // Predicated region
        $region73: #{tpu_custom_call.1} parent=11 // pred_check
          %p1140 = pneg %p462
        $region74: #{tpu_custom_call.1} parent=11 // pred_check_branch
          %1142 = sbr.rel (%p1140) target = $region76
        $region75: #{tpu_custom_call.1} parent=11 // pred_region
          %s1144 = ssub.s32 16, 16
          %1145 = vsyncadd [#allocation20], %s1144
          %s1147 = sshll.u32 [#allocation19], 4
          %s1148 = int_to_ptr.vmem [resolvable:$true] %s1147
          %1150 = dma.hbm_to_vmem [thread:$0]  %s33, 16, %s1148, [#allocation20]
        $region76: #{tpu_custom_call.1} parent=11 // pred_fallthru
          _
        // Predicated region
        $region77: #{tpu_custom_call.1} parent=11 // pred_check
          %p1151 = pneg %p483
        $region78: #{tpu_custom_call.1} parent=11 // pred_check_branch
          %1153 = sbr.rel (%p1151) target = $region80
        $region79: #{tpu_custom_call.1} parent=11 // pred_region
          %s1155 = ssub.s32 16, 16
          %1156 = vsyncadd [#allocation20], %s1155
          %s1158 = sshll.u32 [#allocation21], 4
          %s1159 = int_to_ptr.vmem [resolvable:$true] %s1158
          %1161 = dma.hbm_to_vmem [thread:$0]  %s35, 16, %s1159, [#allocation20]
        $region80: #{tpu_custom_call.1} parent=11 // pred_fallthru
          _
        // Predicated region
        $region81: #{tpu_custom_call.1} parent=11 // pred_check
          %p1162 = pneg %p504
        $region82: #{tpu_custom_call.1} parent=11 // pred_check_branch
          %1164 = sbr.rel (%p1162) target = $region84
        $region83: #{tpu_custom_call.1} parent=11 // pred_region
          _
        $region84: #{tpu_custom_call.1} parent=11 // pred_fallthru
          _
        // Predicated region
        $region85: #{tpu_custom_call.1} parent=11 // pred_check
          %p1165 = pneg %p525
        $region86: #{tpu_custom_call.1} parent=11 // pred_check_branch
          %1167 = sbr.rel (%p1165) target = $region88
        $region87: #{tpu_custom_call.1} parent=11 // pred_region
          _
        $region88: #{tpu_custom_call.1} parent=11 // pred_fallthru
          _
        // Predicated region
        $region89: #{tpu_custom_call.1} parent=11 // pred_check
          %p1168 = pneg %p546
        $region90: #{tpu_custom_call.1} parent=11 // pred_check_branch
          %1170 = sbr.rel (%p1168) target = $region92
        $region91: #{tpu_custom_call.1} parent=11 // pred_region
          %s1172 = ssub.s32 16, 16
          %1173 = vsyncadd [#allocation23], %s1172
          %s1175 = sshll.u32 [#allocation22], 4
          %s1176 = int_to_ptr.vmem [resolvable:$true] %s1175
          %1178 = dma.hbm_to_vmem [thread:$0]  %s41, 16, %s1176, [#allocation23]
        $region92: #{tpu_custom_call.1} parent=11 // pred_fallthru
          _
        // Predicated region
        $region93: #{tpu_custom_call.1} parent=11 // pred_check
          %p1179 = pneg %p567
        $region94: #{tpu_custom_call.1} parent=11 // pred_check_branch
          %1181 = sbr.rel (%p1179) target = $region96
        $region95: #{tpu_custom_call.1} parent=11 // pred_region
          %s1183 = ssub.s32 128, 128
          %1184 = vsyncadd [#allocation23], %s1183
          %s1186 = sshll.u32 [#allocation24], 4
          %s1187 = int_to_ptr.vmem [resolvable:$true] %s1186
          %1189 = dma.hbm_to_vmem [thread:$0]  %s43, 128, %s1187, [#allocation23]
        $region96: #{tpu_custom_call.1} parent=11 // pred_fallthru
          _
        // Predicated region
        $region97: #{tpu_custom_call.1} parent=11 // pred_check
          %p1190 = pneg %p588
        $region98: #{tpu_custom_call.1} parent=11 // pred_check_branch
          %1192 = sbr.rel (%p1190) target = $region100
        $region99: #{tpu_custom_call.1} parent=11 // pred_region
          %s1194 = ssub.s32 16, 16
          %1195 = vsyncadd [#allocation26], %s1194
          %s1197 = sshll.u32 [#allocation25], 4
          %s1198 = int_to_ptr.vmem [resolvable:$true] %s1197
          %1200 = dma.hbm_to_vmem [thread:$0]  %s45, 16, %s1198, [#allocation26]
        $region100: #{tpu_custom_call.1} parent=11 // pred_fallthru
          _
        // Predicated region
        $region101: #{tpu_custom_call.1} parent=11 // pred_check
          %p1201 = pneg %p609
        $region102: #{tpu_custom_call.1} parent=11 // pred_check_branch
          %1203 = sbr.rel (%p1201) target = $region104
        $region103: #{tpu_custom_call.1} parent=11 // pred_region
          _
        $region104: #{tpu_custom_call.1} parent=11 // pred_fallthru
          _
        // Predicated region
        $region105: #{tpu_custom_call.1} parent=11 // pred_check
          %p1204 = pneg %p630
        $region106: #{tpu_custom_call.1} parent=11 // pred_check_branch
          %1206 = sbr.rel (%p1204) target = $region108
        $region107: #{tpu_custom_call.1} parent=11 // pred_region
          _
        $region108: #{tpu_custom_call.1} parent=11 // pred_fallthru
          _
        // Predicated region
        $region109: #{tpu_custom_call.1} parent=11 // pred_check
          %p1207 = pneg %p651
        $region110: #{tpu_custom_call.1} parent=11 // pred_check_branch
          %1209 = sbr.rel (%p1207) target = $region112
        $region111: #{tpu_custom_call.1} parent=11 // pred_region
          _
        $region112: #{tpu_custom_call.1} parent=11 // pred_fallthru
          _
        // Predicated region
        $region113: #{tpu_custom_call.1} parent=11 // pred_check
          %p1210 = pneg %p672
        $region114: #{tpu_custom_call.1} parent=11 // pred_check_branch
          %1212 = sbr.rel (%p1210) target = $region116
        $region115: #{tpu_custom_call.1} parent=11 // pred_region
          %s1214 = ssub.s32 16, 16
          %1215 = vsyncadd [#allocation26], %s1214
          %s1217 = sshll.u32 [#allocation27], 4
          %s1218 = int_to_ptr.vmem [resolvable:$true] %s1217
          %1220 = dma.hbm_to_vmem [thread:$0]  %s53, 16, %s1218, [#allocation26]
        $region116: #{tpu_custom_call.1} parent=11 // pred_fallthru
          _
        // Predicated region
        $region117: #{tpu_custom_call.1} parent=11 // pred_check
          %p1221 = pneg %p693
        $region118: #{tpu_custom_call.1} parent=11 // pred_check_branch
          %1223 = sbr.rel (%p1221) target = $region120
        $region119: #{tpu_custom_call.1} parent=11 // pred_region
          %s1225 = ssub.s32 16, 16
          %1226 = vsyncadd [#allocation29], %s1225
          %s1228 = sshll.u32 [#allocation28], 4
          %s1229 = int_to_ptr.vmem [resolvable:$true] %s1228
          %1231 = dma.hbm_to_vmem [thread:$0]  %s55, 16, %s1229, [#allocation29]
        $region120: #{tpu_custom_call.1} parent=11 // pred_fallthru
          _
        // Predicated region
        $region121: #{tpu_custom_call.1} parent=11 // pred_check
          %p1232 = pneg %p714
        $region122: #{tpu_custom_call.1} parent=11 // pred_check_branch
          %1234 = sbr.rel (%p1232) target = $region124
        $region123: #{tpu_custom_call.1} parent=11 // pred_region
          %s1236 = ssub.s32 16, 16
          %1237 = vsyncadd [#allocation29], %s1236
          %s1239 = sshll.u32 [#allocation30], 4
          %s1240 = int_to_ptr.vmem [resolvable:$true] %s1239
          %1242 = dma.hbm_to_vmem [thread:$0]  %s57, 16, %s1240, [#allocation29]
        $region124: #{tpu_custom_call.1} parent=11 // pred_fallthru
          _
        // Predicated region
        $region125: #{tpu_custom_call.1} parent=11 // pred_check
          %p1243 = pneg %p735
        $region126: #{tpu_custom_call.1} parent=11 // pred_check_branch
          %1245 = sbr.rel (%p1243) target = $region128
        $region127: #{tpu_custom_call.1} parent=11 // pred_region
          _
        $region128: #{tpu_custom_call.1} parent=11 // pred_fallthru
          _
        // Predicated region
        $region129: #{tpu_custom_call.1} parent=11 // pred_check
          %p1246 = pneg %p756
        $region130: #{tpu_custom_call.1} parent=11 // pred_check_branch
          %1248 = sbr.rel (%p1246) target = $region132
        $region131: #{tpu_custom_call.1} parent=11 // pred_region
          %s1250 = ssub.s32 16, 16
          %1251 = vsyncadd [#allocation32], %s1250
          %s1253 = sshll.u32 [#allocation31], 4
          %s1254 = int_to_ptr.vmem [resolvable:$true] %s1253
          %1256 = dma.hbm_to_vmem [thread:$0]  %s61, 16, %s1254, [#allocation32]
        $region132: #{tpu_custom_call.1} parent=11 // pred_fallthru
          _
        // Predicated region
        $region133: #{tpu_custom_call.1} parent=11 // pred_check
          %p1257 = pneg %p777
        $region134: #{tpu_custom_call.1} parent=11 // pred_check_branch
          %1259 = sbr.rel (%p1257) target = $region136
        $region135: #{tpu_custom_call.1} parent=11 // pred_region
          _
        $region136: #{tpu_custom_call.1} parent=11 // pred_fallthru
          _
        // Predicated region
        $region137: #{tpu_custom_call.1} parent=11 // pred_check
          %p1260 = pneg %p798
        $region138: #{tpu_custom_call.1} parent=11 // pred_check_branch
          %1262 = sbr.rel (%p1260) target = $region140
        $region139: #{tpu_custom_call.1} parent=11 // pred_region
          %s1264 = ssub.s32 16, 16
          %1265 = vsyncadd [#allocation32], %s1264
          %s1267 = sshll.u32 [#allocation33], 4
          %s1268 = int_to_ptr.vmem [resolvable:$true] %s1267
          %1270 = dma.hbm_to_vmem [thread:$0]  %s65, 16, %s1268, [#allocation32]
        $region140: #{tpu_custom_call.1} parent=11 // pred_fallthru
          _
        // Predicated region
        $region141: #{tpu_custom_call.1} parent=11 // pred_check
          %p1271 = pneg %p819
        $region142: #{tpu_custom_call.1} parent=11 // pred_check_branch
          %1273 = sbr.rel (%p1271) target = $region144
        $region143: #{tpu_custom_call.1} parent=11 // pred_region
          _
        $region144: #{tpu_custom_call.1} parent=11 // pred_fallthru
          _
        // Predicated region
        $region145: #{tpu_custom_call.1} parent=11 // pred_check
          %p1274 = pneg %p840
        $region146: #{tpu_custom_call.1} parent=11 // pred_check_branch
          %1276 = sbr.rel (%p1274) target = $region148
        $region147: #{tpu_custom_call.1} parent=11 // pred_region
          _
        $region148: #{tpu_custom_call.1} parent=11 // pred_fallthru
          _
        // Predicated region
        $region149: #{tpu_custom_call.1} parent=11 // pred_check
          %p1277 = pneg %p861
        $region150: #{tpu_custom_call.1} parent=11 // pred_check_branch
          %1279 = sbr.rel (%p1277) target = $region152
        $region151: #{tpu_custom_call.1} parent=11 // pred_region
          _
        $region152: #{tpu_custom_call.1} parent=11 // pred_fallthru
          _
        // Predicated region
        $region153: #{tpu_custom_call.1} parent=11 // pred_check
          %p1280 = pneg %p882
        $region154: #{tpu_custom_call.1} parent=11 // pred_check_branch
          %1282 = sbr.rel (%p1280) target = $region156
        $region155: #{tpu_custom_call.1} parent=11 // pred_region
          _
        $region156: #{tpu_custom_call.1} parent=11 // pred_fallthru
          _
        // Predicated region
        $region157: #{tpu_custom_call.1} parent=11 // pred_check
          %p1283 = pneg %p903
        $region158: #{tpu_custom_call.1} parent=11 // pred_check_branch
          %1285 = sbr.rel (%p1283) target = $region160
        $region159: #{tpu_custom_call.1} parent=11 // pred_region
          _
        $region160: #{tpu_custom_call.1} parent=11 // pred_fallthru
          _
        // Predicated region
        $region161: #{tpu_custom_call.1} parent=11 // pred_check
          %p1286 = pneg %p924
        $region162: #{tpu_custom_call.1} parent=11 // pred_check_branch
          %1288 = sbr.rel (%p1286) target = $region164
        $region163: #{tpu_custom_call.1} parent=11 // pred_region
          _
        $region164: #{tpu_custom_call.1} parent=11 // pred_fallthru
          _
        // Predicated region
        $region165: #{tpu_custom_call.1} parent=11 // pred_check
          %p1289 = pneg %p945
        $region166: #{tpu_custom_call.1} parent=11 // pred_check_branch
          %1291 = sbr.rel (%p1289) target = $region168
        $region167: #{tpu_custom_call.1} parent=11 // pred_region
          _
        $region168: #{tpu_custom_call.1} parent=11 // pred_fallthru
          _
        // Predicated region
        $region169: #{tpu_custom_call.1} parent=11 // pred_check
          %p1292 = pneg %p966
        $region170: #{tpu_custom_call.1} parent=11 // pred_check_branch
          %1294 = sbr.rel (%p1292) target = $region172
        $region171: #{tpu_custom_call.1} parent=11 // pred_region
          _
        $region172: #{tpu_custom_call.1} parent=11 // pred_fallthru
          _
      $region12: #{tpu_custom_call.1} parent=5 // pred_fallthru
        _
      %p1295 = scmp.lt.s32.totalorder %s100, 2
      // Predicated region
      $region173: #{tpu_custom_call.1} parent=5 // pred_check
        %p1296 = pneg %p1295
      $region174: #{tpu_custom_call.1} parent=5 // pred_check_branch
        %1298 = sbr.rel (%p1296) target = $region176
      $region175: #{tpu_custom_call.1} parent=5 // pred_region
        // Predicated region
        $region177: #{tpu_custom_call.1} parent=175 // pred_check
          %p1299 = pneg %p120
        $region178: #{tpu_custom_call.1} parent=175 // pred_check_branch
          %1301 = sbr.rel (%p1299) target = $region180
        $region179: #{tpu_custom_call.1} parent=175 // pred_region
          %p1302 = scmp.lt.s32.totalorder %s100, 1
          %s1303 = scalar_select %p1302, %s100, 1
          %s1304 = smul.addr %s1303, 2
          %s1305 = smul.addr %s1304, 8
          %s1306 = scalar_lea.vmem %s1, %s1305
        $region180: #{tpu_custom_call.1} parent=175 // pred_fallthru
          _
      $region176: #{tpu_custom_call.1} parent=5 // pred_fallthru
        _
      %p1307 = scmp.le.s32.totalorder 1, %s100
      %p1308 = scmp.lt.s32.totalorder %s100, 3
      %p1309 = pnand %p1307, %p1308
      %p1310 = pneg %p1309
      // Predicated region
      $region181: #{tpu_custom_call.1} parent=5 // pred_check
        _
      $region182: #{tpu_custom_call.1} parent=5 // pred_check_branch
        %1312 = sbr.rel (%p1309) target = $region184
      $region183: #{tpu_custom_call.1} parent=5 // pred_region
        %s1313 = ssub.s32 %s100, 1
        // Predicated region
        $region185: #{tpu_custom_call.1} parent=183 // pred_check
          %p1314 = pneg %p168
        $region186: #{tpu_custom_call.1} parent=183 // pred_check_branch
          %1316 = sbr.rel (%p1314) target = $region188
        $region187: #{tpu_custom_call.1} parent=183 // pred_region
          %1317 = dma.done [#allocation3], 16
        $region188: #{tpu_custom_call.1} parent=183 // pred_fallthru
          _
        // Predicated region
        $region189: #{tpu_custom_call.1} parent=183 // pred_check
          %p1318 = pneg %p189
        $region190: #{tpu_custom_call.1} parent=183 // pred_check_branch
          %1320 = sbr.rel (%p1318) target = $region192
        $region191: #{tpu_custom_call.1} parent=183 // pred_region
          %1321 = dma.done [#allocation5], 128
        $region192: #{tpu_custom_call.1} parent=183 // pred_fallthru
          _
        // Predicated region
        $region193: #{tpu_custom_call.1} parent=183 // pred_check
          %p1322 = pneg %p210
        $region194: #{tpu_custom_call.1} parent=183 // pred_check_branch
          %1324 = sbr.rel (%p1322) target = $region196
        $region195: #{tpu_custom_call.1} parent=183 // pred_region
          %1325 = dma.done [#allocation5], 128
        $region196: #{tpu_custom_call.1} parent=183 // pred_fallthru
          _
        // Predicated region
        $region197: #{tpu_custom_call.1} parent=183 // pred_check
          %p1326 = pneg %p231
        $region198: #{tpu_custom_call.1} parent=183 // pred_check_branch
          %1328 = sbr.rel (%p1326) target = $region200
        $region199: #{tpu_custom_call.1} parent=183 // pred_region
          %1329 = dma.done [#allocation8], 128
        $region200: #{tpu_custom_call.1} parent=183 // pred_fallthru
          _
        // Predicated region
        $region201: #{tpu_custom_call.1} parent=183 // pred_check
          %p1330 = pneg %p252
        $region202: #{tpu_custom_call.1} parent=183 // pred_check_branch
          %1332 = sbr.rel (%p1330) target = $region204
        $region203: #{tpu_custom_call.1} parent=183 // pred_region
          %1333 = dma.done [#allocation8], 16
        $region204: #{tpu_custom_call.1} parent=183 // pred_fallthru
          _
        // Predicated region
        $region205: #{tpu_custom_call.1} parent=183 // pred_check
          %p1334 = pneg %p273
        $region206: #{tpu_custom_call.1} parent=183 // pred_check_branch
          %1336 = sbr.rel (%p1334) target = $region208
        $region207: #{tpu_custom_call.1} parent=183 // pred_region
          %1337 = dma.done [#allocation11], 16
        $region208: #{tpu_custom_call.1} parent=183 // pred_fallthru
          _
        // Predicated region
        $region209: #{tpu_custom_call.1} parent=183 // pred_check
          %p1338 = pneg %p294
        $region210: #{tpu_custom_call.1} parent=183 // pred_check_branch
          %1340 = sbr.rel (%p1338) target = $region212
        $region211: #{tpu_custom_call.1} parent=183 // pred_region
          %1341 = dma.done [#allocation11], 16
        $region212: #{tpu_custom_call.1} parent=183 // pred_fallthru
          _
        // Predicated region
        $region213: #{tpu_custom_call.1} parent=183 // pred_check
          %p1342 = pneg %p315
        $region214: #{tpu_custom_call.1} parent=183 // pred_check_branch
          %1344 = sbr.rel (%p1342) target = $region216
        $region215: #{tpu_custom_call.1} parent=183 // pred_region
          %1345 = dma.done [#allocation14], 128
        $region216: #{tpu_custom_call.1} parent=183 // pred_fallthru
          _
        // Predicated region
        $region217: #{tpu_custom_call.1} parent=183 // pred_check
          %p1346 = pneg %p336
        $region218: #{tpu_custom_call.1} parent=183 // pred_check_branch
          %1348 = sbr.rel (%p1346) target = $region220
        $region219: #{tpu_custom_call.1} parent=183 // pred_region
          %1349 = dma.done [#allocation14], 16
        $region220: #{tpu_custom_call.1} parent=183 // pred_fallthru
          _
        // Predicated region
        $region221: #{tpu_custom_call.1} parent=183 // pred_check
          %p1350 = pneg %p357
        $region222: #{tpu_custom_call.1} parent=183 // pred_check_branch
          %1352 = sbr.rel (%p1350) target = $region224
        $region223: #{tpu_custom_call.1} parent=183 // pred_region
          %1353 = dma.done [#allocation17], 128
        $region224: #{tpu_custom_call.1} parent=183 // pred_fallthru
          _
        // Predicated region
        $region225: #{tpu_custom_call.1} parent=183 // pred_check
          %p1354 = pneg %p378
        $region226: #{tpu_custom_call.1} parent=183 // pred_check_branch
          %1356 = sbr.rel (%p1354) target = $region228
        $region227: #{tpu_custom_call.1} parent=183 // pred_region
          %1357 = dma.done [#allocation17], 16
        $region228: #{tpu_custom_call.1} parent=183 // pred_fallthru
          _
        // Predicated region
        $region229: #{tpu_custom_call.1} parent=183 // pred_check
          %p1358 = pneg %p462
        $region230: #{tpu_custom_call.1} parent=183 // pred_check_branch
          %1360 = sbr.rel (%p1358) target = $region232
        $region231: #{tpu_custom_call.1} parent=183 // pred_region
          %1361 = dma.done [#allocation20], 16
        $region232: #{tpu_custom_call.1} parent=183 // pred_fallthru
          _
        // Predicated region
        $region233: #{tpu_custom_call.1} parent=183 // pred_check
          %p1362 = pneg %p483
        $region234: #{tpu_custom_call.1} parent=183 // pred_check_branch
          %1364 = sbr.rel (%p1362) target = $region236
        $region235: #{tpu_custom_call.1} parent=183 // pred_region
          %1365 = dma.done [#allocation20], 16
        $region236: #{tpu_custom_call.1} parent=183 // pred_fallthru
          _
        // Predicated region
        $region237: #{tpu_custom_call.1} parent=183 // pred_check
          %p1366 = pneg %p546
        $region238: #{tpu_custom_call.1} parent=183 // pred_check_branch
          %1368 = sbr.rel (%p1366) target = $region240
        $region239: #{tpu_custom_call.1} parent=183 // pred_region
          %1369 = dma.done [#allocation23], 16
        $region240: #{tpu_custom_call.1} parent=183 // pred_fallthru
          _
        // Predicated region
        $region241: #{tpu_custom_call.1} parent=183 // pred_check
          %p1370 = pneg %p567
        $region242: #{tpu_custom_call.1} parent=183 // pred_check_branch
          %1372 = sbr.rel (%p1370) target = $region244
        $region243: #{tpu_custom_call.1} parent=183 // pred_region
          %1373 = dma.done [#allocation23], 128
        $region244: #{tpu_custom_call.1} parent=183 // pred_fallthru
          _
        // Predicated region
        $region245: #{tpu_custom_call.1} parent=183 // pred_check
          %p1374 = pneg %p588
        $region246: #{tpu_custom_call.1} parent=183 // pred_check_branch
          %1376 = sbr.rel (%p1374) target = $region248
        $region247: #{tpu_custom_call.1} parent=183 // pred_region
          %1377 = dma.done [#allocation26], 16
        $region248: #{tpu_custom_call.1} parent=183 // pred_fallthru
          _
        // Predicated region
        $region249: #{tpu_custom_call.1} parent=183 // pred_check
          %p1378 = pneg %p672
        $region250: #{tpu_custom_call.1} parent=183 // pred_check_branch
          %1380 = sbr.rel (%p1378) target = $region252
        $region251: #{tpu_custom_call.1} parent=183 // pred_region
          %1381 = dma.done [#allocation26], 16
        $region252: #{tpu_custom_call.1} parent=183 // pred_fallthru
          _
        // Predicated region
        $region253: #{tpu_custom_call.1} parent=183 // pred_check
          %p1382 = pneg %p693
        $region254: #{tpu_custom_call.1} parent=183 // pred_check_branch
          %1384 = sbr.rel (%p1382) target = $region256
        $region255: #{tpu_custom_call.1} parent=183 // pred_region
          %1385 = dma.done [#allocation29], 16
        $region256: #{tpu_custom_call.1} parent=183 // pred_fallthru
          _
        // Predicated region
        $region257: #{tpu_custom_call.1} parent=183 // pred_check
          %p1386 = pneg %p714
        $region258: #{tpu_custom_call.1} parent=183 // pred_check_branch
          %1388 = sbr.rel (%p1386) target = $region260
        $region259: #{tpu_custom_call.1} parent=183 // pred_region
          %1389 = dma.done [#allocation29], 16
        $region260: #{tpu_custom_call.1} parent=183 // pred_fallthru
          _
        // Predicated region
        $region261: #{tpu_custom_call.1} parent=183 // pred_check
          %p1390 = pneg %p756
        $region262: #{tpu_custom_call.1} parent=183 // pred_check_branch
          %1392 = sbr.rel (%p1390) target = $region264
        $region263: #{tpu_custom_call.1} parent=183 // pred_region
          %1393 = dma.done [#allocation32], 16
        $region264: #{tpu_custom_call.1} parent=183 // pred_fallthru
          _
        // Predicated region
        $region265: #{tpu_custom_call.1} parent=183 // pred_check
          %p1394 = pneg %p798
        $region266: #{tpu_custom_call.1} parent=183 // pred_check_branch
          %1396 = sbr.rel (%p1394) target = $region268
        $region267: #{tpu_custom_call.1} parent=183 // pred_region
          %1397 = dma.done [#allocation32], 16
        $region268: #{tpu_custom_call.1} parent=183 // pred_fallthru
          _
        %p1398 = scmp.lt.s32.totalorder %s105, 1
        %s1399 = scalar_select %p1398, %s105, 1
        %s1400 = smul.addr %s1399, 2
        %s1401 = smul.addr %s1400, 8
        %s1402 = scalar_lea.vmem %s1, %s1401
        %p1403 = pneg %p126
        %p1404 = pneg %p123
        %p1405 = pneg %p147
        %p1406 = pneg %p144
        %p1407 = pneg %p168
        %p1408 = pneg %p165
        %p1409 = pneg %p189
        %p1410 = pneg %p186
        %p1411 = pneg %p210
        %p1412 = pneg %p207
        %p1413 = pneg %p231
        %p1414 = pneg %p228
        %p1415 = pneg %p252
        %p1416 = pneg %p249
        %p1417 = pneg %p273
        %p1418 = pneg %p270
        %p1419 = pneg %p294
        %p1420 = pneg %p291
        %p1421 = pneg %p315
        %p1422 = pneg %p312
        %p1423 = pneg %p336
        %p1424 = pneg %p333
        %p1425 = pneg %p357
        %p1426 = pneg %p354
        %p1427 = pneg %p378
        %p1428 = pneg %p375
        %p1429 = pneg %p399
        %p1430 = pneg %p396
        %p1431 = pneg %p420
        %p1432 = pneg %p417
        %p1433 = pneg %p441
        %p1434 = pneg %p438
        %p1435 = pneg %p462
        %p1436 = pneg %p459
        %p1437 = pneg %p483
        %p1438 = pneg %p480
        %p1439 = pneg %p504
        %p1440 = pneg %p501
        %p1441 = pneg %p525
        %p1442 = pneg %p522
        %p1443 = pneg %p546
        %p1444 = pneg %p543
        %p1445 = pneg %p567
        %p1446 = pneg %p564
        %p1447 = pneg %p588
        %p1448 = pneg %p585
        %p1449 = pneg %p609
        %p1450 = pneg %p606
        %p1451 = pneg %p630
        %p1452 = pneg %p627
        %p1453 = pneg %p651
        %p1454 = pneg %p648
        %p1455 = pneg %p672
        %p1456 = pneg %p669
        %p1457 = pneg %p693
        %p1458 = pneg %p690
        %p1459 = pneg %p714
        %p1460 = pneg %p711
        %p1461 = pneg %p735
        %p1462 = pneg %p732
        %p1463 = pneg %p756
        %p1464 = pneg %p753
        %p1465 = pneg %p777
        %p1466 = pneg %p774
        %p1467 = pneg %p798
        %p1468 = pneg %p795
        %p1469 = pneg %p819
        %p1470 = pneg %p816
        %p1471 = pneg %p840
        %p1472 = pneg %p837
        %p1473 = pneg %p861
        %p1474 = pneg %p858
        %p1475 = pneg %p882
        %p1476 = pneg %p879
        %p1477 = pneg %p903
        %p1478 = pneg %p900
        %p1479 = pneg %p924
        %p1480 = pneg %p921
        %p1481 = pneg %p945
        %p1482 = pneg %p942
        %p1483 = pneg %p966
        %p1484 = pneg %p963
        %p1485 = pneg %p992
        %p1486 = pneg %p989
        %p1487 = scmp.lt.s32.totalorder %s105, 1
        %s1488 = scalar_select %p1487, %s105, 1
        %s1489 = smul.addr %s1488, 2
        %s1490 = smul.addr %s1489, 8
        %s1491 = scalar_lea.vmem %s83, %s1490
        %p1492 = scmp.lt.s32.totalorder %s105, 1
        %s1493 = scalar_select %p1492, %s105, 1
        %s1494 = smul.addr %s1493, 2
        %s1495 = smul.addr %s1494, 8
        %s1496 = scalar_lea.vmem %s1, %s1495
        %p1497 = scmp.lt.s32.totalorder %s105, 1
        %s1498 = scalar_select %p1497, %s105, 1
        %s1499 = smul.addr %s1498, 2
        %s1500 = smul.addr %s1499, 8
        %s1501 = scalar_lea.vmem %s83, %s1500
        %v1502 = vld [vmem:[%s1496] sm:$0xff]
        %v1503 = vld [vmem:[%s1496 + $0x8] sm:$0xff]
        %v1504 = vld [vmem:[%s3] sm:$0xff]
        %v1505 = vld [vmem:[%s3 + $0x8] sm:$0xff]
        %v1506 = vld [vmem:[#allocation2] sm:$0x1]
        %v1508 = vlaneseq
        %v1509 = vshrl.u32 %v1508, 7
        %v1510 = vsub.s32 0, %v1509
        %v1511 = vrot.slane %v1506, %v1510
        %1513 = vxpose.xlu0.b32.start [1/16] %v1502, 128
        %1514 = vxpose.xlu0.b32.cont [2/16] %v1503, 128
        %1515 = vxpose.xlu0.b32.cont [3/16] 0.0, 128
        %1516 = vxpose.xlu0.b32.cont [4/16] 0.0, 128
        %1517 = vxpose.xlu0.b32.cont [5/16] 0.0, 128
        %1518 = vxpose.xlu0.b32.cont [6/16] 0.0, 128
        %1519 = vxpose.xlu0.b32.cont [7/16] 0.0, 128
        %1520 = vxpose.xlu0.b32.cont [8/16] 0.0, 128
        %1521 = vxpose.xlu0.b32.cont [9/16] 0.0, 128
        %1522 = vxpose.xlu0.b32.cont [10/16] 0.0, 128
        %1523 = vxpose.xlu0.b32.cont [11/16] 0.0, 128
        %1524 = vxpose.xlu0.b32.cont [12/16] 0.0, 128
        %1525 = vxpose.xlu0.b32.cont [13/16] 0.0, 128
        %1526 = vxpose.xlu0.b32.cont [14/16] 0.0, 128
        %1527 = vxpose.xlu0.b32.cont [15/16] 0.0, 128
        %1528 = vxpose.xlu0.b32.end [16/16] 0.0, 128
        %v1529 = vpop.trf.xlu0
        %v1530 = vpop.trf.xlu0
        %v1531 = vpop.trf.xlu0
        %v1532 = vpop.trf.xlu0
        %v1533 = vpop.trf.xlu0
        %v1534 = vpop.trf.xlu0
        %v1535 = vpop.trf.xlu0
        %v1536 = vpop.trf.xlu0
        %v1537 = vpop.trf.xlu0
        %v1538 = vpop.trf.xlu0
        %v1539 = vpop.trf.xlu0
        %v1540 = vpop.trf.xlu0
        %v1541 = vpop.trf.xlu0
        %v1542 = vpop.trf.xlu0
        %v1543 = vpop.trf.xlu0
        %v1544 = vpop.trf.xlu0
        %vm1545 = vcmask 130048
        %v1547 = vsel %vm1545, %v1529, 0
        %1549 = vmatprep.subr.mxu0 0.0
        %1550 = vmatpush1.msra.mxu0 %v1504
        %1551 = vmatprep.subr.mxu0 0.0
        %1552 = vmatpush1.msra.mxu0 %v1505
        %1553 = vmatprep.subr.mxu0 0.0
        %1554 = vmatpush1.msra.mxu0 0.0
        %1555 = vmatprep.subr.mxu0 0.0
        %1556 = vmatpush1.msra.mxu0 0.0
        %1557 = vmatprep.subr.mxu0 0.0
        %1558 = vmatpush1.msra.mxu0 0.0
        %1559 = vmatprep.subr.mxu0 0.0
        %1560 = vmatpush1.msra.mxu0 0.0
        %1561 = vmatprep.subr.mxu0 0.0
        %1562 = vmatpush1.msra.mxu0 0.0
        %1563 = vmatprep.subr.mxu0 0.0
        %1564 = vmatpush1.msra.mxu0 0.0
        %1565 = vmatprep.subr.mxu0 0.0
        %1566 = vmatpush1.msra.mxu0 0.0
        %1567 = vmatprep.subr.mxu0 0.0
        %1568 = vmatpush1.msra.mxu0 0.0
        %1569 = vmatprep.subr.mxu0 0.0
        %1570 = vmatpush1.msra.mxu0 0.0
        %1571 = vmatprep.subr.mxu0 0.0
        %1572 = vmatpush1.msra.mxu0 0.0
        %1573 = vmatprep.subr.mxu0 0.0
        %1574 = vmatpush1.msra.mxu0 0.0
        %1575 = vmatprep.subr.mxu0 0.0
        %1576 = vmatpush1.msra.mxu0 0.0
        %1577 = vmatprep.subr.mxu0 0.0
        %1578 = vmatpush1.msra.mxu0 0.0
        %1579 = vmatprep.subr.mxu0 0.0
        %1580 = vmatpush1.msra.mxu0 0.0
        %1581 = vmatprep.subr.mxu0 0.0
        %1582 = vmatpush1.msra.mxu0 0.0
        %1583 = vmatprep.subr.mxu0 0.0
        %1584 = vmatpush1.msra.mxu0 0.0
        %1585 = vmatprep.subr.mxu0 0.0
        %1586 = vmatpush1.msra.mxu0 0.0
        %1587 = vmatprep.subr.mxu0 0.0
        %1588 = vmatpush1.msra.mxu0 0.0
        %1589 = vmatprep.subr.mxu0 0.0
        %1590 = vmatpush1.msra.mxu0 0.0
        %1591 = vmatprep.subr.mxu0 0.0
        %1592 = vmatpush1.msra.mxu0 0.0
        %1593 = vmatprep.subr.mxu0 0.0
        %1594 = vmatpush1.msra.mxu0 0.0
        %1595 = vmatprep.subr.mxu0 0.0
        %1596 = vmatpush1.msra.mxu0 0.0
        %1597 = vmatprep.subr.mxu0 0.0
        %1598 = vmatpush1.msra.mxu0 0.0
        %1599 = vmatprep.subr.mxu0 0.0
        %1600 = vmatpush1.msra.mxu0 0.0
        %1601 = vmatprep.subr.mxu0 0.0
        %1602 = vmatpush1.msra.mxu0 0.0
        %1603 = vmatprep.subr.mxu0 0.0
        %1604 = vmatpush1.msra.mxu0 0.0
        %1605 = vmatprep.subr.mxu0 0.0
        %1606 = vmatpush1.msra.mxu0 0.0
        %1607 = vmatprep.subr.mxu0 0.0
        %1608 = vmatpush1.msra.mxu0 0.0
        %1609 = vmatprep.subr.mxu0 0.0
        %1610 = vmatpush1.msra.mxu0 0.0
        %1611 = vmatprep.subr.mxu0 0.0
        %1612 = vmatpush1.msra.mxu0 0.0
        %1613 = vmatprep.mubr.f32.mxu0 0.0
        %1614 = vmatmul.mubr.f32.gmra.mrb[0].mxu0 %v1547
        %v1615 = vpop.f32.mrb[0].mxu0
        %v1616 = vadd.f32 %v1511, %v1615
        %v1617 = vpop.f32.mrb[0].mxu0
        %1618 = vdwg.mxu0
        %v1619 = vld [vmem:[#allocation4] sm:$0xff]
        %v1620 = vld [vmem:[#allocation6] sm:$0xff]
        %v1621 = vld [vmem:[#allocation7] sm:$0xff]
        %v1622 = vld [vmem:[#allocation9] sm:$0x1]
        %v1623 = vld [vmem:[#allocation10] sm:$0x1]
        %v1624 = vld [vmem:[#allocation12] sm:$0x1]
        %v1625 = vld [vmem:[#allocation13] sm:$0xff]
        %v1626 = vld [vmem:[#allocation15] sm:$0x1]
        %v1628 = vlaneseq
        %v1629 = vshrl.u32 %v1628, 7
        %v1630 = vsub.s32 0, %v1629
        %v1631 = vrot.slane %v1622, %v1630
        %vm1633 = vcmask 64512
        %v1635 = vsel %vm1633, %v1616, 0
        %1637 = vmatprep.subr.mxu0 0.0
        %1638 = vmatpush1.msra.mxu0 %v1619
        %1639 = vmatprep.subr.mxu0 0.0
        %1640 = vmatpush1.msra.mxu0 0.0
        %1641 = vmatprep.subr.mxu0 0.0
        %1642 = vmatpush1.msra.mxu0 0.0
        %1643 = vmatprep.subr.mxu0 0.0
        %1644 = vmatpush1.msra.mxu0 0.0
        %1645 = vmatprep.subr.mxu0 0.0
        %1646 = vmatpush1.msra.mxu0 0.0
        %1647 = vmatprep.subr.mxu0 0.0
        %1648 = vmatpush1.msra.mxu0 0.0
        %1649 = vmatprep.subr.mxu0 0.0
        %1650 = vmatpush1.msra.mxu0 0.0
        %1651 = vmatprep.subr.mxu0 0.0
        %1652 = vmatpush1.msra.mxu0 0.0
        %1653 = vmatprep.subr.mxu0 0.0
        %1654 = vmatpush1.msra.mxu0 0.0
        %1655 = vmatprep.subr.mxu0 0.0
        %1656 = vmatpush1.msra.mxu0 0.0
        %1657 = vmatprep.subr.mxu0 0.0
        %1658 = vmatpush1.msra.mxu0 0.0
        %1659 = vmatprep.subr.mxu0 0.0
        %1660 = vmatpush1.msra.mxu0 0.0
        %1661 = vmatprep.subr.mxu0 0.0
        %1662 = vmatpush1.msra.mxu0 0.0
        %1663 = vmatprep.subr.mxu0 0.0
        %1664 = vmatpush1.msra.mxu0 0.0
        %1665 = vmatprep.subr.mxu0 0.0
        %1666 = vmatpush1.msra.mxu0 0.0
        %1667 = vmatprep.subr.mxu0 0.0
        %1668 = vmatpush1.msra.mxu0 0.0
        %1669 = vmatprep.subr.mxu0 0.0
        %1670 = vmatpush1.msra.mxu0 0.0
        %1671 = vmatprep.subr.mxu0 0.0
        %1672 = vmatpush1.msra.mxu0 0.0
        %1673 = vmatprep.subr.mxu0 0.0
        %1674 = vmatpush1.msra.mxu0 0.0
        %1675 = vmatprep.subr.mxu0 0.0
        %1676 = vmatpush1.msra.mxu0 0.0
        %1677 = vmatprep.subr.mxu0 0.0
        %1678 = vmatpush1.msra.mxu0 0.0
        %1679 = vmatprep.subr.mxu0 0.0
        %1680 = vmatpush1.msra.mxu0 0.0
        %1681 = vmatprep.subr.mxu0 0.0
        %1682 = vmatpush1.msra.mxu0 0.0
        %1683 = vmatprep.subr.mxu0 0.0
        %1684 = vmatpush1.msra.mxu0 0.0
        %1685 = vmatprep.subr.mxu0 0.0
        %1686 = vmatpush1.msra.mxu0 0.0
        %1687 = vmatprep.subr.mxu0 0.0
        %1688 = vmatpush1.msra.mxu0 0.0
        %1689 = vmatprep.subr.mxu0 0.0
        %1690 = vmatpush1.msra.mxu0 0.0
        %1691 = vmatprep.subr.mxu0 0.0
        %1692 = vmatpush1.msra.mxu0 0.0
        %1693 = vmatprep.subr.mxu0 0.0
        %1694 = vmatpush1.msra.mxu0 0.0
        %1695 = vmatprep.subr.mxu0 0.0
        %1696 = vmatpush1.msra.mxu0 0.0
        %1697 = vmatprep.subr.mxu0 0.0
        %1698 = vmatpush1.msra.mxu0 0.0
        %1699 = vmatprep.subr.mxu0 0.0
        %1700 = vmatpush1.msra.mxu0 0.0
        %1701 = vmatprep.mubr.f32.mxu0 0.0
        %1702 = vmatmul.mubr.f32.gmra.mrb[0].mxu0 %v1635
        %v1703 = vpop.f32.mrb[0].mxu0
        %v1704 = vadd.f32 %v1631, %v1703
        %v1705 = vpop.f32.mrb[0].mxu0
        %1706 = vdwg.mxu0
        %v1708 = vlaneseq
        %v1709 = vshrl.u32 %v1708, 7
        %v1710 = vsub.s32 0, %v1709
        %v1711 = vrot.slane %v1623, %v1710
        %1713 = vmatprep.subr.mxu0 0.0
        %1714 = vmatpush1.msra.mxu0 %v1620
        %1715 = vmatprep.subr.mxu0 0.0
        %1716 = vmatpush1.msra.mxu0 0.0
        %1717 = vmatprep.subr.mxu0 0.0
        %1718 = vmatpush1.msra.mxu0 0.0
        %1719 = vmatprep.subr.mxu0 0.0
        %1720 = vmatpush1.msra.mxu0 0.0
        %1721 = vmatprep.subr.mxu0 0.0
        %1722 = vmatpush1.msra.mxu0 0.0
        %1723 = vmatprep.subr.mxu0 0.0
        %1724 = vmatpush1.msra.mxu0 0.0
        %1725 = vmatprep.subr.mxu0 0.0
        %1726 = vmatpush1.msra.mxu0 0.0
        %1727 = vmatprep.subr.mxu0 0.0
        %1728 = vmatpush1.msra.mxu0 0.0
        %1729 = vmatprep.subr.mxu0 0.0
        %1730 = vmatpush1.msra.mxu0 0.0
        %1731 = vmatprep.subr.mxu0 0.0
        %1732 = vmatpush1.msra.mxu0 0.0
        %1733 = vmatprep.subr.mxu0 0.0
        %1734 = vmatpush1.msra.mxu0 0.0
        %1735 = vmatprep.subr.mxu0 0.0
        %1736 = vmatpush1.msra.mxu0 0.0
        %1737 = vmatprep.subr.mxu0 0.0
        %1738 = vmatpush1.msra.mxu0 0.0
        %1739 = vmatprep.subr.mxu0 0.0
        %1740 = vmatpush1.msra.mxu0 0.0
        %1741 = vmatprep.subr.mxu0 0.0
        %1742 = vmatpush1.msra.mxu0 0.0
        %1743 = vmatprep.subr.mxu0 0.0
        %1744 = vmatpush1.msra.mxu0 0.0
        %1745 = vmatprep.subr.mxu0 0.0
        %1746 = vmatpush1.msra.mxu0 0.0
        %1747 = vmatprep.subr.mxu0 0.0
        %1748 = vmatpush1.msra.mxu0 0.0
        %1749 = vmatprep.subr.mxu0 0.0
        %1750 = vmatpush1.msra.mxu0 0.0
        %1751 = vmatprep.subr.mxu0 0.0
        %1752 = vmatpush1.msra.mxu0 0.0
        %1753 = vmatprep.subr.mxu0 0.0
        %1754 = vmatpush1.msra.mxu0 0.0
        %1755 = vmatprep.subr.mxu0 0.0
        %1756 = vmatpush1.msra.mxu0 0.0
        %1757 = vmatprep.subr.mxu0 0.0
        %1758 = vmatpush1.msra.mxu0 0.0
        %1759 = vmatprep.subr.mxu0 0.0
        %1760 = vmatpush1.msra.mxu0 0.0
        %1761 = vmatprep.subr.mxu0 0.0
        %1762 = vmatpush1.msra.mxu0 0.0
        %1763 = vmatprep.subr.mxu0 0.0
        %1764 = vmatpush1.msra.mxu0 0.0
        %1765 = vmatprep.subr.mxu0 0.0
        %1766 = vmatpush1.msra.mxu0 0.0
        %1767 = vmatprep.subr.mxu0 0.0
        %1768 = vmatpush1.msra.mxu0 0.0
        %1769 = vmatprep.subr.mxu0 0.0
        %1770 = vmatpush1.msra.mxu0 0.0
        %1771 = vmatprep.subr.mxu0 0.0
        %1772 = vmatpush1.msra.mxu0 0.0
        %1773 = vmatprep.subr.mxu0 0.0
        %1774 = vmatpush1.msra.mxu0 0.0
        %1775 = vmatprep.subr.mxu0 0.0
        %1776 = vmatpush1.msra.mxu0 0.0
        %1777 = vmatprep.mubr.f32.mxu0 0.0
        %1778 = vmatmul.mubr.f32.gmra.mrb[0].mxu0 %v1635
        %v1779 = vpop.f32.mrb[0].mxu0
        %v1780 = vadd.f32 %v1711, %v1779
        %v1781 = vpop.f32.mrb[0].mxu0
        %1782 = vdwg.mxu0
        %v1784 = vlaneseq
        %v1785 = vshrl.u32 %v1784, 7
        %v1786 = vsub.s32 0, %v1785
        %v1787 = vrot.slane %v1624, %v1786
        %1789 = vmatprep.subr.mxu0 0.0
        %1790 = vmatpush1.msra.mxu0 %v1621
        %1791 = vmatprep.subr.mxu0 0.0
        %1792 = vmatpush1.msra.mxu0 0.0
        %1793 = vmatprep.subr.mxu0 0.0
        %1794 = vmatpush1.msra.mxu0 0.0
        %1795 = vmatprep.subr.mxu0 0.0
        %1796 = vmatpush1.msra.mxu0 0.0
        %1797 = vmatprep.subr.mxu0 0.0
        %1798 = vmatpush1.msra.mxu0 0.0
        %1799 = vmatprep.subr.mxu0 0.0
        %1800 = vmatpush1.msra.mxu0 0.0
        %1801 = vmatprep.subr.mxu0 0.0
        %1802 = vmatpush1.msra.mxu0 0.0
        %1803 = vmatprep.subr.mxu0 0.0
        %1804 = vmatpush1.msra.mxu0 0.0
        %1805 = vmatprep.subr.mxu0 0.0
        %1806 = vmatpush1.msra.mxu0 0.0
        %1807 = vmatprep.subr.mxu0 0.0
        %1808 = vmatpush1.msra.mxu0 0.0
        %1809 = vmatprep.subr.mxu0 0.0
        %1810 = vmatpush1.msra.mxu0 0.0
        %1811 = vmatprep.subr.mxu0 0.0
        %1812 = vmatpush1.msra.mxu0 0.0
        %1813 = vmatprep.subr.mxu0 0.0
        %1814 = vmatpush1.msra.mxu0 0.0
        %1815 = vmatprep.subr.mxu0 0.0
        %1816 = vmatpush1.msra.mxu0 0.0
        %1817 = vmatprep.subr.mxu0 0.0
        %1818 = vmatpush1.msra.mxu0 0.0
        %1819 = vmatprep.subr.mxu0 0.0
        %1820 = vmatpush1.msra.mxu0 0.0
        %1821 = vmatprep.subr.mxu0 0.0
        %1822 = vmatpush1.msra.mxu0 0.0
        %1823 = vmatprep.subr.mxu0 0.0
        %1824 = vmatpush1.msra.mxu0 0.0
        %1825 = vmatprep.subr.mxu0 0.0
        %1826 = vmatpush1.msra.mxu0 0.0
        %1827 = vmatprep.subr.mxu0 0.0
        %1828 = vmatpush1.msra.mxu0 0.0
        %1829 = vmatprep.subr.mxu0 0.0
        %1830 = vmatpush1.msra.mxu0 0.0
        %1831 = vmatprep.subr.mxu0 0.0
        %1832 = vmatpush1.msra.mxu0 0.0
        %1833 = vmatprep.subr.mxu0 0.0
        %1834 = vmatpush1.msra.mxu0 0.0
        %1835 = vmatprep.subr.mxu0 0.0
        %1836 = vmatpush1.msra.mxu0 0.0
        %1837 = vmatprep.subr.mxu0 0.0
        %1838 = vmatpush1.msra.mxu0 0.0
        %1839 = vmatprep.subr.mxu0 0.0
        %1840 = vmatpush1.msra.mxu0 0.0
        %1841 = vmatprep.subr.mxu0 0.0
        %1842 = vmatpush1.msra.mxu0 0.0
        %1843 = vmatprep.subr.mxu0 0.0
        %1844 = vmatpush1.msra.mxu0 0.0
        %1845 = vmatprep.subr.mxu0 0.0
        %1846 = vmatpush1.msra.mxu0 0.0
        %1847 = vmatprep.subr.mxu0 0.0
        %1848 = vmatpush1.msra.mxu0 0.0
        %1849 = vmatprep.subr.mxu0 0.0
        %1850 = vmatpush1.msra.mxu0 0.0
        %1851 = vmatprep.subr.mxu0 0.0
        %1852 = vmatpush1.msra.mxu0 0.0
        %1853 = vmatprep.mubr.f32.mxu0 0.0
        %1854 = vmatmul.mubr.f32.gmra.mrb[0].mxu0 %v1635
        %v1855 = vpop.f32.mrb[0].mxu0
        %v1856 = vadd.f32 %v1787, %v1855
        %v1857 = vpop.f32.mrb[0].mxu0
        %1858 = vdwg.mxu0
        %v1860 = vsel %vm1633, %v1704, 0
        %v1863 = vsel %vm1633, %v1780, 0
        %1865 = vmatprep.subr.mxu0 0.0
        %1866 = vmatpush1.xpose.msra.mxu0 %v1863
        %1867 = vmatprep.subr.mxu0 0.0
        %1868 = vmatpush1.xpose.msra.mxu0 0.0
        %1869 = vmatprep.subr.mxu0 0.0
        %1870 = vmatpush1.xpose.msra.mxu0 0.0
        %1871 = vmatprep.subr.mxu0 0.0
        %1872 = vmatpush1.xpose.msra.mxu0 0.0
        %1873 = vmatprep.subr.mxu0 0.0
        %1874 = vmatpush1.xpose.msra.mxu0 0.0
        %1875 = vmatprep.subr.mxu0 0.0
        %1876 = vmatpush1.xpose.msra.mxu0 0.0
        %1877 = vmatprep.subr.mxu0 0.0
        %1878 = vmatpush1.xpose.msra.mxu0 0.0
        %1879 = vmatprep.subr.mxu0 0.0
        %1880 = vmatpush1.xpose.msra.mxu0 0.0
        %1881 = vmatprep.subr.mxu0 0.0
        %1882 = vmatpush1.xpose.msra.mxu0 0.0
        %1883 = vmatprep.subr.mxu0 0.0
        %1884 = vmatpush1.xpose.msra.mxu0 0.0
        %1885 = vmatprep.subr.mxu0 0.0
        %1886 = vmatpush1.xpose.msra.mxu0 0.0
        %1887 = vmatprep.subr.mxu0 0.0
        %1888 = vmatpush1.xpose.msra.mxu0 0.0
        %1889 = vmatprep.subr.mxu0 0.0
        %1890 = vmatpush1.xpose.msra.mxu0 0.0
        %1891 = vmatprep.subr.mxu0 0.0
        %1892 = vmatpush1.xpose.msra.mxu0 0.0
        %1893 = vmatprep.subr.mxu0 0.0
        %1894 = vmatpush1.xpose.msra.mxu0 0.0
        %1895 = vmatprep.subr.mxu0 0.0
        %1896 = vmatpush1.xpose.msra.mxu0 0.0
        %1897 = vmatprep.subr.mxu0 0.0
        %1898 = vmatpush1.xpose.msra.mxu0 0.0
        %1899 = vmatprep.subr.mxu0 0.0
        %1900 = vmatpush1.xpose.msra.mxu0 0.0
        %1901 = vmatprep.subr.mxu0 0.0
        %1902 = vmatpush1.xpose.msra.mxu0 0.0
        %1903 = vmatprep.subr.mxu0 0.0
        %1904 = vmatpush1.xpose.msra.mxu0 0.0
        %1905 = vmatprep.subr.mxu0 0.0
        %1906 = vmatpush1.xpose.msra.mxu0 0.0
        %1907 = vmatprep.subr.mxu0 0.0
        %1908 = vmatpush1.xpose.msra.mxu0 0.0
        %1909 = vmatprep.subr.mxu0 0.0
        %1910 = vmatpush1.xpose.msra.mxu0 0.0
        %1911 = vmatprep.subr.mxu0 0.0
        %1912 = vmatpush1.xpose.msra.mxu0 0.0
        %1913 = vmatprep.subr.mxu0 0.0
        %1914 = vmatpush1.xpose.msra.mxu0 0.0
        %1915 = vmatprep.subr.mxu0 0.0
        %1916 = vmatpush1.xpose.msra.mxu0 0.0
        %1917 = vmatprep.subr.mxu0 0.0
        %1918 = vmatpush1.xpose.msra.mxu0 0.0
        %1919 = vmatprep.subr.mxu0 0.0
        %1920 = vmatpush1.xpose.msra.mxu0 0.0
        %1921 = vmatprep.subr.mxu0 0.0
        %1922 = vmatpush1.xpose.msra.mxu0 0.0
        %1923 = vmatprep.subr.mxu0 0.0
        %1924 = vmatpush1.xpose.msra.mxu0 0.0
        %1925 = vmatprep.subr.mxu0 0.0
        %1926 = vmatpush1.xpose.msra.mxu0 0.0
        %1927 = vmatprep.subr.mxu0 0.0
        %1928 = vmatpush1.xpose.msra.mxu0 0.0
        %1929 = vmatprep.mubr.f32.mxu0 0.0
        %1930 = vmatmul.mubr.f32.gmra.mrb[0].mxu0 %v1860
        %v1931 = vpop.f32.mrb[0].mxu0
        %v1932 = vadd.f32 0.0, %v1931
        %v1933 = vpop.f32.mrb[0].mxu0
        %1934 = vdwg.mxu0
        %v1935 = vmul.f32 %v1932, 0.35355338
        %v1936 = vsel %vm1633, %v1935, -inf
        %1937 = vmax.xlane.f32.xlu0 %v1936
        %v1938 = vpop.xlane.xlu0 %1937
        %v1939 = vsub.f32 %v1935, %v1938
        %v1940 = vmul.f32 %v1939, 1.442695
        %v1941 = vpow.pop %v1940
        %v1942 = vsel %vm1633, %v1941, 0.0
        %1943 = vadd.xlane.f32.xlu0 %v1942
        %v1944 = vpop.xlane.xlu0 %1943
        %v1945 = vrcp.pop %v1944
        %v1946 = vmul.f32 %v1941, %v1945
        %v1948 = vsel %vm1633, %v1946, 0
        %1950 = vmatprep.subr.mxu0 0.0
        %1951 = vmatpush1.msra.mxu0 %v1856
        %1952 = vmatprep.subr.mxu0 0.0
        %1953 = vmatpush1.msra.mxu0 0.0
        %1954 = vmatprep.subr.mxu0 0.0
        %1955 = vmatpush1.msra.mxu0 0.0
        %1956 = vmatprep.subr.mxu0 0.0
        %1957 = vmatpush1.msra.mxu0 0.0
        %1958 = vmatprep.subr.mxu0 0.0
        %1959 = vmatpush1.msra.mxu0 0.0
        %1960 = vmatprep.subr.mxu0 0.0
        %1961 = vmatpush1.msra.mxu0 0.0
        %1962 = vmatprep.subr.mxu0 0.0
        %1963 = vmatpush1.msra.mxu0 0.0
        %1964 = vmatprep.subr.mxu0 0.0
        %1965 = vmatpush1.msra.mxu0 0.0
        %1966 = vmatprep.subr.mxu0 0.0
        %1967 = vmatpush1.msra.mxu0 0.0
        %1968 = vmatprep.subr.mxu0 0.0
        %1969 = vmatpush1.msra.mxu0 0.0
        %1970 = vmatprep.subr.mxu0 0.0
        %1971 = vmatpush1.msra.mxu0 0.0
        %1972 = vmatprep.subr.mxu0 0.0
        %1973 = vmatpush1.msra.mxu0 0.0
        %1974 = vmatprep.subr.mxu0 0.0
        %1975 = vmatpush1.msra.mxu0 0.0
        %1976 = vmatprep.subr.mxu0 0.0
        %1977 = vmatpush1.msra.mxu0 0.0
        %1978 = vmatprep.subr.mxu0 0.0
        %1979 = vmatpush1.msra.mxu0 0.0
        %1980 = vmatprep.subr.mxu0 0.0
        %1981 = vmatpush1.msra.mxu0 0.0
        %1982 = vmatprep.subr.mxu0 0.0
        %1983 = vmatpush1.msra.mxu0 0.0
        %1984 = vmatprep.subr.mxu0 0.0
        %1985 = vmatpush1.msra.mxu0 0.0
        %1986 = vmatprep.subr.mxu0 0.0
        %1987 = vmatpush1.msra.mxu0 0.0
        %1988 = vmatprep.subr.mxu0 0.0
        %1989 = vmatpush1.msra.mxu0 0.0
        %1990 = vmatprep.subr.mxu0 0.0
        %1991 = vmatpush1.msra.mxu0 0.0
        %1992 = vmatprep.subr.mxu0 0.0
        %1993 = vmatpush1.msra.mxu0 0.0
        %1994 = vmatprep.subr.mxu0 0.0
        %1995 = vmatpush1.msra.mxu0 0.0
        %1996 = vmatprep.subr.mxu0 0.0
        %1997 = vmatpush1.msra.mxu0 0.0
        %1998 = vmatprep.subr.mxu0 0.0
        %1999 = vmatpush1.msra.mxu0 0.0
        %2000 = vmatprep.subr.mxu0 0.0
        %2001 = vmatpush1.msra.mxu0 0.0
        %2002 = vmatprep.subr.mxu0 0.0
        %2003 = vmatpush1.msra.mxu0 0.0
        %2004 = vmatprep.subr.mxu0 0.0
        %2005 = vmatpush1.msra.mxu0 0.0
        %2006 = vmatprep.subr.mxu0 0.0
        %2007 = vmatpush1.msra.mxu0 0.0
        %2008 = vmatprep.subr.mxu0 0.0
        %2009 = vmatpush1.msra.mxu0 0.0
        %2010 = vmatprep.subr.mxu0 0.0
        %2011 = vmatpush1.msra.mxu0 0.0
        %2012 = vmatprep.subr.mxu0 0.0
        %2013 = vmatpush1.msra.mxu0 0.0
        %2014 = vmatprep.mubr.f32.mxu0 0.0
        %2015 = vmatmul.mubr.f32.gmra.mrb[0].mxu0 %v1948
        %v2016 = vpop.f32.mrb[0].mxu0
        %v2017 = vadd.f32 0.0, %v2016
        %v2018 = vpop.f32.mrb[0].mxu0
        %2019 = vdwg.mxu0
        %v2021 = vlaneseq
        %v2022 = vshrl.u32 %v2021, 7
        %v2023 = vsub.s32 0, %v2022
        %v2024 = vrot.slane %v1626, %v2023
        %v2027 = vsel %vm1633, %v2017, 0
        %2029 = vmatprep.subr.mxu0 0.0
        %2030 = vmatpush1.msra.mxu0 %v1625
        %2031 = vmatprep.subr.mxu0 0.0
        %2032 = vmatpush1.msra.mxu0 0.0
        %2033 = vmatprep.subr.mxu0 0.0
        %2034 = vmatpush1.msra.mxu0 0.0
        %2035 = vmatprep.subr.mxu0 0.0
        %2036 = vmatpush1.msra.mxu0 0.0
        %2037 = vmatprep.subr.mxu0 0.0
        %2038 = vmatpush1.msra.mxu0 0.0
        %2039 = vmatprep.subr.mxu0 0.0
        %2040 = vmatpush1.msra.mxu0 0.0
        %2041 = vmatprep.subr.mxu0 0.0
        %2042 = vmatpush1.msra.mxu0 0.0
        %2043 = vmatprep.subr.mxu0 0.0
        %2044 = vmatpush1.msra.mxu0 0.0
        %2045 = vmatprep.subr.mxu0 0.0
        %2046 = vmatpush1.msra.mxu0 0.0
        %2047 = vmatprep.subr.mxu0 0.0
        %2048 = vmatpush1.msra.mxu0 0.0
        %2049 = vmatprep.subr.mxu0 0.0
        %2050 = vmatpush1.msra.mxu0 0.0
        %2051 = vmatprep.subr.mxu0 0.0
        %2052 = vmatpush1.msra.mxu0 0.0
        %2053 = vmatprep.subr.mxu0 0.0
        %2054 = vmatpush1.msra.mxu0 0.0
        %2055 = vmatprep.subr.mxu0 0.0
        %2056 = vmatpush1.msra.mxu0 0.0
        %2057 = vmatprep.subr.mxu0 0.0
        %2058 = vmatpush1.msra.mxu0 0.0
        %2059 = vmatprep.subr.mxu0 0.0
        %2060 = vmatpush1.msra.mxu0 0.0
        %2061 = vmatprep.subr.mxu0 0.0
        %2062 = vmatpush1.msra.mxu0 0.0
        %2063 = vmatprep.subr.mxu0 0.0
        %2064 = vmatpush1.msra.mxu0 0.0
        %2065 = vmatprep.subr.mxu0 0.0
        %2066 = vmatpush1.msra.mxu0 0.0
        %2067 = vmatprep.subr.mxu0 0.0
        %2068 = vmatpush1.msra.mxu0 0.0
        %2069 = vmatprep.subr.mxu0 0.0
        %2070 = vmatpush1.msra.mxu0 0.0
        %2071 = vmatprep.subr.mxu0 0.0
        %2072 = vmatpush1.msra.mxu0 0.0
        %2073 = vmatprep.subr.mxu0 0.0
        %2074 = vmatpush1.msra.mxu0 0.0
        %2075 = vmatprep.subr.mxu0 0.0
        %2076 = vmatpush1.msra.mxu0 0.0
        %2077 = vmatprep.subr.mxu0 0.0
        %2078 = vmatpush1.msra.mxu0 0.0
        %2079 = vmatprep.subr.mxu0 0.0
        %2080 = vmatpush1.msra.mxu0 0.0
        %2081 = vmatprep.subr.mxu0 0.0
        %2082 = vmatpush1.msra.mxu0 0.0
        %2083 = vmatprep.subr.mxu0 0.0
        %2084 = vmatpush1.msra.mxu0 0.0
        %2085 = vmatprep.subr.mxu0 0.0
        %2086 = vmatpush1.msra.mxu0 0.0
        %2087 = vmatprep.subr.mxu0 0.0
        %2088 = vmatpush1.msra.mxu0 0.0
        %2089 = vmatprep.subr.mxu0 0.0
        %2090 = vmatpush1.msra.mxu0 0.0
        %2091 = vmatprep.subr.mxu0 0.0
        %2092 = vmatpush1.msra.mxu0 0.0
        %2093 = vmatprep.mubr.f32.mxu0 0.0
        %2094 = vmatmul.mubr.f32.gmra.mrb[0].mxu0 %v2027
        %v2095 = vpop.f32.mrb[0].mxu0
        %v2096 = vadd.f32 %v2024, %v2095
        %v2097 = vpop.f32.mrb[0].mxu0
        %2098 = vdwg.mxu0
        %v2099 = vld [vmem:[#allocation16] sm:$0xff]
        %v2100 = vld [vmem:[#allocation18] sm:$0x1]
        %v2102 = vlaneseq
        %v2103 = vshrl.u32 %v2102, 7
        %v2104 = vsub.s32 0, %v2103
        %v2105 = vrot.slane %v2100, %v2104
        %2107 = vxpose.xlu0.b32.start [1/16] %v2096, 128
        %2108 = vxpose.xlu0.b32.cont [2/16] 0.0, 128
        %2109 = vxpose.xlu0.b32.cont [3/16] 0.0, 128
        %2110 = vxpose.xlu0.b32.cont [4/16] 0.0, 128
        %2111 = vxpose.xlu0.b32.cont [5/16] 0.0, 128
        %2112 = vxpose.xlu0.b32.cont [6/16] 0.0, 128
        %2113 = vxpose.xlu0.b32.cont [7/16] 0.0, 128
        %2114 = vxpose.xlu0.b32.cont [8/16] 0.0, 128
        %2115 = vxpose.xlu0.b32.cont [9/16] 0.0, 128
        %2116 = vxpose.xlu0.b32.cont [10/16] 0.0, 128
        %2117 = vxpose.xlu0.b32.cont [11/16] 0.0, 128
        %2118 = vxpose.xlu0.b32.cont [12/16] 0.0, 128
        %2119 = vxpose.xlu0.b32.cont [13/16] 0.0, 128
        %2120 = vxpose.xlu0.b32.cont [14/16] 0.0, 128
        %2121 = vxpose.xlu0.b32.cont [15/16] 0.0, 128
        %2122 = vxpose.xlu0.b32.end [16/16] 0.0, 128
        %v2123 = vpop.trf.xlu0
        %v2124 = vpop.trf.xlu0
        %v2125 = vpop.trf.xlu0
        %v2126 = vpop.trf.xlu0
        %v2127 = vpop.trf.xlu0
        %v2128 = vpop.trf.xlu0
        %v2129 = vpop.trf.xlu0
        %v2130 = vpop.trf.xlu0
        %v2131 = vpop.trf.xlu0
        %v2132 = vpop.trf.xlu0
        %v2133 = vpop.trf.xlu0
        %v2134 = vpop.trf.xlu0
        %v2135 = vpop.trf.xlu0
        %v2136 = vpop.trf.xlu0
        %v2137 = vpop.trf.xlu0
        %v2138 = vpop.trf.xlu0
        %v2140 = vsel %vm1633, %v2123, 0
        %2142 = vmatprep.subr.mxu0 0.0
        %2143 = vmatpush1.msra.mxu0 %v2099
        %2144 = vmatprep.subr.mxu0 0.0
        %2145 = vmatpush1.msra.mxu0 0.0
        %2146 = vmatprep.subr.mxu0 0.0
        %2147 = vmatpush1.msra.mxu0 0.0
        %2148 = vmatprep.subr.mxu0 0.0
        %2149 = vmatpush1.msra.mxu0 0.0
        %2150 = vmatprep.subr.mxu0 0.0
        %2151 = vmatpush1.msra.mxu0 0.0
        %2152 = vmatprep.subr.mxu0 0.0
        %2153 = vmatpush1.msra.mxu0 0.0
        %2154 = vmatprep.subr.mxu0 0.0
        %2155 = vmatpush1.msra.mxu0 0.0
        %2156 = vmatprep.subr.mxu0 0.0
        %2157 = vmatpush1.msra.mxu0 0.0
        %2158 = vmatprep.subr.mxu0 0.0
        %2159 = vmatpush1.msra.mxu0 0.0
        %2160 = vmatprep.subr.mxu0 0.0
        %2161 = vmatpush1.msra.mxu0 0.0
        %2162 = vmatprep.subr.mxu0 0.0
        %2163 = vmatpush1.msra.mxu0 0.0
        %2164 = vmatprep.subr.mxu0 0.0
        %2165 = vmatpush1.msra.mxu0 0.0
        %2166 = vmatprep.subr.mxu0 0.0
        %2167 = vmatpush1.msra.mxu0 0.0
        %2168 = vmatprep.subr.mxu0 0.0
        %2169 = vmatpush1.msra.mxu0 0.0
        %2170 = vmatprep.subr.mxu0 0.0
        %2171 = vmatpush1.msra.mxu0 0.0
        %2172 = vmatprep.subr.mxu0 0.0
        %2173 = vmatpush1.msra.mxu0 0.0
        %2174 = vmatprep.subr.mxu0 0.0
        %2175 = vmatpush1.msra.mxu0 0.0
        %2176 = vmatprep.subr.mxu0 0.0
        %2177 = vmatpush1.msra.mxu0 0.0
        %2178 = vmatprep.subr.mxu0 0.0
        %2179 = vmatpush1.msra.mxu0 0.0
        %2180 = vmatprep.subr.mxu0 0.0
        %2181 = vmatpush1.msra.mxu0 0.0
        %2182 = vmatprep.subr.mxu0 0.0
        %2183 = vmatpush1.msra.mxu0 0.0
        %2184 = vmatprep.subr.mxu0 0.0
        %2185 = vmatpush1.msra.mxu0 0.0
        %2186 = vmatprep.subr.mxu0 0.0
        %2187 = vmatpush1.msra.mxu0 0.0
        %2188 = vmatprep.subr.mxu0 0.0
        %2189 = vmatpush1.msra.mxu0 0.0
        %2190 = vmatprep.subr.mxu0 0.0
        %2191 = vmatpush1.msra.mxu0 0.0
        %2192 = vmatprep.subr.mxu0 0.0
        %2193 = vmatpush1.msra.mxu0 0.0
        %2194 = vmatprep.subr.mxu0 0.0
        %2195 = vmatpush1.msra.mxu0 0.0
        %2196 = vmatprep.subr.mxu0 0.0
        %2197 = vmatpush1.msra.mxu0 0.0
        %2198 = vmatprep.subr.mxu0 0.0
        %2199 = vmatpush1.msra.mxu0 0.0
        %2200 = vmatprep.subr.mxu0 0.0
        %2201 = vmatpush1.msra.mxu0 0.0
        %2202 = vmatprep.subr.mxu0 0.0
        %2203 = vmatpush1.msra.mxu0 0.0
        %2204 = vmatprep.subr.mxu0 0.0
        %2205 = vmatpush1.msra.mxu0 0.0
        %2206 = vmatprep.mubr.f32.mxu0 0.0
        %2207 = vmatmul.mubr.f32.gmra.mrb[0].mxu0 %v2140
        %v2208 = vpop.f32.mrb[0].mxu0
        %v2209 = vadd.f32 %v2105, %v2208
        %v2210 = vpop.f32.mrb[0].mxu0
        %2211 = vdwg.mxu0
        %v2212 = vld [vmem:[%s27] sm:$0xff]
        %v2213 = vld [vmem:[%s27 + $0x8] sm:$0xff]
        %v2214 = vld [vmem:[%s27 + $0x10] sm:$0xff]
        %v2215 = vld [vmem:[%s27 + $0x18] sm:$0xff]
        %v2216 = vld [vmem:[%s29] sm:$0xff]
        %v2217 = vld [vmem:[%s29 + $0x8] sm:$0xff]
        %v2218 = vld [vmem:[%s29 + $0x10] sm:$0xff]
        %v2219 = vld [vmem:[%s29 + $0x18] sm:$0xff]
        %v2220 = vld [vmem:[%s31] sm:$0xff]
        %v2221 = vld [vmem:[%s31 + $0x8] sm:$0xff]
        %v2222 = vld [vmem:[%s31 + $0x10] sm:$0xff]
        %v2223 = vld [vmem:[%s31 + $0x18] sm:$0xff]
        %v2224 = vld [vmem:[#allocation19] sm:$0x1]
        %v2225 = vld [vmem:[#allocation21] sm:$0x1]
        %v2226 = vld [vmem:[%s37] sm:$0x1]
        %v2227 = vld [vmem:[%s39] sm:$0xff]
        %v2228 = vld [vmem:[%s39 + $0x8] sm:$0xff]
        %v2229 = vld [vmem:[%s39 + $0x10] sm:$0xff]
        %v2230 = vld [vmem:[%s39 + $0x18] sm:$0xff]
        %v2231 = vld [vmem:[#allocation22] sm:$0x1]
        %v2233 = vlaneseq
        %v2234 = vshrl.u32 %v2233, 7
        %v2235 = vsub.s32 0, %v2234
        %v2236 = vrot.slane %v2224, %v2235
        %vm2238 = vcmask 261120
        %v2240 = vsel %vm2238, %v2209, 0
        %2242 = vmatprep.subr.mxu0 0.0
        %2243 = vmatpush1.msra.mxu0 %v2212
        %2244 = vmatprep.subr.mxu0 0.0
        %2245 = vmatpush1.msra.mxu0 %v2213
        %2246 = vmatprep.subr.mxu0 0.0
        %2247 = vmatpush1.msra.mxu0 %v2214
        %2248 = vmatprep.subr.mxu0 0.0
        %2249 = vmatpush1.msra.mxu0 %v2215
        %2250 = vmatprep.subr.mxu0 0.0
        %2251 = vmatpush1.msra.mxu0 0.0
        %2252 = vmatprep.subr.mxu0 0.0
        %2253 = vmatpush1.msra.mxu0 0.0
        %2254 = vmatprep.subr.mxu0 0.0
        %2255 = vmatpush1.msra.mxu0 0.0
        %2256 = vmatprep.subr.mxu0 0.0
        %2257 = vmatpush1.msra.mxu0 0.0
        %2258 = vmatprep.subr.mxu0 0.0
        %2259 = vmatpush1.msra.mxu0 0.0
        %2260 = vmatprep.subr.mxu0 0.0
        %2261 = vmatpush1.msra.mxu0 0.0
        %2262 = vmatprep.subr.mxu0 0.0
        %2263 = vmatpush1.msra.mxu0 0.0
        %2264 = vmatprep.subr.mxu0 0.0
        %2265 = vmatpush1.msra.mxu0 0.0
        %2266 = vmatprep.subr.mxu0 0.0
        %2267 = vmatpush1.msra.mxu0 0.0
        %2268 = vmatprep.subr.mxu0 0.0
        %2269 = vmatpush1.msra.mxu0 0.0
        %2270 = vmatprep.subr.mxu0 0.0
        %2271 = vmatpush1.msra.mxu0 0.0
        %2272 = vmatprep.subr.mxu0 0.0
        %2273 = vmatpush1.msra.mxu0 0.0
        %2274 = vmatprep.subr.mxu0 0.0
        %2275 = vmatpush1.msra.mxu0 0.0
        %2276 = vmatprep.subr.mxu0 0.0
        %2277 = vmatpush1.msra.mxu0 0.0
        %2278 = vmatprep.subr.mxu0 0.0
        %2279 = vmatpush1.msra.mxu0 0.0
        %2280 = vmatprep.subr.mxu0 0.0
        %2281 = vmatpush1.msra.mxu0 0.0
        %2282 = vmatprep.subr.mxu0 0.0
        %2283 = vmatpush1.msra.mxu0 0.0
        %2284 = vmatprep.subr.mxu0 0.0
        %2285 = vmatpush1.msra.mxu0 0.0
        %2286 = vmatprep.subr.mxu0 0.0
        %2287 = vmatpush1.msra.mxu0 0.0
        %2288 = vmatprep.subr.mxu0 0.0
        %2289 = vmatpush1.msra.mxu0 0.0
        %2290 = vmatprep.subr.mxu0 0.0
        %2291 = vmatpush1.msra.mxu0 0.0
        %2292 = vmatprep.subr.mxu0 0.0
        %2293 = vmatpush1.msra.mxu0 0.0
        %2294 = vmatprep.subr.mxu0 0.0
        %2295 = vmatpush1.msra.mxu0 0.0
        %2296 = vmatprep.subr.mxu0 0.0
        %2297 = vmatpush1.msra.mxu0 0.0
        %2298 = vmatprep.subr.mxu0 0.0
        %2299 = vmatpush1.msra.mxu0 0.0
        %2300 = vmatprep.subr.mxu0 0.0
        %2301 = vmatpush1.msra.mxu0 0.0
        %2302 = vmatprep.subr.mxu0 0.0
        %2303 = vmatpush1.msra.mxu0 0.0
        %2304 = vmatprep.subr.mxu0 0.0
        %2305 = vmatpush1.msra.mxu0 0.0
        %2306 = vmatprep.mubr.f32.mxu0 0.0
        %2307 = vmatmul.mubr.f32.gmra.mrb[0].mxu0 %v2240
        %v2308 = vpop.f32.mrb[0].mxu0
        %v2309 = vadd.f32 %v2236, %v2308
        %v2310 = vpop.f32.mrb[0].mxu0
        %2311 = vdwg.mxu0
        %v2313 = vlaneseq
        %v2314 = vshrl.u32 %v2313, 7
        %v2315 = vsub.s32 0, %v2314
        %v2316 = vrot.slane %v2225, %v2315
        %2318 = vmatprep.subr.mxu0 0.0
        %2319 = vmatpush1.msra.mxu0 %v2216
        %2320 = vmatprep.subr.mxu0 0.0
        %2321 = vmatpush1.msra.mxu0 %v2217
        %2322 = vmatprep.subr.mxu0 0.0
        %2323 = vmatpush1.msra.mxu0 %v2218
        %2324 = vmatprep.subr.mxu0 0.0
        %2325 = vmatpush1.msra.mxu0 %v2219
        %2326 = vmatprep.subr.mxu0 0.0
        %2327 = vmatpush1.msra.mxu0 0.0
        %2328 = vmatprep.subr.mxu0 0.0
        %2329 = vmatpush1.msra.mxu0 0.0
        %2330 = vmatprep.subr.mxu0 0.0
        %2331 = vmatpush1.msra.mxu0 0.0
        %2332 = vmatprep.subr.mxu0 0.0
        %2333 = vmatpush1.msra.mxu0 0.0
        %2334 = vmatprep.subr.mxu0 0.0
        %2335 = vmatpush1.msra.mxu0 0.0
        %2336 = vmatprep.subr.mxu0 0.0
        %2337 = vmatpush1.msra.mxu0 0.0
        %2338 = vmatprep.subr.mxu0 0.0
        %2339 = vmatpush1.msra.mxu0 0.0
        %2340 = vmatprep.subr.mxu0 0.0
        %2341 = vmatpush1.msra.mxu0 0.0
        %2342 = vmatprep.subr.mxu0 0.0
        %2343 = vmatpush1.msra.mxu0 0.0
        %2344 = vmatprep.subr.mxu0 0.0
        %2345 = vmatpush1.msra.mxu0 0.0
        %2346 = vmatprep.subr.mxu0 0.0
        %2347 = vmatpush1.msra.mxu0 0.0
        %2348 = vmatprep.subr.mxu0 0.0
        %2349 = vmatpush1.msra.mxu0 0.0
        %2350 = vmatprep.subr.mxu0 0.0
        %2351 = vmatpush1.msra.mxu0 0.0
        %2352 = vmatprep.subr.mxu0 0.0
        %2353 = vmatpush1.msra.mxu0 0.0
        %2354 = vmatprep.subr.mxu0 0.0
        %2355 = vmatpush1.msra.mxu0 0.0
        %2356 = vmatprep.subr.mxu0 0.0
        %2357 = vmatpush1.msra.mxu0 0.0
        %2358 = vmatprep.subr.mxu0 0.0
        %2359 = vmatpush1.msra.mxu0 0.0
        %2360 = vmatprep.subr.mxu0 0.0
        %2361 = vmatpush1.msra.mxu0 0.0
        %2362 = vmatprep.subr.mxu0 0.0
        %2363 = vmatpush1.msra.mxu0 0.0
        %2364 = vmatprep.subr.mxu0 0.0
        %2365 = vmatpush1.msra.mxu0 0.0
        %2366 = vmatprep.subr.mxu0 0.0
        %2367 = vmatpush1.msra.mxu0 0.0
        %2368 = vmatprep.subr.mxu0 0.0
        %2369 = vmatpush1.msra.mxu0 0.0
        %2370 = vmatprep.subr.mxu0 0.0
        %2371 = vmatpush1.msra.mxu0 0.0
        %2372 = vmatprep.subr.mxu0 0.0
        %2373 = vmatpush1.msra.mxu0 0.0
        %2374 = vmatprep.subr.mxu0 0.0
        %2375 = vmatpush1.msra.mxu0 0.0
        %2376 = vmatprep.subr.mxu0 0.0
        %2377 = vmatpush1.msra.mxu0 0.0
        %2378 = vmatprep.subr.mxu0 0.0
        %2379 = vmatpush1.msra.mxu0 0.0
        %2380 = vmatprep.subr.mxu0 0.0
        %2381 = vmatpush1.msra.mxu0 0.0
        %2382 = vmatprep.mubr.f32.mxu0 0.0
        %2383 = vmatmul.mubr.f32.gmra.mrb[0].mxu0 %v2240
        %v2384 = vpop.f32.mrb[0].mxu0
        %v2385 = vadd.f32 %v2316, %v2384
        %v2386 = vpop.f32.mrb[0].mxu0
        %2387 = vdwg.mxu0
        %v2389 = vlaneseq
        %v2390 = vshrl.u32 %v2389, 7
        %v2391 = vsub.s32 0, %v2390
        %v2392 = vrot.slane %v2226, %v2391
        %2394 = vmatprep.subr.mxu0 0.0
        %2395 = vmatpush1.msra.mxu0 %v2220
        %2396 = vmatprep.subr.mxu0 0.0
        %2397 = vmatpush1.msra.mxu0 %v2221
        %2398 = vmatprep.subr.mxu0 0.0
        %2399 = vmatpush1.msra.mxu0 %v2222
        %2400 = vmatprep.subr.mxu0 0.0
        %2401 = vmatpush1.msra.mxu0 %v2223
        %2402 = vmatprep.subr.mxu0 0.0
        %2403 = vmatpush1.msra.mxu0 0.0
        %2404 = vmatprep.subr.mxu0 0.0
        %2405 = vmatpush1.msra.mxu0 0.0
        %2406 = vmatprep.subr.mxu0 0.0
        %2407 = vmatpush1.msra.mxu0 0.0
        %2408 = vmatprep.subr.mxu0 0.0
        %2409 = vmatpush1.msra.mxu0 0.0
        %2410 = vmatprep.subr.mxu0 0.0
        %2411 = vmatpush1.msra.mxu0 0.0
        %2412 = vmatprep.subr.mxu0 0.0
        %2413 = vmatpush1.msra.mxu0 0.0
        %2414 = vmatprep.subr.mxu0 0.0
        %2415 = vmatpush1.msra.mxu0 0.0
        %2416 = vmatprep.subr.mxu0 0.0
        %2417 = vmatpush1.msra.mxu0 0.0
        %2418 = vmatprep.subr.mxu0 0.0
        %2419 = vmatpush1.msra.mxu0 0.0
        %2420 = vmatprep.subr.mxu0 0.0
        %2421 = vmatpush1.msra.mxu0 0.0
        %2422 = vmatprep.subr.mxu0 0.0
        %2423 = vmatpush1.msra.mxu0 0.0
        %2424 = vmatprep.subr.mxu0 0.0
        %2425 = vmatpush1.msra.mxu0 0.0
        %2426 = vmatprep.subr.mxu0 0.0
        %2427 = vmatpush1.msra.mxu0 0.0
        %2428 = vmatprep.subr.mxu0 0.0
        %2429 = vmatpush1.msra.mxu0 0.0
        %2430 = vmatprep.subr.mxu0 0.0
        %2431 = vmatpush1.msra.mxu0 0.0
        %2432 = vmatprep.subr.mxu0 0.0
        %2433 = vmatpush1.msra.mxu0 0.0
        %2434 = vmatprep.subr.mxu0 0.0
        %2435 = vmatpush1.msra.mxu0 0.0
        %2436 = vmatprep.subr.mxu0 0.0
        %2437 = vmatpush1.msra.mxu0 0.0
        %2438 = vmatprep.subr.mxu0 0.0
        %2439 = vmatpush1.msra.mxu0 0.0
        %2440 = vmatprep.subr.mxu0 0.0
        %2441 = vmatpush1.msra.mxu0 0.0
        %2442 = vmatprep.subr.mxu0 0.0
        %2443 = vmatpush1.msra.mxu0 0.0
        %2444 = vmatprep.subr.mxu0 0.0
        %2445 = vmatpush1.msra.mxu0 0.0
        %2446 = vmatprep.subr.mxu0 0.0
        %2447 = vmatpush1.msra.mxu0 0.0
        %2448 = vmatprep.subr.mxu0 0.0
        %2449 = vmatpush1.msra.mxu0 0.0
        %2450 = vmatprep.subr.mxu0 0.0
        %2451 = vmatpush1.msra.mxu0 0.0
        %2452 = vmatprep.subr.mxu0 0.0
        %2453 = vmatpush1.msra.mxu0 0.0
        %2454 = vmatprep.subr.mxu0 0.0
        %2455 = vmatpush1.msra.mxu0 0.0
        %2456 = vmatprep.subr.mxu0 0.0
        %2457 = vmatpush1.msra.mxu0 0.0
        %2458 = vmatprep.mubr.f32.mxu0 0.0
        %2459 = vmatmul.mubr.f32.gmra.mrb[0].mxu0 %v2240
        %v2460 = vpop.f32.mrb[0].mxu0
        %v2461 = vadd.f32 %v2392, %v2460
        %v2462 = vpop.f32.mrb[0].mxu0
        %2463 = vdwg.mxu0
        %v2465 = vsel %vm2238, %v2309, 0
        %v2468 = vsel %vm2238, %v2385, 0
        %2470 = vmatprep.subr.mxu0 0.0
        %2471 = vmatpush1.xpose.msra.mxu0 %v2468
        %2472 = vmatprep.subr.mxu0 0.0
        %2473 = vmatpush1.xpose.msra.mxu0 0.0
        %2474 = vmatprep.subr.mxu0 0.0
        %2475 = vmatpush1.xpose.msra.mxu0 0.0
        %2476 = vmatprep.subr.mxu0 0.0
        %2477 = vmatpush1.xpose.msra.mxu0 0.0
        %2478 = vmatprep.subr.mxu0 0.0
        %2479 = vmatpush1.xpose.msra.mxu0 0.0
        %2480 = vmatprep.subr.mxu0 0.0
        %2481 = vmatpush1.xpose.msra.mxu0 0.0
        %2482 = vmatprep.subr.mxu0 0.0
        %2483 = vmatpush1.xpose.msra.mxu0 0.0
        %2484 = vmatprep.subr.mxu0 0.0
        %2485 = vmatpush1.xpose.msra.mxu0 0.0
        %2486 = vmatprep.subr.mxu0 0.0
        %2487 = vmatpush1.xpose.msra.mxu0 0.0
        %2488 = vmatprep.subr.mxu0 0.0
        %2489 = vmatpush1.xpose.msra.mxu0 0.0
        %2490 = vmatprep.subr.mxu0 0.0
        %2491 = vmatpush1.xpose.msra.mxu0 0.0
        %2492 = vmatprep.subr.mxu0 0.0
        %2493 = vmatpush1.xpose.msra.mxu0 0.0
        %2494 = vmatprep.subr.mxu0 0.0
        %2495 = vmatpush1.xpose.msra.mxu0 0.0
        %2496 = vmatprep.subr.mxu0 0.0
        %2497 = vmatpush1.xpose.msra.mxu0 0.0
        %2498 = vmatprep.subr.mxu0 0.0
        %2499 = vmatpush1.xpose.msra.mxu0 0.0
        %2500 = vmatprep.subr.mxu0 0.0
        %2501 = vmatpush1.xpose.msra.mxu0 0.0
        %2502 = vmatprep.subr.mxu0 0.0
        %2503 = vmatpush1.xpose.msra.mxu0 0.0
        %2504 = vmatprep.subr.mxu0 0.0
        %2505 = vmatpush1.xpose.msra.mxu0 0.0
        %2506 = vmatprep.subr.mxu0 0.0
        %2507 = vmatpush1.xpose.msra.mxu0 0.0
        %2508 = vmatprep.subr.mxu0 0.0
        %2509 = vmatpush1.xpose.msra.mxu0 0.0
        %2510 = vmatprep.subr.mxu0 0.0
        %2511 = vmatpush1.xpose.msra.mxu0 0.0
        %2512 = vmatprep.subr.mxu0 0.0
        %2513 = vmatpush1.xpose.msra.mxu0 0.0
        %2514 = vmatprep.subr.mxu0 0.0
        %2515 = vmatpush1.xpose.msra.mxu0 0.0
        %2516 = vmatprep.subr.mxu0 0.0
        %2517 = vmatpush1.xpose.msra.mxu0 0.0
        %2518 = vmatprep.subr.mxu0 0.0
        %2519 = vmatpush1.xpose.msra.mxu0 0.0
        %2520 = vmatprep.subr.mxu0 0.0
        %2521 = vmatpush1.xpose.msra.mxu0 0.0
        %2522 = vmatprep.subr.mxu0 0.0
        %2523 = vmatpush1.xpose.msra.mxu0 0.0
        %2524 = vmatprep.subr.mxu0 0.0
        %2525 = vmatpush1.xpose.msra.mxu0 0.0
        %2526 = vmatprep.subr.mxu0 0.0
        %2527 = vmatpush1.xpose.msra.mxu0 0.0
        %2528 = vmatprep.subr.mxu0 0.0
        %2529 = vmatpush1.xpose.msra.mxu0 0.0
        %2530 = vmatprep.subr.mxu0 0.0
        %2531 = vmatpush1.xpose.msra.mxu0 0.0
        %2532 = vmatprep.subr.mxu0 0.0
        %2533 = vmatpush1.xpose.msra.mxu0 0.0
        %2534 = vmatprep.mubr.f32.mxu0 0.0
        %2535 = vmatmul.mubr.f32.gmra.mrb[0].mxu0 %v2465
        %v2536 = vpop.f32.mrb[0].mxu0
        %v2537 = vadd.f32 0.0, %v2536
        %v2538 = vpop.f32.mrb[0].mxu0
        %2539 = vdwg.mxu0
        %v2540 = vmul.f32 %v2537, 0.17677669
        %v2541 = vsel %vm1633, %v2540, -inf
        %2542 = vmax.xlane.f32.xlu0 %v2541
        %v2543 = vpop.xlane.xlu0 %2542
        %v2544 = vsub.f32 %v2540, %v2543
        %v2545 = vmul.f32 %v2544, 1.442695
        %v2546 = vpow.pop %v2545
        %v2547 = vsel %vm1633, %v2546, 0.0
        %2548 = vadd.xlane.f32.xlu0 %v2547
        %v2549 = vpop.xlane.xlu0 %2548
        %v2550 = vrcp.pop %v2549
        %v2551 = vmul.f32 %v2546, %v2550
        %v2553 = vsel %vm1633, %v2551, 0
        %2555 = vmatprep.subr.mxu0 0.0
        %2556 = vmatpush1.msra.mxu0 %v2461
        %2557 = vmatprep.subr.mxu0 0.0
        %2558 = vmatpush1.msra.mxu0 0.0
        %2559 = vmatprep.subr.mxu0 0.0
        %2560 = vmatpush1.msra.mxu0 0.0
        %2561 = vmatprep.subr.mxu0 0.0
        %2562 = vmatpush1.msra.mxu0 0.0
        %2563 = vmatprep.subr.mxu0 0.0
        %2564 = vmatpush1.msra.mxu0 0.0
        %2565 = vmatprep.subr.mxu0 0.0
        %2566 = vmatpush1.msra.mxu0 0.0
        %2567 = vmatprep.subr.mxu0 0.0
        %2568 = vmatpush1.msra.mxu0 0.0
        %2569 = vmatprep.subr.mxu0 0.0
        %2570 = vmatpush1.msra.mxu0 0.0
        %2571 = vmatprep.subr.mxu0 0.0
        %2572 = vmatpush1.msra.mxu0 0.0
        %2573 = vmatprep.subr.mxu0 0.0
        %2574 = vmatpush1.msra.mxu0 0.0
        %2575 = vmatprep.subr.mxu0 0.0
        %2576 = vmatpush1.msra.mxu0 0.0
        %2577 = vmatprep.subr.mxu0 0.0
        %2578 = vmatpush1.msra.mxu0 0.0
        %2579 = vmatprep.subr.mxu0 0.0
        %2580 = vmatpush1.msra.mxu0 0.0
        %2581 = vmatprep.subr.mxu0 0.0
        %2582 = vmatpush1.msra.mxu0 0.0
        %2583 = vmatprep.subr.mxu0 0.0
        %2584 = vmatpush1.msra.mxu0 0.0
        %2585 = vmatprep.subr.mxu0 0.0
        %2586 = vmatpush1.msra.mxu0 0.0
        %2587 = vmatprep.subr.mxu0 0.0
        %2588 = vmatpush1.msra.mxu0 0.0
        %2589 = vmatprep.subr.mxu0 0.0
        %2590 = vmatpush1.msra.mxu0 0.0
        %2591 = vmatprep.subr.mxu0 0.0
        %2592 = vmatpush1.msra.mxu0 0.0
        %2593 = vmatprep.subr.mxu0 0.0
        %2594 = vmatpush1.msra.mxu0 0.0
        %2595 = vmatprep.subr.mxu0 0.0
        %2596 = vmatpush1.msra.mxu0 0.0
        %2597 = vmatprep.subr.mxu0 0.0
        %2598 = vmatpush1.msra.mxu0 0.0
        %2599 = vmatprep.subr.mxu0 0.0
        %2600 = vmatpush1.msra.mxu0 0.0
        %2601 = vmatprep.subr.mxu0 0.0
        %2602 = vmatpush1.msra.mxu0 0.0
        %2603 = vmatprep.subr.mxu0 0.0
        %2604 = vmatpush1.msra.mxu0 0.0
        %2605 = vmatprep.subr.mxu0 0.0
        %2606 = vmatpush1.msra.mxu0 0.0
        %2607 = vmatprep.subr.mxu0 0.0
        %2608 = vmatpush1.msra.mxu0 0.0
        %2609 = vmatprep.subr.mxu0 0.0
        %2610 = vmatpush1.msra.mxu0 0.0
        %2611 = vmatprep.subr.mxu0 0.0
        %2612 = vmatpush1.msra.mxu0 0.0
        %2613 = vmatprep.subr.mxu0 0.0
        %2614 = vmatpush1.msra.mxu0 0.0
        %2615 = vmatprep.subr.mxu0 0.0
        %2616 = vmatpush1.msra.mxu0 0.0
        %2617 = vmatprep.subr.mxu0 0.0
        %2618 = vmatpush1.msra.mxu0 0.0
        %2619 = vmatprep.mubr.f32.mxu0 0.0
        %2620 = vmatmul.mubr.f32.gmra.mrb[0].mxu0 %v2553
        %v2621 = vpop.f32.mrb[0].mxu0
        %v2622 = vadd.f32 0.0, %v2621
        %v2623 = vpop.f32.mrb[0].mxu0
        %2624 = vdwg.mxu0
        %v2626 = vlaneseq
        %v2627 = vshrl.u32 %v2626, 7
        %v2628 = vsub.s32 0, %v2627
        %v2629 = vrot.slane %v2231, %v2628
        %v2632 = vsel %vm2238, %v2622, 0
        %2634 = vmatprep.subr.mxu0 0.0
        %2635 = vmatpush1.msra.mxu0 %v2227
        %2636 = vmatprep.subr.mxu0 0.0
        %2637 = vmatpush1.msra.mxu0 %v2228
        %2638 = vmatprep.subr.mxu0 0.0
        %2639 = vmatpush1.msra.mxu0 %v2229
        %2640 = vmatprep.subr.mxu0 0.0
        %2641 = vmatpush1.msra.mxu0 %v2230
        %2642 = vmatprep.subr.mxu0 0.0
        %2643 = vmatpush1.msra.mxu0 0.0
        %2644 = vmatprep.subr.mxu0 0.0
        %2645 = vmatpush1.msra.mxu0 0.0
        %2646 = vmatprep.subr.mxu0 0.0
        %2647 = vmatpush1.msra.mxu0 0.0
        %2648 = vmatprep.subr.mxu0 0.0
        %2649 = vmatpush1.msra.mxu0 0.0
        %2650 = vmatprep.subr.mxu0 0.0
        %2651 = vmatpush1.msra.mxu0 0.0
        %2652 = vmatprep.subr.mxu0 0.0
        %2653 = vmatpush1.msra.mxu0 0.0
        %2654 = vmatprep.subr.mxu0 0.0
        %2655 = vmatpush1.msra.mxu0 0.0
        %2656 = vmatprep.subr.mxu0 0.0
        %2657 = vmatpush1.msra.mxu0 0.0
        %2658 = vmatprep.subr.mxu0 0.0
        %2659 = vmatpush1.msra.mxu0 0.0
        %2660 = vmatprep.subr.mxu0 0.0
        %2661 = vmatpush1.msra.mxu0 0.0
        %2662 = vmatprep.subr.mxu0 0.0
        %2663 = vmatpush1.msra.mxu0 0.0
        %2664 = vmatprep.subr.mxu0 0.0
        %2665 = vmatpush1.msra.mxu0 0.0
        %2666 = vmatprep.subr.mxu0 0.0
        %2667 = vmatpush1.msra.mxu0 0.0
        %2668 = vmatprep.subr.mxu0 0.0
        %2669 = vmatpush1.msra.mxu0 0.0
        %2670 = vmatprep.subr.mxu0 0.0
        %2671 = vmatpush1.msra.mxu0 0.0
        %2672 = vmatprep.subr.mxu0 0.0
        %2673 = vmatpush1.msra.mxu0 0.0
        %2674 = vmatprep.subr.mxu0 0.0
        %2675 = vmatpush1.msra.mxu0 0.0
        %2676 = vmatprep.subr.mxu0 0.0
        %2677 = vmatpush1.msra.mxu0 0.0
        %2678 = vmatprep.subr.mxu0 0.0
        %2679 = vmatpush1.msra.mxu0 0.0
        %2680 = vmatprep.subr.mxu0 0.0
        %2681 = vmatpush1.msra.mxu0 0.0
        %2682 = vmatprep.subr.mxu0 0.0
        %2683 = vmatpush1.msra.mxu0 0.0
        %2684 = vmatprep.subr.mxu0 0.0
        %2685 = vmatpush1.msra.mxu0 0.0
        %2686 = vmatprep.subr.mxu0 0.0
        %2687 = vmatpush1.msra.mxu0 0.0
        %2688 = vmatprep.subr.mxu0 0.0
        %2689 = vmatpush1.msra.mxu0 0.0
        %2690 = vmatprep.subr.mxu0 0.0
        %2691 = vmatpush1.msra.mxu0 0.0
        %2692 = vmatprep.subr.mxu0 0.0
        %2693 = vmatpush1.msra.mxu0 0.0
        %2694 = vmatprep.subr.mxu0 0.0
        %2695 = vmatpush1.msra.mxu0 0.0
        %2696 = vmatprep.subr.mxu0 0.0
        %2697 = vmatpush1.msra.mxu0 0.0
        %2698 = vmatprep.mubr.f32.mxu0 0.0
        %2699 = vmatmul.mubr.f32.gmra.mrb[0].mxu0 %v2632
        %v2700 = vpop.f32.mrb[0].mxu0
        %v2701 = vadd.f32 %v2629, %v2700
        %v2702 = vpop.f32.mrb[0].mxu0
        %2703 = vdwg.mxu0
        %v2704 = vmax.f32 %v2701, 0.0
        %v2705 = vld [vmem:[#allocation24] sm:$0xff]
        %v2706 = vld [vmem:[#allocation25] sm:$0x1]
        %v2708 = vlaneseq
        %v2709 = vshrl.u32 %v2708, 7
        %v2710 = vsub.s32 0, %v2709
        %v2711 = vrot.slane %v2706, %v2710
        %2713 = vxpose.xlu0.b32.start [1/16] %v2704, 128
        %2714 = vxpose.xlu0.b32.cont [2/16] 0.0, 128
        %2715 = vxpose.xlu0.b32.cont [3/16] 0.0, 128
        %2716 = vxpose.xlu0.b32.cont [4/16] 0.0, 128
        %2717 = vxpose.xlu0.b32.cont [5/16] 0.0, 128
        %2718 = vxpose.xlu0.b32.cont [6/16] 0.0, 128
        %2719 = vxpose.xlu0.b32.cont [7/16] 0.0, 128
        %2720 = vxpose.xlu0.b32.cont [8/16] 0.0, 128
        %2721 = vxpose.xlu0.b32.cont [9/16] 0.0, 128
        %2722 = vxpose.xlu0.b32.cont [10/16] 0.0, 128
        %2723 = vxpose.xlu0.b32.cont [11/16] 0.0, 128
        %2724 = vxpose.xlu0.b32.cont [12/16] 0.0, 128
        %2725 = vxpose.xlu0.b32.cont [13/16] 0.0, 128
        %2726 = vxpose.xlu0.b32.cont [14/16] 0.0, 128
        %2727 = vxpose.xlu0.b32.cont [15/16] 0.0, 128
        %2728 = vxpose.xlu0.b32.end [16/16] 0.0, 128
        %v2729 = vpop.trf.xlu0
        %v2730 = vpop.trf.xlu0
        %v2731 = vpop.trf.xlu0
        %v2732 = vpop.trf.xlu0
        %v2733 = vpop.trf.xlu0
        %v2734 = vpop.trf.xlu0
        %v2735 = vpop.trf.xlu0
        %v2736 = vpop.trf.xlu0
        %v2737 = vpop.trf.xlu0
        %v2738 = vpop.trf.xlu0
        %v2739 = vpop.trf.xlu0
        %v2740 = vpop.trf.xlu0
        %v2741 = vpop.trf.xlu0
        %v2742 = vpop.trf.xlu0
        %v2743 = vpop.trf.xlu0
        %v2744 = vpop.trf.xlu0
        %v2746 = vsel %vm1633, %v2729, 0
        %v2749 = vsel %vm1633, %v2730, 0
        %v2752 = vsel %vm1633, %v2731, 0
        %v2755 = vsel %vm1633, %v2732, 0
        %2757 = vmatprep.subr.mxu0 0.0
        %2758 = vmatpush1.msra.mxu0 %v2705
        %2759 = vmatprep.subr.mxu0 0.0
        %2760 = vmatpush1.msra.mxu0 0.0
        %2761 = vmatprep.subr.mxu0 0.0
        %2762 = vmatpush1.msra.mxu0 0.0
        %2763 = vmatprep.subr.mxu0 0.0
        %2764 = vmatpush1.msra.mxu0 0.0
        %2765 = vmatprep.subr.mxu0 0.0
        %2766 = vmatpush1.msra.mxu0 0.0
        %2767 = vmatprep.subr.mxu0 0.0
        %2768 = vmatpush1.msra.mxu0 0.0
        %2769 = vmatprep.subr.mxu0 0.0
        %2770 = vmatpush1.msra.mxu0 0.0
        %2771 = vmatprep.subr.mxu0 0.0
        %2772 = vmatpush1.msra.mxu0 0.0
        %2773 = vmatprep.subr.mxu0 0.0
        %2774 = vmatpush1.msra.mxu0 0.0
        %2775 = vmatprep.subr.mxu0 0.0
        %2776 = vmatpush1.msra.mxu0 0.0
        %2777 = vmatprep.subr.mxu0 0.0
        %2778 = vmatpush1.msra.mxu0 0.0
        %2779 = vmatprep.subr.mxu0 0.0
        %2780 = vmatpush1.msra.mxu0 0.0
        %2781 = vmatprep.subr.mxu0 0.0
        %2782 = vmatpush1.msra.mxu0 0.0
        %2783 = vmatprep.subr.mxu0 0.0
        %2784 = vmatpush1.msra.mxu0 0.0
        %2785 = vmatprep.subr.mxu0 0.0
        %2786 = vmatpush1.msra.mxu0 0.0
        %2787 = vmatprep.subr.mxu0 0.0
        %2788 = vmatpush1.msra.mxu0 0.0
        %2789 = vmatprep.subr.mxu0 0.0
        %2790 = vmatpush1.msra.mxu0 0.0
        %2791 = vmatprep.subr.mxu0 0.0
        %2792 = vmatpush1.msra.mxu0 0.0
        %2793 = vmatprep.subr.mxu0 0.0
        %2794 = vmatpush1.msra.mxu0 0.0
        %2795 = vmatprep.subr.mxu0 0.0
        %2796 = vmatpush1.msra.mxu0 0.0
        %2797 = vmatprep.subr.mxu0 0.0
        %2798 = vmatpush1.msra.mxu0 0.0
        %2799 = vmatprep.subr.mxu0 0.0
        %2800 = vmatpush1.msra.mxu0 0.0
        %2801 = vmatprep.subr.mxu0 0.0
        %2802 = vmatpush1.msra.mxu0 0.0
        %2803 = vmatprep.subr.mxu0 0.0
        %2804 = vmatpush1.msra.mxu0 0.0
        %2805 = vmatprep.subr.mxu0 0.0
        %2806 = vmatpush1.msra.mxu0 0.0
        %2807 = vmatprep.subr.mxu0 0.0
        %2808 = vmatpush1.msra.mxu0 0.0
        %2809 = vmatprep.subr.mxu0 0.0
        %2810 = vmatpush1.msra.mxu0 0.0
        %2811 = vmatprep.subr.mxu0 0.0
        %2812 = vmatpush1.msra.mxu0 0.0
        %2813 = vmatprep.subr.mxu0 0.0
        %2814 = vmatpush1.msra.mxu0 0.0
        %2815 = vmatprep.subr.mxu0 0.0
        %2816 = vmatpush1.msra.mxu0 0.0
        %2817 = vmatprep.subr.mxu0 0.0
        %2818 = vmatpush1.msra.mxu0 0.0
        %2819 = vmatprep.subr.mxu0 0.0
        %2820 = vmatpush1.msra.mxu0 0.0
        %2821 = vmatprep.mubr.f32.mxu0 0.0
        %2822 = vmatmul.mubr.f32.gmra.mrb[0].mxu0 %v2746
        %v2823 = vpop.f32.mrb[0].mxu0
        %v2824 = vadd.f32 %v2711, %v2823
        %v2825 = vpop.f32.mrb[0].mxu0
        %2826 = vmatprep.mubr.f32.mxu0 0.0
        %2827 = vmatmul.mubr.f32.gmra.mrb[0].mxu0 %v2749
        %v2828 = vpop.f32.mrb[0].mxu0
        %v2829 = vadd.f32 %v2711, %v2828
        %v2830 = vpop.f32.mrb[0].mxu0
        %2831 = vmatprep.mubr.f32.mxu0 0.0
        %2832 = vmatmul.mubr.f32.gmra.mrb[0].mxu0 %v2752
        %v2833 = vpop.f32.mrb[0].mxu0
        %v2834 = vadd.f32 %v2711, %v2833
        %v2835 = vpop.f32.mrb[0].mxu0
        %2836 = vmatprep.mubr.f32.mxu0 0.0
        %2837 = vmatmul.mubr.f32.gmra.mrb[0].mxu0 %v2755
        %v2838 = vpop.f32.mrb[0].mxu0
        %v2839 = vadd.f32 %v2711, %v2838
        %v2840 = vpop.f32.mrb[0].mxu0
        %2841 = vdwg.mxu0
        %v2842 = vld [vmem:[%s47] sm:$0xff]
        %v2843 = vld [vmem:[%s47 + $0x8] sm:$0xff]
        %v2844 = vld [vmem:[%s49] sm:$0xff]
        %v2845 = vld [vmem:[%s49 + $0x8] sm:$0xff]
        %v2846 = vld [vmem:[%s51] sm:$0xff]
        %v2847 = vld [vmem:[%s51 + $0x8] sm:$0xff]
        %v2848 = vld [vmem:[#allocation27] sm:$0x1]
        %v2849 = vld [vmem:[#allocation28] sm:$0x1]
        %v2850 = vld [vmem:[#allocation30] sm:$0x1]
        %v2851 = vld [vmem:[%s59] sm:$0xff]
        %v2852 = vld [vmem:[%s59 + $0x8] sm:$0xff]
        %v2853 = vld [vmem:[#allocation31] sm:$0x1]
        %v2855 = vlaneseq
        %v2856 = vshrl.u32 %v2855, 7
        %v2857 = vsub.s32 0, %v2856
        %v2858 = vrot.slane %v2848, %v2857
        %v2861 = vsel %vm1545, %v2824, 0
        %v2864 = vsel %vm1545, %v2829, 0
        %v2867 = vsel %vm1545, %v2834, 0
        %v2870 = vsel %vm1545, %v2839, 0
        %2872 = vmatprep.subr.mxu0 0.0
        %2873 = vmatpush1.msra.mxu0 %v2842
        %2874 = vmatprep.subr.mxu0 0.0
        %2875 = vmatpush1.msra.mxu0 %v2843
        %2876 = vmatprep.subr.mxu0 0.0
        %2877 = vmatpush1.msra.mxu0 0.0
        %2878 = vmatprep.subr.mxu0 0.0
        %2879 = vmatpush1.msra.mxu0 0.0
        %2880 = vmatprep.subr.mxu0 0.0
        %2881 = vmatpush1.msra.mxu0 0.0
        %2882 = vmatprep.subr.mxu0 0.0
        %2883 = vmatpush1.msra.mxu0 0.0
        %2884 = vmatprep.subr.mxu0 0.0
        %2885 = vmatpush1.msra.mxu0 0.0
        %2886 = vmatprep.subr.mxu0 0.0
        %2887 = vmatpush1.msra.mxu0 0.0
        %2888 = vmatprep.subr.mxu0 0.0
        %2889 = vmatpush1.msra.mxu0 0.0
        %2890 = vmatprep.subr.mxu0 0.0
        %2891 = vmatpush1.msra.mxu0 0.0
        %2892 = vmatprep.subr.mxu0 0.0
        %2893 = vmatpush1.msra.mxu0 0.0
        %2894 = vmatprep.subr.mxu0 0.0
        %2895 = vmatpush1.msra.mxu0 0.0
        %2896 = vmatprep.subr.mxu0 0.0
        %2897 = vmatpush1.msra.mxu0 0.0
        %2898 = vmatprep.subr.mxu0 0.0
        %2899 = vmatpush1.msra.mxu0 0.0
        %2900 = vmatprep.subr.mxu0 0.0
        %2901 = vmatpush1.msra.mxu0 0.0
        %2902 = vmatprep.subr.mxu0 0.0
        %2903 = vmatpush1.msra.mxu0 0.0
        %2904 = vmatprep.subr.mxu0 0.0
        %2905 = vmatpush1.msra.mxu0 0.0
        %2906 = vmatprep.subr.mxu0 0.0
        %2907 = vmatpush1.msra.mxu0 0.0
        %2908 = vmatprep.subr.mxu0 0.0
        %2909 = vmatpush1.msra.mxu0 0.0
        %2910 = vmatprep.subr.mxu0 0.0
        %2911 = vmatpush1.msra.mxu0 0.0
        %2912 = vmatprep.subr.mxu0 0.0
        %2913 = vmatpush1.msra.mxu0 0.0
        %2914 = vmatprep.subr.mxu0 0.0
        %2915 = vmatpush1.msra.mxu0 0.0
        %2916 = vmatprep.subr.mxu0 0.0
        %2917 = vmatpush1.msra.mxu0 0.0
        %2918 = vmatprep.subr.mxu0 0.0
        %2919 = vmatpush1.msra.mxu0 0.0
        %2920 = vmatprep.subr.mxu0 0.0
        %2921 = vmatpush1.msra.mxu0 0.0
        %2922 = vmatprep.subr.mxu0 0.0
        %2923 = vmatpush1.msra.mxu0 0.0
        %2924 = vmatprep.subr.mxu0 0.0
        %2925 = vmatpush1.msra.mxu0 0.0
        %2926 = vmatprep.subr.mxu0 0.0
        %2927 = vmatpush1.msra.mxu0 0.0
        %2928 = vmatprep.subr.mxu0 0.0
        %2929 = vmatpush1.msra.mxu0 0.0
        %2930 = vmatprep.subr.mxu0 0.0
        %2931 = vmatpush1.msra.mxu0 0.0
        %2932 = vmatprep.subr.mxu0 0.0
        %2933 = vmatpush1.msra.mxu0 0.0
        %2934 = vmatprep.subr.mxu0 0.0
        %2935 = vmatpush1.msra.mxu0 0.0
        %2936 = vmatprep.mubr.f32.mxu0 0.0
        %2937 = vmatmul.mubr.f32.gmra.mrb[0].mxu0 %v2861
        %v2938 = vpop.f32.mrb[0].mxu0
        %v2939 = vadd.f32 %v2858, %v2938
        %v2940 = vpop.f32.mrb[0].mxu0
        %2941 = vmatprep.mubr.f32.mxu0 0.0
        %2942 = vmatmul.mubr.f32.gmra.mrb[0].mxu0 %v2864
        %v2943 = vpop.f32.mrb[0].mxu0
        %v2944 = vadd.f32 %v2858, %v2943
        %v2945 = vpop.f32.mrb[0].mxu0
        %2946 = vmatprep.mubr.f32.mxu0 0.0
        %2947 = vmatmul.mubr.f32.gmra.mrb[0].mxu0 %v2867
        %v2948 = vpop.f32.mrb[0].mxu0
        %v2949 = vadd.f32 %v2858, %v2948
        %v2950 = vpop.f32.mrb[0].mxu0
        %2951 = vmatprep.mubr.f32.mxu0 0.0
        %2952 = vmatmul.mubr.f32.gmra.mrb[0].mxu0 %v2870
        %v2953 = vpop.f32.mrb[0].mxu0
        %v2954 = vadd.f32 %v2858, %v2953
        %v2955 = vpop.f32.mrb[0].mxu0
        %2956 = vdwg.mxu0
        %v2958 = vlaneseq
        %v2959 = vshrl.u32 %v2958, 7
        %v2960 = vsub.s32 0, %v2959
        %v2961 = vrot.slane %v2849, %v2960
        %2963 = vmatprep.subr.mxu0 0.0
        %2964 = vmatpush1.msra.mxu0 %v2844
        %2965 = vmatprep.subr.mxu0 0.0
        %2966 = vmatpush1.msra.mxu0 %v2845
        %2967 = vmatprep.subr.mxu0 0.0
        %2968 = vmatpush1.msra.mxu0 0.0
        %2969 = vmatprep.subr.mxu0 0.0
        %2970 = vmatpush1.msra.mxu0 0.0
        %2971 = vmatprep.subr.mxu0 0.0
        %2972 = vmatpush1.msra.mxu0 0.0
        %2973 = vmatprep.subr.mxu0 0.0
        %2974 = vmatpush1.msra.mxu0 0.0
        %2975 = vmatprep.subr.mxu0 0.0
        %2976 = vmatpush1.msra.mxu0 0.0
        %2977 = vmatprep.subr.mxu0 0.0
        %2978 = vmatpush1.msra.mxu0 0.0
        %2979 = vmatprep.subr.mxu0 0.0
        %2980 = vmatpush1.msra.mxu0 0.0
        %2981 = vmatprep.subr.mxu0 0.0
        %2982 = vmatpush1.msra.mxu0 0.0
        %2983 = vmatprep.subr.mxu0 0.0
        %2984 = vmatpush1.msra.mxu0 0.0
        %2985 = vmatprep.subr.mxu0 0.0
        %2986 = vmatpush1.msra.mxu0 0.0
        %2987 = vmatprep.subr.mxu0 0.0
        %2988 = vmatpush1.msra.mxu0 0.0
        %2989 = vmatprep.subr.mxu0 0.0
        %2990 = vmatpush1.msra.mxu0 0.0
        %2991 = vmatprep.subr.mxu0 0.0
        %2992 = vmatpush1.msra.mxu0 0.0
        %2993 = vmatprep.subr.mxu0 0.0
        %2994 = vmatpush1.msra.mxu0 0.0
        %2995 = vmatprep.subr.mxu0 0.0
        %2996 = vmatpush1.msra.mxu0 0.0
        %2997 = vmatprep.subr.mxu0 0.0
        %2998 = vmatpush1.msra.mxu0 0.0
        %2999 = vmatprep.subr.mxu0 0.0
        %3000 = vmatpush1.msra.mxu0 0.0
        %3001 = vmatprep.subr.mxu0 0.0
        %3002 = vmatpush1.msra.mxu0 0.0
        %3003 = vmatprep.subr.mxu0 0.0
        %3004 = vmatpush1.msra.mxu0 0.0
        %3005 = vmatprep.subr.mxu0 0.0
        %3006 = vmatpush1.msra.mxu0 0.0
        %3007 = vmatprep.subr.mxu0 0.0
        %3008 = vmatpush1.msra.mxu0 0.0
        %3009 = vmatprep.subr.mxu0 0.0
        %3010 = vmatpush1.msra.mxu0 0.0
        %3011 = vmatprep.subr.mxu0 0.0
        %3012 = vmatpush1.msra.mxu0 0.0
        %3013 = vmatprep.subr.mxu0 0.0
        %3014 = vmatpush1.msra.mxu0 0.0
        %3015 = vmatprep.subr.mxu0 0.0
        %3016 = vmatpush1.msra.mxu0 0.0
        %3017 = vmatprep.subr.mxu0 0.0
        %3018 = vmatpush1.msra.mxu0 0.0
        %3019 = vmatprep.subr.mxu0 0.0
        %3020 = vmatpush1.msra.mxu0 0.0
        %3021 = vmatprep.subr.mxu0 0.0
        %3022 = vmatpush1.msra.mxu0 0.0
        %3023 = vmatprep.subr.mxu0 0.0
        %3024 = vmatpush1.msra.mxu0 0.0
        %3025 = vmatprep.subr.mxu0 0.0
        %3026 = vmatpush1.msra.mxu0 0.0
        %3027 = vmatprep.mubr.f32.mxu0 0.0
        %3028 = vmatmul.mubr.f32.gmra.mrb[0].mxu0 %v2861
        %v3029 = vpop.f32.mrb[0].mxu0
        %v3030 = vadd.f32 %v2961, %v3029
        %v3031 = vpop.f32.mrb[0].mxu0
        %3032 = vmatprep.mubr.f32.mxu0 0.0
        %3033 = vmatmul.mubr.f32.gmra.mrb[0].mxu0 %v2864
        %v3034 = vpop.f32.mrb[0].mxu0
        %v3035 = vadd.f32 %v2961, %v3034
        %v3036 = vpop.f32.mrb[0].mxu0
        %3037 = vmatprep.mubr.f32.mxu0 0.0
        %3038 = vmatmul.mubr.f32.gmra.mrb[0].mxu0 %v2867
        %v3039 = vpop.f32.mrb[0].mxu0
        %v3040 = vadd.f32 %v2961, %v3039
        %v3041 = vpop.f32.mrb[0].mxu0
        %3042 = vmatprep.mubr.f32.mxu0 0.0
        %3043 = vmatmul.mubr.f32.gmra.mrb[0].mxu0 %v2870
        %v3044 = vpop.f32.mrb[0].mxu0
        %v3045 = vadd.f32 %v2961, %v3044
        %v3046 = vpop.f32.mrb[0].mxu0
        %3047 = vdwg.mxu0
        %v3049 = vlaneseq
        %v3050 = vshrl.u32 %v3049, 7
        %v3051 = vsub.s32 0, %v3050
        %v3052 = vrot.slane %v2850, %v3051
        %3054 = vmatprep.subr.mxu0 0.0
        %3055 = vmatpush1.msra.mxu0 %v2846
        %3056 = vmatprep.subr.mxu0 0.0
        %3057 = vmatpush1.msra.mxu0 %v2847
        %3058 = vmatprep.subr.mxu0 0.0
        %3059 = vmatpush1.msra.mxu0 0.0
        %3060 = vmatprep.subr.mxu0 0.0
        %3061 = vmatpush1.msra.mxu0 0.0
        %3062 = vmatprep.subr.mxu0 0.0
        %3063 = vmatpush1.msra.mxu0 0.0
        %3064 = vmatprep.subr.mxu0 0.0
        %3065 = vmatpush1.msra.mxu0 0.0
        %3066 = vmatprep.subr.mxu0 0.0
        %3067 = vmatpush1.msra.mxu0 0.0
        %3068 = vmatprep.subr.mxu0 0.0
        %3069 = vmatpush1.msra.mxu0 0.0
        %3070 = vmatprep.subr.mxu0 0.0
        %3071 = vmatpush1.msra.mxu0 0.0
        %3072 = vmatprep.subr.mxu0 0.0
        %3073 = vmatpush1.msra.mxu0 0.0
        %3074 = vmatprep.subr.mxu0 0.0
        %3075 = vmatpush1.msra.mxu0 0.0
        %3076 = vmatprep.subr.mxu0 0.0
        %3077 = vmatpush1.msra.mxu0 0.0
        %3078 = vmatprep.subr.mxu0 0.0
        %3079 = vmatpush1.msra.mxu0 0.0
        %3080 = vmatprep.subr.mxu0 0.0
        %3081 = vmatpush1.msra.mxu0 0.0
        %3082 = vmatprep.subr.mxu0 0.0
        %3083 = vmatpush1.msra.mxu0 0.0
        %3084 = vmatprep.subr.mxu0 0.0
        %3085 = vmatpush1.msra.mxu0 0.0
        %3086 = vmatprep.subr.mxu0 0.0
        %3087 = vmatpush1.msra.mxu0 0.0
        %3088 = vmatprep.subr.mxu0 0.0
        %3089 = vmatpush1.msra.mxu0 0.0
        %3090 = vmatprep.subr.mxu0 0.0
        %3091 = vmatpush1.msra.mxu0 0.0
        %3092 = vmatprep.subr.mxu0 0.0
        %3093 = vmatpush1.msra.mxu0 0.0
        %3094 = vmatprep.subr.mxu0 0.0
        %3095 = vmatpush1.msra.mxu0 0.0
        %3096 = vmatprep.subr.mxu0 0.0
        %3097 = vmatpush1.msra.mxu0 0.0
        %3098 = vmatprep.subr.mxu0 0.0
        %3099 = vmatpush1.msra.mxu0 0.0
        %3100 = vmatprep.subr.mxu0 0.0
        %3101 = vmatpush1.msra.mxu0 0.0
        %3102 = vmatprep.subr.mxu0 0.0
        %3103 = vmatpush1.msra.mxu0 0.0
        %3104 = vmatprep.subr.mxu0 0.0
        %3105 = vmatpush1.msra.mxu0 0.0
        %3106 = vmatprep.subr.mxu0 0.0
        %3107 = vmatpush1.msra.mxu0 0.0
        %3108 = vmatprep.subr.mxu0 0.0
        %3109 = vmatpush1.msra.mxu0 0.0
        %3110 = vmatprep.subr.mxu0 0.0
        %3111 = vmatpush1.msra.mxu0 0.0
        %3112 = vmatprep.subr.mxu0 0.0
        %3113 = vmatpush1.msra.mxu0 0.0
        %3114 = vmatprep.subr.mxu0 0.0
        %3115 = vmatpush1.msra.mxu0 0.0
        %3116 = vmatprep.subr.mxu0 0.0
        %3117 = vmatpush1.msra.mxu0 0.0
        %3118 = vmatprep.mubr.f32.mxu0 0.0
        %3119 = vmatmul.mubr.f32.gmra.mrb[0].mxu0 %v2861
        %v3120 = vpop.f32.mrb[0].mxu0
        %v3121 = vadd.f32 %v3052, %v3120
        %v3122 = vpop.f32.mrb[0].mxu0
        %3123 = vmatprep.mubr.f32.mxu0 0.0
        %3124 = vmatmul.mubr.f32.gmra.mrb[0].mxu0 %v2864
        %v3125 = vpop.f32.mrb[0].mxu0
        %v3126 = vadd.f32 %v3052, %v3125
        %v3127 = vpop.f32.mrb[0].mxu0
        %3128 = vmatprep.mubr.f32.mxu0 0.0
        %3129 = vmatmul.mubr.f32.gmra.mrb[0].mxu0 %v2867
        %v3130 = vpop.f32.mrb[0].mxu0
        %v3131 = vadd.f32 %v3052, %v3130
        %v3132 = vpop.f32.mrb[0].mxu0
        %3133 = vmatprep.mubr.f32.mxu0 0.0
        %3134 = vmatmul.mubr.f32.gmra.mrb[0].mxu0 %v2870
        %v3135 = vpop.f32.mrb[0].mxu0
        %v3136 = vadd.f32 %v3052, %v3135
        %v3137 = vpop.f32.mrb[0].mxu0
        %3138 = vdwg.mxu0
        %v3140 = vsel %vm1545, %v2939, 0
        %v3143 = vsel %vm1545, %v2944, 0
        %v3146 = vsel %vm1545, %v2949, 0
        %v3149 = vsel %vm1545, %v2954, 0
        %v3152 = vsel %vm1545, %v3030, 0
        %v3155 = vsel %vm1545, %v3035, 0
        %v3158 = vsel %vm1545, %v3040, 0
        %v3161 = vsel %vm1545, %v3045, 0
        %3163 = vmatprep.subr.mxu0 0.0
        %3164 = vmatpush1.xpose.msra.mxu0 %v3152
        %3165 = vmatprep.subr.mxu0 0.0
        %3166 = vmatpush1.xpose.msra.mxu0 %v3155
        %3167 = vmatprep.subr.mxu0 0.0
        %3168 = vmatpush1.xpose.msra.mxu0 %v3158
        %3169 = vmatprep.subr.mxu0 0.0
        %3170 = vmatpush1.xpose.msra.mxu0 %v3161
        %3171 = vmatprep.subr.mxu0 0.0
        %3172 = vmatpush1.xpose.msra.mxu0 0.0
        %3173 = vmatprep.subr.mxu0 0.0
        %3174 = vmatpush1.xpose.msra.mxu0 0.0
        %3175 = vmatprep.subr.mxu0 0.0
        %3176 = vmatpush1.xpose.msra.mxu0 0.0
        %3177 = vmatprep.subr.mxu0 0.0
        %3178 = vmatpush1.xpose.msra.mxu0 0.0
        %3179 = vmatprep.subr.mxu0 0.0
        %3180 = vmatpush1.xpose.msra.mxu0 0.0
        %3181 = vmatprep.subr.mxu0 0.0
        %3182 = vmatpush1.xpose.msra.mxu0 0.0
        %3183 = vmatprep.subr.mxu0 0.0
        %3184 = vmatpush1.xpose.msra.mxu0 0.0
        %3185 = vmatprep.subr.mxu0 0.0
        %3186 = vmatpush1.xpose.msra.mxu0 0.0
        %3187 = vmatprep.subr.mxu0 0.0
        %3188 = vmatpush1.xpose.msra.mxu0 0.0
        %3189 = vmatprep.subr.mxu0 0.0
        %3190 = vmatpush1.xpose.msra.mxu0 0.0
        %3191 = vmatprep.subr.mxu0 0.0
        %3192 = vmatpush1.xpose.msra.mxu0 0.0
        %3193 = vmatprep.subr.mxu0 0.0
        %3194 = vmatpush1.xpose.msra.mxu0 0.0
        %3195 = vmatprep.subr.mxu0 0.0
        %3196 = vmatpush1.xpose.msra.mxu0 0.0
        %3197 = vmatprep.subr.mxu0 0.0
        %3198 = vmatpush1.xpose.msra.mxu0 0.0
        %3199 = vmatprep.subr.mxu0 0.0
        %3200 = vmatpush1.xpose.msra.mxu0 0.0
        %3201 = vmatprep.subr.mxu0 0.0
        %3202 = vmatpush1.xpose.msra.mxu0 0.0
        %3203 = vmatprep.subr.mxu0 0.0
        %3204 = vmatpush1.xpose.msra.mxu0 0.0
        %3205 = vmatprep.subr.mxu0 0.0
        %3206 = vmatpush1.xpose.msra.mxu0 0.0
        %3207 = vmatprep.subr.mxu0 0.0
        %3208 = vmatpush1.xpose.msra.mxu0 0.0
        %3209 = vmatprep.subr.mxu0 0.0
        %3210 = vmatpush1.xpose.msra.mxu0 0.0
        %3211 = vmatprep.subr.mxu0 0.0
        %3212 = vmatpush1.xpose.msra.mxu0 0.0
        %3213 = vmatprep.subr.mxu0 0.0
        %3214 = vmatpush1.xpose.msra.mxu0 0.0
        %3215 = vmatprep.subr.mxu0 0.0
        %3216 = vmatpush1.xpose.msra.mxu0 0.0
        %3217 = vmatprep.subr.mxu0 0.0
        %3218 = vmatpush1.xpose.msra.mxu0 0.0
        %3219 = vmatprep.subr.mxu0 0.0
        %3220 = vmatpush1.xpose.msra.mxu0 0.0
        %3221 = vmatprep.subr.mxu0 0.0
        %3222 = vmatpush1.xpose.msra.mxu0 0.0
        %3223 = vmatprep.subr.mxu0 0.0
        %3224 = vmatpush1.xpose.msra.mxu0 0.0
        %3225 = vmatprep.subr.mxu0 0.0
        %3226 = vmatpush1.xpose.msra.mxu0 0.0
        %3227 = vmatprep.mubr.f32.mxu0 0.0
        %3228 = vmatmul.mubr.f32.gmra.mrb[0].mxu0 %v3140
        %v3229 = vpop.f32.mrb[0].mxu0
        %v3230 = vadd.f32 0.0, %v3229
        %v3231 = vpop.f32.mrb[0].mxu0
        %3232 = vmatprep.mubr.f32.mxu0 0.0
        %3233 = vmatmul.mubr.f32.gmra.mrb[0].mxu0 %v3143
        %v3234 = vpop.f32.mrb[0].mxu0
        %v3235 = vadd.f32 0.0, %v3234
        %v3236 = vpop.f32.mrb[0].mxu0
        %3237 = vmatprep.mubr.f32.mxu0 0.0
        %3238 = vmatmul.mubr.f32.gmra.mrb[0].mxu0 %v3146
        %v3239 = vpop.f32.mrb[0].mxu0
        %v3240 = vadd.f32 0.0, %v3239
        %v3241 = vpop.f32.mrb[0].mxu0
        %3242 = vmatprep.mubr.f32.mxu0 0.0
        %3243 = vmatmul.mubr.f32.gmra.mrb[0].mxu0 %v3149
        %v3244 = vpop.f32.mrb[0].mxu0
        %v3245 = vadd.f32 0.0, %v3244
        %v3246 = vpop.f32.mrb[0].mxu0
        %3247 = vdwg.mxu0
        %v3248 = vmul.f32 %v3230, 0.25
        %v3249 = vmul.f32 %v3235, 0.25
        %v3250 = vmul.f32 %v3240, 0.25
        %v3251 = vmul.f32 %v3245, 0.25
        %v3252 = vsel %vm2238, %v3248, -inf
        %3253 = vmax.xlane.f32.xlu0 %v3252
        %v3254 = vpop.xlane.xlu0 %3253
        %v3255 = vsel %vm2238, %v3249, -inf
        %3256 = vmax.xlane.f32.xlu0 %v3255
        %v3257 = vpop.xlane.xlu0 %3256
        %v3258 = vsel %vm2238, %v3250, -inf
        %3259 = vmax.xlane.f32.xlu0 %v3258
        %v3260 = vpop.xlane.xlu0 %3259
        %v3261 = vsel %vm2238, %v3251, -inf
        %3262 = vmax.xlane.f32.xlu0 %v3261
        %v3263 = vpop.xlane.xlu0 %3262
        %v3264 = vsub.f32 %v3248, %v3254
        %v3265 = vsub.f32 %v3249, %v3257
        %v3266 = vsub.f32 %v3250, %v3260
        %v3267 = vsub.f32 %v3251, %v3263
        %v3268 = vmul.f32 %v3264, 1.442695
        %v3269 = vpow.pop %v3268
        %v3270 = vmul.f32 %v3265, 1.442695
        %v3271 = vpow.pop %v3270
        %v3272 = vmul.f32 %v3266, 1.442695
        %v3273 = vpow.pop %v3272
        %v3274 = vmul.f32 %v3267, 1.442695
        %v3275 = vpow.pop %v3274
        %v3276 = vsel %vm2238, %v3269, 0.0
        %3277 = vadd.xlane.f32.xlu0 %v3276
        %v3278 = vpop.xlane.xlu0 %3277
        %v3279 = vsel %vm2238, %v3271, 0.0
        %3280 = vadd.xlane.f32.xlu0 %v3279
        %v3281 = vpop.xlane.xlu0 %3280
        %v3282 = vsel %vm2238, %v3273, 0.0
        %3283 = vadd.xlane.f32.xlu0 %v3282
        %v3284 = vpop.xlane.xlu0 %3283
        %v3285 = vsel %vm2238, %v3275, 0.0
        %3286 = vadd.xlane.f32.xlu0 %v3285
        %v3287 = vpop.xlane.xlu0 %3286
        %v3288 = vrcp.pop %v3278
        %v3289 = vrcp.pop %v3281
        %v3290 = vrcp.pop %v3284
        %v3291 = vrcp.pop %v3287
        %v3292 = vmul.f32 %v3269, %v3288
        %v3293 = vmul.f32 %v3271, %v3289
        %v3294 = vmul.f32 %v3273, %v3290
        %v3295 = vmul.f32 %v3275, %v3291
        %v3297 = vsel %vm2238, %v3292, 0
        %v3300 = vsel %vm2238, %v3293, 0
        %v3303 = vsel %vm2238, %v3294, 0
        %v3306 = vsel %vm2238, %v3295, 0
        %3308 = vmatprep.subr.mxu0 0.0
        %3309 = vmatpush1.msra.mxu0 %v3121
        %3310 = vmatprep.subr.mxu0 0.0
        %3311 = vmatpush1.msra.mxu0 %v3126
        %3312 = vmatprep.subr.mxu0 0.0
        %3313 = vmatpush1.msra.mxu0 %v3131
        %3314 = vmatprep.subr.mxu0 0.0
        %3315 = vmatpush1.msra.mxu0 %v3136
        %3316 = vmatprep.subr.mxu0 0.0
        %3317 = vmatpush1.msra.mxu0 0.0
        %3318 = vmatprep.subr.mxu0 0.0
        %3319 = vmatpush1.msra.mxu0 0.0
        %3320 = vmatprep.subr.mxu0 0.0
        %3321 = vmatpush1.msra.mxu0 0.0
        %3322 = vmatprep.subr.mxu0 0.0
        %3323 = vmatpush1.msra.mxu0 0.0
        %3324 = vmatprep.subr.mxu0 0.0
        %3325 = vmatpush1.msra.mxu0 0.0
        %3326 = vmatprep.subr.mxu0 0.0
        %3327 = vmatpush1.msra.mxu0 0.0
        %3328 = vmatprep.subr.mxu0 0.0
        %3329 = vmatpush1.msra.mxu0 0.0
        %3330 = vmatprep.subr.mxu0 0.0
        %3331 = vmatpush1.msra.mxu0 0.0
        %3332 = vmatprep.subr.mxu0 0.0
        %3333 = vmatpush1.msra.mxu0 0.0
        %3334 = vmatprep.subr.mxu0 0.0
        %3335 = vmatpush1.msra.mxu0 0.0
        %3336 = vmatprep.subr.mxu0 0.0
        %3337 = vmatpush1.msra.mxu0 0.0
        %3338 = vmatprep.subr.mxu0 0.0
        %3339 = vmatpush1.msra.mxu0 0.0
        %3340 = vmatprep.subr.mxu0 0.0
        %3341 = vmatpush1.msra.mxu0 0.0
        %3342 = vmatprep.subr.mxu0 0.0
        %3343 = vmatpush1.msra.mxu0 0.0
        %3344 = vmatprep.subr.mxu0 0.0
        %3345 = vmatpush1.msra.mxu0 0.0
        %3346 = vmatprep.subr.mxu0 0.0
        %3347 = vmatpush1.msra.mxu0 0.0
        %3348 = vmatprep.subr.mxu0 0.0
        %3349 = vmatpush1.msra.mxu0 0.0
        %3350 = vmatprep.subr.mxu0 0.0
        %3351 = vmatpush1.msra.mxu0 0.0
        %3352 = vmatprep.subr.mxu0 0.0
        %3353 = vmatpush1.msra.mxu0 0.0
        %3354 = vmatprep.subr.mxu0 0.0
        %3355 = vmatpush1.msra.mxu0 0.0
        %3356 = vmatprep.subr.mxu0 0.0
        %3357 = vmatpush1.msra.mxu0 0.0
        %3358 = vmatprep.subr.mxu0 0.0
        %3359 = vmatpush1.msra.mxu0 0.0
        %3360 = vmatprep.subr.mxu0 0.0
        %3361 = vmatpush1.msra.mxu0 0.0
        %3362 = vmatprep.subr.mxu0 0.0
        %3363 = vmatpush1.msra.mxu0 0.0
        %3364 = vmatprep.subr.mxu0 0.0
        %3365 = vmatpush1.msra.mxu0 0.0
        %3366 = vmatprep.subr.mxu0 0.0
        %3367 = vmatpush1.msra.mxu0 0.0
        %3368 = vmatprep.subr.mxu0 0.0
        %3369 = vmatpush1.msra.mxu0 0.0
        %3370 = vmatprep.subr.mxu0 0.0
        %3371 = vmatpush1.msra.mxu0 0.0
        %3372 = vmatprep.mubr.f32.mxu0 0.0
        %3373 = vmatmul.mubr.f32.gmra.mrb[0].mxu0 %v3297
        %v3374 = vpop.f32.mrb[0].mxu0
        %v3375 = vadd.f32 0.0, %v3374
        %v3376 = vpop.f32.mrb[0].mxu0
        %3377 = vmatprep.mubr.f32.mxu0 0.0
        %3378 = vmatmul.mubr.f32.gmra.mrb[0].mxu0 %v3300
        %v3379 = vpop.f32.mrb[0].mxu0
        %v3380 = vadd.f32 0.0, %v3379
        %v3381 = vpop.f32.mrb[0].mxu0
        %3382 = vmatprep.mubr.f32.mxu0 0.0
        %3383 = vmatmul.mubr.f32.gmra.mrb[0].mxu0 %v3303
        %v3384 = vpop.f32.mrb[0].mxu0
        %v3385 = vadd.f32 0.0, %v3384
        %v3386 = vpop.f32.mrb[0].mxu0
        %3387 = vmatprep.mubr.f32.mxu0 0.0
        %3388 = vmatmul.mubr.f32.gmra.mrb[0].mxu0 %v3306
        %v3389 = vpop.f32.mrb[0].mxu0
        %v3390 = vadd.f32 0.0, %v3389
        %v3391 = vpop.f32.mrb[0].mxu0
        %3392 = vdwg.mxu0
        %v3394 = vlaneseq
        %v3395 = vshrl.u32 %v3394, 7
        %v3396 = vsub.s32 0, %v3395
        %v3397 = vrot.slane %v2853, %v3396
        %v3400 = vsel %vm1545, %v3375, 0
        %v3403 = vsel %vm1545, %v3380, 0
        %v3406 = vsel %vm1545, %v3385, 0
        %v3409 = vsel %vm1545, %v3390, 0
        %3411 = vmatprep.subr.mxu0 0.0
        %3412 = vmatpush1.msra.mxu0 %v2851
        %3413 = vmatprep.subr.mxu0 0.0
        %3414 = vmatpush1.msra.mxu0 %v2852
        %3415 = vmatprep.subr.mxu0 0.0
        %3416 = vmatpush1.msra.mxu0 0.0
        %3417 = vmatprep.subr.mxu0 0.0
        %3418 = vmatpush1.msra.mxu0 0.0
        %3419 = vmatprep.subr.mxu0 0.0
        %3420 = vmatpush1.msra.mxu0 0.0
        %3421 = vmatprep.subr.mxu0 0.0
        %3422 = vmatpush1.msra.mxu0 0.0
        %3423 = vmatprep.subr.mxu0 0.0
        %3424 = vmatpush1.msra.mxu0 0.0
        %3425 = vmatprep.subr.mxu0 0.0
        %3426 = vmatpush1.msra.mxu0 0.0
        %3427 = vmatprep.subr.mxu0 0.0
        %3428 = vmatpush1.msra.mxu0 0.0
        %3429 = vmatprep.subr.mxu0 0.0
        %3430 = vmatpush1.msra.mxu0 0.0
        %3431 = vmatprep.subr.mxu0 0.0
        %3432 = vmatpush1.msra.mxu0 0.0
        %3433 = vmatprep.subr.mxu0 0.0
        %3434 = vmatpush1.msra.mxu0 0.0
        %3435 = vmatprep.subr.mxu0 0.0
        %3436 = vmatpush1.msra.mxu0 0.0
        %3437 = vmatprep.subr.mxu0 0.0
        %3438 = vmatpush1.msra.mxu0 0.0
        %3439 = vmatprep.subr.mxu0 0.0
        %3440 = vmatpush1.msra.mxu0 0.0
        %3441 = vmatprep.subr.mxu0 0.0
        %3442 = vmatpush1.msra.mxu0 0.0
        %3443 = vmatprep.subr.mxu0 0.0
        %3444 = vmatpush1.msra.mxu0 0.0
        %3445 = vmatprep.subr.mxu0 0.0
        %3446 = vmatpush1.msra.mxu0 0.0
        %3447 = vmatprep.subr.mxu0 0.0
        %3448 = vmatpush1.msra.mxu0 0.0
        %3449 = vmatprep.subr.mxu0 0.0
        %3450 = vmatpush1.msra.mxu0 0.0
        %3451 = vmatprep.subr.mxu0 0.0
        %3452 = vmatpush1.msra.mxu0 0.0
        %3453 = vmatprep.subr.mxu0 0.0
        %3454 = vmatpush1.msra.mxu0 0.0
        %3455 = vmatprep.subr.mxu0 0.0
        %3456 = vmatpush1.msra.mxu0 0.0
        %3457 = vmatprep.subr.mxu0 0.0
        %3458 = vmatpush1.msra.mxu0 0.0
        %3459 = vmatprep.subr.mxu0 0.0
        %3460 = vmatpush1.msra.mxu0 0.0
        %3461 = vmatprep.subr.mxu0 0.0
        %3462 = vmatpush1.msra.mxu0 0.0
        %3463 = vmatprep.subr.mxu0 0.0
        %3464 = vmatpush1.msra.mxu0 0.0
        %3465 = vmatprep.subr.mxu0 0.0
        %3466 = vmatpush1.msra.mxu0 0.0
        %3467 = vmatprep.subr.mxu0 0.0
        %3468 = vmatpush1.msra.mxu0 0.0
        %3469 = vmatprep.subr.mxu0 0.0
        %3470 = vmatpush1.msra.mxu0 0.0
        %3471 = vmatprep.subr.mxu0 0.0
        %3472 = vmatpush1.msra.mxu0 0.0
        %3473 = vmatprep.subr.mxu0 0.0
        %3474 = vmatpush1.msra.mxu0 0.0
        %3475 = vmatprep.mubr.f32.mxu0 0.0
        %3476 = vmatmul.mubr.f32.gmra.mrb[0].mxu0 %v3400
        %v3477 = vpop.f32.mrb[0].mxu0
        %v3478 = vadd.f32 %v3397, %v3477
        %v3479 = vpop.f32.mrb[0].mxu0
        %3480 = vmatprep.mubr.f32.mxu0 0.0
        %3481 = vmatmul.mubr.f32.gmra.mrb[0].mxu0 %v3403
        %v3482 = vpop.f32.mrb[0].mxu0
        %v3483 = vadd.f32 %v3397, %v3482
        %v3484 = vpop.f32.mrb[0].mxu0
        %3485 = vmatprep.mubr.f32.mxu0 0.0
        %3486 = vmatmul.mubr.f32.gmra.mrb[0].mxu0 %v3406
        %v3487 = vpop.f32.mrb[0].mxu0
        %v3488 = vadd.f32 %v3397, %v3487
        %v3489 = vpop.f32.mrb[0].mxu0
        %3490 = vmatprep.mubr.f32.mxu0 0.0
        %3491 = vmatmul.mubr.f32.gmra.mrb[0].mxu0 %v3409
        %v3492 = vpop.f32.mrb[0].mxu0
        %v3493 = vadd.f32 %v3397, %v3492
        %v3494 = vpop.f32.mrb[0].mxu0
        %3495 = vdwg.mxu0
        %v3496 = vld [vmem:[%s63] sm:$0xff]
        %v3497 = vld [vmem:[%s63 + $0x8] sm:$0xff]
        %v3498 = vld [vmem:[%s63 + $0x10] sm:$0xff]
        %v3499 = vld [vmem:[%s63 + $0x18] sm:$0xff]
        %v3500 = vld [vmem:[#allocation33] sm:$0x1]
        %v3502 = vlaneseq
        %v3503 = vshrl.u32 %v3502, 7
        %v3504 = vsub.s32 0, %v3503
        %v3505 = vrot.slane %v3500, %v3504
        %3507 = vxpose.xlu0.b32.start [1/16] %v3478, 128
        %3508 = vxpose.xlu0.b32.cont [2/16] %v3483, 128
        %3509 = vxpose.xlu0.b32.cont [3/16] %v3488, 128
        %3510 = vxpose.xlu0.b32.cont [4/16] %v3493, 128
        %3511 = vxpose.xlu0.b32.cont [5/16] 0.0, 128
        %3512 = vxpose.xlu0.b32.cont [6/16] 0.0, 128
        %3513 = vxpose.xlu0.b32.cont [7/16] 0.0, 128
        %3514 = vxpose.xlu0.b32.cont [8/16] 0.0, 128
        %3515 = vxpose.xlu0.b32.cont [9/16] 0.0, 128
        %3516 = vxpose.xlu0.b32.cont [10/16] 0.0, 128
        %3517 = vxpose.xlu0.b32.cont [11/16] 0.0, 128
        %3518 = vxpose.xlu0.b32.cont [12/16] 0.0, 128
        %3519 = vxpose.xlu0.b32.cont [13/16] 0.0, 128
        %3520 = vxpose.xlu0.b32.cont [14/16] 0.0, 128
        %3521 = vxpose.xlu0.b32.cont [15/16] 0.0, 128
        %3522 = vxpose.xlu0.b32.end [16/16] 0.0, 128
        %v3523 = vpop.trf.xlu0
        %v3524 = vpop.trf.xlu0
        %v3525 = vpop.trf.xlu0
        %v3526 = vpop.trf.xlu0
        %v3527 = vpop.trf.xlu0
        %v3528 = vpop.trf.xlu0
        %v3529 = vpop.trf.xlu0
        %v3530 = vpop.trf.xlu0
        %v3531 = vpop.trf.xlu0
        %v3532 = vpop.trf.xlu0
        %v3533 = vpop.trf.xlu0
        %v3534 = vpop.trf.xlu0
        %v3535 = vpop.trf.xlu0
        %v3536 = vpop.trf.xlu0
        %v3537 = vpop.trf.xlu0
        %v3538 = vpop.trf.xlu0
        %v3540 = vsel %vm2238, %v3523, 0
        %v3543 = vsel %vm2238, %v3524, 0
        %3545 = vmatprep.subr.mxu0 0.0
        %3546 = vmatpush1.msra.mxu0 %v3496
        %3547 = vmatprep.subr.mxu0 0.0
        %3548 = vmatpush1.msra.mxu0 %v3497
        %3549 = vmatprep.subr.mxu0 0.0
        %3550 = vmatpush1.msra.mxu0 %v3498
        %3551 = vmatprep.subr.mxu0 0.0
        %3552 = vmatpush1.msra.mxu0 %v3499
        %3553 = vmatprep.subr.mxu0 0.0
        %3554 = vmatpush1.msra.mxu0 0.0
        %3555 = vmatprep.subr.mxu0 0.0
        %3556 = vmatpush1.msra.mxu0 0.0
        %3557 = vmatprep.subr.mxu0 0.0
        %3558 = vmatpush1.msra.mxu0 0.0
        %3559 = vmatprep.subr.mxu0 0.0
        %3560 = vmatpush1.msra.mxu0 0.0
        %3561 = vmatprep.subr.mxu0 0.0
        %3562 = vmatpush1.msra.mxu0 0.0
        %3563 = vmatprep.subr.mxu0 0.0
        %3564 = vmatpush1.msra.mxu0 0.0
        %3565 = vmatprep.subr.mxu0 0.0
        %3566 = vmatpush1.msra.mxu0 0.0
        %3567 = vmatprep.subr.mxu0 0.0
        %3568 = vmatpush1.msra.mxu0 0.0
        %3569 = vmatprep.subr.mxu0 0.0
        %3570 = vmatpush1.msra.mxu0 0.0
        %3571 = vmatprep.subr.mxu0 0.0
        %3572 = vmatpush1.msra.mxu0 0.0
        %3573 = vmatprep.subr.mxu0 0.0
        %3574 = vmatpush1.msra.mxu0 0.0
        %3575 = vmatprep.subr.mxu0 0.0
        %3576 = vmatpush1.msra.mxu0 0.0
        %3577 = vmatprep.subr.mxu0 0.0
        %3578 = vmatpush1.msra.mxu0 0.0
        %3579 = vmatprep.subr.mxu0 0.0
        %3580 = vmatpush1.msra.mxu0 0.0
        %3581 = vmatprep.subr.mxu0 0.0
        %3582 = vmatpush1.msra.mxu0 0.0
        %3583 = vmatprep.subr.mxu0 0.0
        %3584 = vmatpush1.msra.mxu0 0.0
        %3585 = vmatprep.subr.mxu0 0.0
        %3586 = vmatpush1.msra.mxu0 0.0
        %3587 = vmatprep.subr.mxu0 0.0
        %3588 = vmatpush1.msra.mxu0 0.0
        %3589 = vmatprep.subr.mxu0 0.0
        %3590 = vmatpush1.msra.mxu0 0.0
        %3591 = vmatprep.subr.mxu0 0.0
        %3592 = vmatpush1.msra.mxu0 0.0
        %3593 = vmatprep.subr.mxu0 0.0
        %3594 = vmatpush1.msra.mxu0 0.0
        %3595 = vmatprep.subr.mxu0 0.0
        %3596 = vmatpush1.msra.mxu0 0.0
        %3597 = vmatprep.subr.mxu0 0.0
        %3598 = vmatpush1.msra.mxu0 0.0
        %3599 = vmatprep.subr.mxu0 0.0
        %3600 = vmatpush1.msra.mxu0 0.0
        %3601 = vmatprep.subr.mxu0 0.0
        %3602 = vmatpush1.msra.mxu0 0.0
        %3603 = vmatprep.subr.mxu0 0.0
        %3604 = vmatpush1.msra.mxu0 0.0
        %3605 = vmatprep.subr.mxu0 0.0
        %3606 = vmatpush1.msra.mxu0 0.0
        %3607 = vmatprep.subr.mxu0 0.0
        %3608 = vmatpush1.msra.mxu0 0.0
        %3609 = vmatprep.mubr.f32.mxu0 0.0
        %3610 = vmatmul.mubr.f32.gmra.mrb[0].mxu0 %v3540
        %v3611 = vpop.f32.mrb[0].mxu0
        %v3612 = vadd.f32 %v3505, %v3611
        %v3613 = vpop.f32.mrb[0].mxu0
        %3614 = vmatprep.mubr.f32.mxu0 0.0
        %3615 = vmatmul.mubr.f32.gmra.mrb[0].mxu0 %v3543
        %v3616 = vpop.f32.mrb[0].mxu0
        %v3617 = vadd.f32 %v3505, %v3616
        %v3618 = vpop.f32.mrb[0].mxu0
        %3619 = vdwg.mxu0
        %v3620 = vld [vmem:[%s67] sm:$0xff]
        %v3621 = vld [vmem:[%s69] sm:$0xff]
        %v3622 = vld [vmem:[%s71] sm:$0xff]
        %v3623 = vld [vmem:[%s73] sm:$0x1]
        %v3624 = vld [vmem:[%s75] sm:$0x1]
        %v3625 = vld [vmem:[%s77] sm:$0x1]
        %v3626 = vld [vmem:[%s79] sm:$0xff]
        %v3627 = vld [vmem:[%s81] sm:$0x1]
        %v3629 = vlaneseq
        %v3630 = vshrl.u32 %v3629, 7
        %v3631 = vsub.s32 0, %v3630
        %v3632 = vrot.slane %v3623, %v3631
        %v3635 = vsel %vm1633, %v3612, 0
        %v3638 = vsel %vm1633, %v3617, 0
        %3640 = vmatprep.subr.mxu0 0.0
        %3641 = vmatpush1.msra.mxu0 %v3620
        %3642 = vmatprep.subr.mxu0 0.0
        %3643 = vmatpush1.msra.mxu0 0.0
        %3644 = vmatprep.subr.mxu0 0.0
        %3645 = vmatpush1.msra.mxu0 0.0
        %3646 = vmatprep.subr.mxu0 0.0
        %3647 = vmatpush1.msra.mxu0 0.0
        %3648 = vmatprep.subr.mxu0 0.0
        %3649 = vmatpush1.msra.mxu0 0.0
        %3650 = vmatprep.subr.mxu0 0.0
        %3651 = vmatpush1.msra.mxu0 0.0
        %3652 = vmatprep.subr.mxu0 0.0
        %3653 = vmatpush1.msra.mxu0 0.0
        %3654 = vmatprep.subr.mxu0 0.0
        %3655 = vmatpush1.msra.mxu0 0.0
        %3656 = vmatprep.subr.mxu0 0.0
        %3657 = vmatpush1.msra.mxu0 0.0
        %3658 = vmatprep.subr.mxu0 0.0
        %3659 = vmatpush1.msra.mxu0 0.0
        %3660 = vmatprep.subr.mxu0 0.0
        %3661 = vmatpush1.msra.mxu0 0.0
        %3662 = vmatprep.subr.mxu0 0.0
        %3663 = vmatpush1.msra.mxu0 0.0
        %3664 = vmatprep.subr.mxu0 0.0
        %3665 = vmatpush1.msra.mxu0 0.0
        %3666 = vmatprep.subr.mxu0 0.0
        %3667 = vmatpush1.msra.mxu0 0.0
        %3668 = vmatprep.subr.mxu0 0.0
        %3669 = vmatpush1.msra.mxu0 0.0
        %3670 = vmatprep.subr.mxu0 0.0
        %3671 = vmatpush1.msra.mxu0 0.0
        %3672 = vmatprep.subr.mxu0 0.0
        %3673 = vmatpush1.msra.mxu0 0.0
        %3674 = vmatprep.subr.mxu0 0.0
        %3675 = vmatpush1.msra.mxu0 0.0
        %3676 = vmatprep.subr.mxu0 0.0
        %3677 = vmatpush1.msra.mxu0 0.0
        %3678 = vmatprep.subr.mxu0 0.0
        %3679 = vmatpush1.msra.mxu0 0.0
        %3680 = vmatprep.subr.mxu0 0.0
        %3681 = vmatpush1.msra.mxu0 0.0
        %3682 = vmatprep.subr.mxu0 0.0
        %3683 = vmatpush1.msra.mxu0 0.0
        %3684 = vmatprep.subr.mxu0 0.0
        %3685 = vmatpush1.msra.mxu0 0.0
        %3686 = vmatprep.subr.mxu0 0.0
        %3687 = vmatpush1.msra.mxu0 0.0
        %3688 = vmatprep.subr.mxu0 0.0
        %3689 = vmatpush1.msra.mxu0 0.0
        %3690 = vmatprep.subr.mxu0 0.0
        %3691 = vmatpush1.msra.mxu0 0.0
        %3692 = vmatprep.subr.mxu0 0.0
        %3693 = vmatpush1.msra.mxu0 0.0
        %3694 = vmatprep.subr.mxu0 0.0
        %3695 = vmatpush1.msra.mxu0 0.0
        %3696 = vmatprep.subr.mxu0 0.0
        %3697 = vmatpush1.msra.mxu0 0.0
        %3698 = vmatprep.subr.mxu0 0.0
        %3699 = vmatpush1.msra.mxu0 0.0
        %3700 = vmatprep.subr.mxu0 0.0
        %3701 = vmatpush1.msra.mxu0 0.0
        %3702 = vmatprep.subr.mxu0 0.0
        %3703 = vmatpush1.msra.mxu0 0.0
        %3704 = vmatprep.mubr.f32.mxu0 0.0
        %3705 = vmatmul.mubr.f32.gmra.mrb[0].mxu0 %v3635
        %v3706 = vpop.f32.mrb[0].mxu0
        %v3707 = vadd.f32 %v3632, %v3706
        %v3708 = vpop.f32.mrb[0].mxu0
        %3709 = vmatprep.mubr.f32.mxu0 0.0
        %3710 = vmatmul.mubr.f32.gmra.mrb[0].mxu0 %v3638
        %v3711 = vpop.f32.mrb[0].mxu0
        %v3712 = vadd.f32 %v3632, %v3711
        %v3713 = vpop.f32.mrb[0].mxu0
        %3714 = vdwg.mxu0
        %v3716 = vlaneseq
        %v3717 = vshrl.u32 %v3716, 7
        %v3718 = vsub.s32 0, %v3717
        %v3719 = vrot.slane %v3624, %v3718
        %3721 = vmatprep.subr.mxu0 0.0
        %3722 = vmatpush1.msra.mxu0 %v3621
        %3723 = vmatprep.subr.mxu0 0.0
        %3724 = vmatpush1.msra.mxu0 0.0
        %3725 = vmatprep.subr.mxu0 0.0
        %3726 = vmatpush1.msra.mxu0 0.0
        %3727 = vmatprep.subr.mxu0 0.0
        %3728 = vmatpush1.msra.mxu0 0.0
        %3729 = vmatprep.subr.mxu0 0.0
        %3730 = vmatpush1.msra.mxu0 0.0
        %3731 = vmatprep.subr.mxu0 0.0
        %3732 = vmatpush1.msra.mxu0 0.0
        %3733 = vmatprep.subr.mxu0 0.0
        %3734 = vmatpush1.msra.mxu0 0.0
        %3735 = vmatprep.subr.mxu0 0.0
        %3736 = vmatpush1.msra.mxu0 0.0
        %3737 = vmatprep.subr.mxu0 0.0
        %3738 = vmatpush1.msra.mxu0 0.0
        %3739 = vmatprep.subr.mxu0 0.0
        %3740 = vmatpush1.msra.mxu0 0.0
        %3741 = vmatprep.subr.mxu0 0.0
        %3742 = vmatpush1.msra.mxu0 0.0
        %3743 = vmatprep.subr.mxu0 0.0
        %3744 = vmatpush1.msra.mxu0 0.0
        %3745 = vmatprep.subr.mxu0 0.0
        %3746 = vmatpush1.msra.mxu0 0.0
        %3747 = vmatprep.subr.mxu0 0.0
        %3748 = vmatpush1.msra.mxu0 0.0
        %3749 = vmatprep.subr.mxu0 0.0
        %3750 = vmatpush1.msra.mxu0 0.0
        %3751 = vmatprep.subr.mxu0 0.0
        %3752 = vmatpush1.msra.mxu0 0.0
        %3753 = vmatprep.subr.mxu0 0.0
        %3754 = vmatpush1.msra.mxu0 0.0
        %3755 = vmatprep.subr.mxu0 0.0
        %3756 = vmatpush1.msra.mxu0 0.0
        %3757 = vmatprep.subr.mxu0 0.0
        %3758 = vmatpush1.msra.mxu0 0.0
        %3759 = vmatprep.subr.mxu0 0.0
        %3760 = vmatpush1.msra.mxu0 0.0
        %3761 = vmatprep.subr.mxu0 0.0
        %3762 = vmatpush1.msra.mxu0 0.0
        %3763 = vmatprep.subr.mxu0 0.0
        %3764 = vmatpush1.msra.mxu0 0.0
        %3765 = vmatprep.subr.mxu0 0.0
        %3766 = vmatpush1.msra.mxu0 0.0
        %3767 = vmatprep.subr.mxu0 0.0
        %3768 = vmatpush1.msra.mxu0 0.0
        %3769 = vmatprep.subr.mxu0 0.0
        %3770 = vmatpush1.msra.mxu0 0.0
        %3771 = vmatprep.subr.mxu0 0.0
        %3772 = vmatpush1.msra.mxu0 0.0
        %3773 = vmatprep.subr.mxu0 0.0
        %3774 = vmatpush1.msra.mxu0 0.0
        %3775 = vmatprep.subr.mxu0 0.0
        %3776 = vmatpush1.msra.mxu0 0.0
        %3777 = vmatprep.subr.mxu0 0.0
        %3778 = vmatpush1.msra.mxu0 0.0
        %3779 = vmatprep.subr.mxu0 0.0
        %3780 = vmatpush1.msra.mxu0 0.0
        %3781 = vmatprep.subr.mxu0 0.0
        %3782 = vmatpush1.msra.mxu0 0.0
        %3783 = vmatprep.subr.mxu0 0.0
        %3784 = vmatpush1.msra.mxu0 0.0
        %3785 = vmatprep.mubr.f32.mxu0 0.0
        %3786 = vmatmul.mubr.f32.gmra.mrb[0].mxu0 %v3635
        %v3787 = vpop.f32.mrb[0].mxu0
        %v3788 = vadd.f32 %v3719, %v3787
        %v3789 = vpop.f32.mrb[0].mxu0
        %3790 = vmatprep.mubr.f32.mxu0 0.0
        %3791 = vmatmul.mubr.f32.gmra.mrb[0].mxu0 %v3638
        %v3792 = vpop.f32.mrb[0].mxu0
        %v3793 = vadd.f32 %v3719, %v3792
        %v3794 = vpop.f32.mrb[0].mxu0
        %3795 = vdwg.mxu0
        %v3797 = vlaneseq
        %v3798 = vshrl.u32 %v3797, 7
        %v3799 = vsub.s32 0, %v3798
        %v3800 = vrot.slane %v3625, %v3799
        %3802 = vmatprep.subr.mxu0 0.0
        %3803 = vmatpush1.msra.mxu0 %v3622
        %3804 = vmatprep.subr.mxu0 0.0
        %3805 = vmatpush1.msra.mxu0 0.0
        %3806 = vmatprep.subr.mxu0 0.0
        %3807 = vmatpush1.msra.mxu0 0.0
        %3808 = vmatprep.subr.mxu0 0.0
        %3809 = vmatpush1.msra.mxu0 0.0
        %3810 = vmatprep.subr.mxu0 0.0
        %3811 = vmatpush1.msra.mxu0 0.0
        %3812 = vmatprep.subr.mxu0 0.0
        %3813 = vmatpush1.msra.mxu0 0.0
        %3814 = vmatprep.subr.mxu0 0.0
        %3815 = vmatpush1.msra.mxu0 0.0
        %3816 = vmatprep.subr.mxu0 0.0
        %3817 = vmatpush1.msra.mxu0 0.0
        %3818 = vmatprep.subr.mxu0 0.0
        %3819 = vmatpush1.msra.mxu0 0.0
        %3820 = vmatprep.subr.mxu0 0.0
        %3821 = vmatpush1.msra.mxu0 0.0
        %3822 = vmatprep.subr.mxu0 0.0
        %3823 = vmatpush1.msra.mxu0 0.0
        %3824 = vmatprep.subr.mxu0 0.0
        %3825 = vmatpush1.msra.mxu0 0.0
        %3826 = vmatprep.subr.mxu0 0.0
        %3827 = vmatpush1.msra.mxu0 0.0
        %3828 = vmatprep.subr.mxu0 0.0
        %3829 = vmatpush1.msra.mxu0 0.0
        %3830 = vmatprep.subr.mxu0 0.0
        %3831 = vmatpush1.msra.mxu0 0.0
        %3832 = vmatprep.subr.mxu0 0.0
        %3833 = vmatpush1.msra.mxu0 0.0
        %3834 = vmatprep.subr.mxu0 0.0
        %3835 = vmatpush1.msra.mxu0 0.0
        %3836 = vmatprep.subr.mxu0 0.0
        %3837 = vmatpush1.msra.mxu0 0.0
        %3838 = vmatprep.subr.mxu0 0.0
        %3839 = vmatpush1.msra.mxu0 0.0
        %3840 = vmatprep.subr.mxu0 0.0
        %3841 = vmatpush1.msra.mxu0 0.0
        %3842 = vmatprep.subr.mxu0 0.0
        %3843 = vmatpush1.msra.mxu0 0.0
        %3844 = vmatprep.subr.mxu0 0.0
        %3845 = vmatpush1.msra.mxu0 0.0
        %3846 = vmatprep.subr.mxu0 0.0
        %3847 = vmatpush1.msra.mxu0 0.0
        %3848 = vmatprep.subr.mxu0 0.0
        %3849 = vmatpush1.msra.mxu0 0.0
        %3850 = vmatprep.subr.mxu0 0.0
        %3851 = vmatpush1.msra.mxu0 0.0
        %3852 = vmatprep.subr.mxu0 0.0
        %3853 = vmatpush1.msra.mxu0 0.0
        %3854 = vmatprep.subr.mxu0 0.0
        %3855 = vmatpush1.msra.mxu0 0.0
        %3856 = vmatprep.subr.mxu0 0.0
        %3857 = vmatpush1.msra.mxu0 0.0
        %3858 = vmatprep.subr.mxu0 0.0
        %3859 = vmatpush1.msra.mxu0 0.0
        %3860 = vmatprep.subr.mxu0 0.0
        %3861 = vmatpush1.msra.mxu0 0.0
        %3862 = vmatprep.subr.mxu0 0.0
        %3863 = vmatpush1.msra.mxu0 0.0
        %3864 = vmatprep.subr.mxu0 0.0
        %3865 = vmatpush1.msra.mxu0 0.0
        %3866 = vmatprep.mubr.f32.mxu0 0.0
        %3867 = vmatmul.mubr.f32.gmra.mrb[0].mxu0 %v3635
        %v3868 = vpop.f32.mrb[0].mxu0
        %v3869 = vadd.f32 %v3800, %v3868
        %v3870 = vpop.f32.mrb[0].mxu0
        %3871 = vmatprep.mubr.f32.mxu0 0.0
        %3872 = vmatmul.mubr.f32.gmra.mrb[0].mxu0 %v3638
        %v3873 = vpop.f32.mrb[0].mxu0
        %v3874 = vadd.f32 %v3800, %v3873
        %v3875 = vpop.f32.mrb[0].mxu0
        %3876 = vdwg.mxu0
        %v3878 = vsel %vm1633, %v3707, 0
        %v3881 = vsel %vm1633, %v3712, 0
        %v3884 = vsel %vm1633, %v3788, 0
        %v3887 = vsel %vm1633, %v3793, 0
        %3889 = vmatprep.subr.mxu0 0.0
        %3890 = vmatpush1.xpose.msra.mxu0 %v3884
        %3891 = vmatprep.subr.mxu0 0.0
        %3892 = vmatpush1.xpose.msra.mxu0 %v3887
        %3893 = vmatprep.subr.mxu0 0.0
        %3894 = vmatpush1.xpose.msra.mxu0 0.0
        %3895 = vmatprep.subr.mxu0 0.0
        %3896 = vmatpush1.xpose.msra.mxu0 0.0
        %3897 = vmatprep.subr.mxu0 0.0
        %3898 = vmatpush1.xpose.msra.mxu0 0.0
        %3899 = vmatprep.subr.mxu0 0.0
        %3900 = vmatpush1.xpose.msra.mxu0 0.0
        %3901 = vmatprep.subr.mxu0 0.0
        %3902 = vmatpush1.xpose.msra.mxu0 0.0
        %3903 = vmatprep.subr.mxu0 0.0
        %3904 = vmatpush1.xpose.msra.mxu0 0.0
        %3905 = vmatprep.subr.mxu0 0.0
        %3906 = vmatpush1.xpose.msra.mxu0 0.0
        %3907 = vmatprep.subr.mxu0 0.0
        %3908 = vmatpush1.xpose.msra.mxu0 0.0
        %3909 = vmatprep.subr.mxu0 0.0
        %3910 = vmatpush1.xpose.msra.mxu0 0.0
        %3911 = vmatprep.subr.mxu0 0.0
        %3912 = vmatpush1.xpose.msra.mxu0 0.0
        %3913 = vmatprep.subr.mxu0 0.0
        %3914 = vmatpush1.xpose.msra.mxu0 0.0
        %3915 = vmatprep.subr.mxu0 0.0
        %3916 = vmatpush1.xpose.msra.mxu0 0.0
        %3917 = vmatprep.subr.mxu0 0.0
        %3918 = vmatpush1.xpose.msra.mxu0 0.0
        %3919 = vmatprep.subr.mxu0 0.0
        %3920 = vmatpush1.xpose.msra.mxu0 0.0
        %3921 = vmatprep.subr.mxu0 0.0
        %3922 = vmatpush1.xpose.msra.mxu0 0.0
        %3923 = vmatprep.subr.mxu0 0.0
        %3924 = vmatpush1.xpose.msra.mxu0 0.0
        %3925 = vmatprep.subr.mxu0 0.0
        %3926 = vmatpush1.xpose.msra.mxu0 0.0
        %3927 = vmatprep.subr.mxu0 0.0
        %3928 = vmatpush1.xpose.msra.mxu0 0.0
        %3929 = vmatprep.subr.mxu0 0.0
        %3930 = vmatpush1.xpose.msra.mxu0 0.0
        %3931 = vmatprep.subr.mxu0 0.0
        %3932 = vmatpush1.xpose.msra.mxu0 0.0
        %3933 = vmatprep.subr.mxu0 0.0
        %3934 = vmatpush1.xpose.msra.mxu0 0.0
        %3935 = vmatprep.subr.mxu0 0.0
        %3936 = vmatpush1.xpose.msra.mxu0 0.0
        %3937 = vmatprep.subr.mxu0 0.0
        %3938 = vmatpush1.xpose.msra.mxu0 0.0
        %3939 = vmatprep.subr.mxu0 0.0
        %3940 = vmatpush1.xpose.msra.mxu0 0.0
        %3941 = vmatprep.subr.mxu0 0.0
        %3942 = vmatpush1.xpose.msra.mxu0 0.0
        %3943 = vmatprep.subr.mxu0 0.0
        %3944 = vmatpush1.xpose.msra.mxu0 0.0
        %3945 = vmatprep.subr.mxu0 0.0
        %3946 = vmatpush1.xpose.msra.mxu0 0.0
        %3947 = vmatprep.subr.mxu0 0.0
        %3948 = vmatpush1.xpose.msra.mxu0 0.0
        %3949 = vmatprep.subr.mxu0 0.0
        %3950 = vmatpush1.xpose.msra.mxu0 0.0
        %3951 = vmatprep.subr.mxu0 0.0
        %3952 = vmatpush1.xpose.msra.mxu0 0.0
        %3953 = vmatprep.mubr.f32.mxu0 0.0
        %3954 = vmatmul.mubr.f32.gmra.mrb[0].mxu0 %v3878
        %v3955 = vpop.f32.mrb[0].mxu0
        %v3956 = vadd.f32 0.0, %v3955
        %v3957 = vpop.f32.mrb[0].mxu0
        %3958 = vmatprep.mubr.f32.mxu0 0.0
        %3959 = vmatmul.mubr.f32.gmra.mrb[0].mxu0 %v3881
        %v3960 = vpop.f32.mrb[0].mxu0
        %v3961 = vadd.f32 0.0, %v3960
        %v3962 = vpop.f32.mrb[0].mxu0
        %3963 = vdwg.mxu0
        %v3964 = vmul.f32 %v3956, 0.35355338
        %v3965 = vmul.f32 %v3961, 0.35355338
        %v3966 = vsel %vm1545, %v3964, -inf
        %3967 = vmax.xlane.f32.xlu0 %v3966
        %v3968 = vpop.xlane.xlu0 %3967
        %v3969 = vsel %vm1545, %v3965, -inf
        %3970 = vmax.xlane.f32.xlu0 %v3969
        %v3971 = vpop.xlane.xlu0 %3970
        %v3972 = vsub.f32 %v3964, %v3968
        %v3973 = vsub.f32 %v3965, %v3971
        %v3974 = vmul.f32 %v3972, 1.442695
        %v3975 = vpow.pop %v3974
        %v3976 = vmul.f32 %v3973, 1.442695
        %v3977 = vpow.pop %v3976
        %v3978 = vsel %vm1545, %v3975, 0.0
        %3979 = vadd.xlane.f32.xlu0 %v3978
        %v3980 = vpop.xlane.xlu0 %3979
        %v3981 = vsel %vm1545, %v3977, 0.0
        %3982 = vadd.xlane.f32.xlu0 %v3981
        %v3983 = vpop.xlane.xlu0 %3982
        %v3984 = vrcp.pop %v3980
        %v3985 = vrcp.pop %v3983
        %v3986 = vmul.f32 %v3975, %v3984
        %v3987 = vmul.f32 %v3977, %v3985
        %v3989 = vsel %vm1545, %v3986, 0
        %v3992 = vsel %vm1545, %v3987, 0
        %3994 = vmatprep.subr.mxu0 0.0
        %3995 = vmatpush1.msra.mxu0 %v3869
        %3996 = vmatprep.subr.mxu0 0.0
        %3997 = vmatpush1.msra.mxu0 %v3874
        %3998 = vmatprep.subr.mxu0 0.0
        %3999 = vmatpush1.msra.mxu0 0.0
        %4000 = vmatprep.subr.mxu0 0.0
        %4001 = vmatpush1.msra.mxu0 0.0
        %4002 = vmatprep.subr.mxu0 0.0
        %4003 = vmatpush1.msra.mxu0 0.0
        %4004 = vmatprep.subr.mxu0 0.0
        %4005 = vmatpush1.msra.mxu0 0.0
        %4006 = vmatprep.subr.mxu0 0.0
        %4007 = vmatpush1.msra.mxu0 0.0
        %4008 = vmatprep.subr.mxu0 0.0
        %4009 = vmatpush1.msra.mxu0 0.0
        %4010 = vmatprep.subr.mxu0 0.0
        %4011 = vmatpush1.msra.mxu0 0.0
        %4012 = vmatprep.subr.mxu0 0.0
        %4013 = vmatpush1.msra.mxu0 0.0
        %4014 = vmatprep.subr.mxu0 0.0
        %4015 = vmatpush1.msra.mxu0 0.0
        %4016 = vmatprep.subr.mxu0 0.0
        %4017 = vmatpush1.msra.mxu0 0.0
        %4018 = vmatprep.subr.mxu0 0.0
        %4019 = vmatpush1.msra.mxu0 0.0
        %4020 = vmatprep.subr.mxu0 0.0
        %4021 = vmatpush1.msra.mxu0 0.0
        %4022 = vmatprep.subr.mxu0 0.0
        %4023 = vmatpush1.msra.mxu0 0.0
        %4024 = vmatprep.subr.mxu0 0.0
        %4025 = vmatpush1.msra.mxu0 0.0
        %4026 = vmatprep.subr.mxu0 0.0
        %4027 = vmatpush1.msra.mxu0 0.0
        %4028 = vmatprep.subr.mxu0 0.0
        %4029 = vmatpush1.msra.mxu0 0.0
        %4030 = vmatprep.subr.mxu0 0.0
        %4031 = vmatpush1.msra.mxu0 0.0
        %4032 = vmatprep.subr.mxu0 0.0
        %4033 = vmatpush1.msra.mxu0 0.0
        %4034 = vmatprep.subr.mxu0 0.0
        %4035 = vmatpush1.msra.mxu0 0.0
        %4036 = vmatprep.subr.mxu0 0.0
        %4037 = vmatpush1.msra.mxu0 0.0
        %4038 = vmatprep.subr.mxu0 0.0
        %4039 = vmatpush1.msra.mxu0 0.0
        %4040 = vmatprep.subr.mxu0 0.0
        %4041 = vmatpush1.msra.mxu0 0.0
        %4042 = vmatprep.subr.mxu0 0.0
        %4043 = vmatpush1.msra.mxu0 0.0
        %4044 = vmatprep.subr.mxu0 0.0
        %4045 = vmatpush1.msra.mxu0 0.0
        %4046 = vmatprep.subr.mxu0 0.0
        %4047 = vmatpush1.msra.mxu0 0.0
        %4048 = vmatprep.subr.mxu0 0.0
        %4049 = vmatpush1.msra.mxu0 0.0
        %4050 = vmatprep.subr.mxu0 0.0
        %4051 = vmatpush1.msra.mxu0 0.0
        %4052 = vmatprep.subr.mxu0 0.0
        %4053 = vmatpush1.msra.mxu0 0.0
        %4054 = vmatprep.subr.mxu0 0.0
        %4055 = vmatpush1.msra.mxu0 0.0
        %4056 = vmatprep.subr.mxu0 0.0
        %4057 = vmatpush1.msra.mxu0 0.0
        %4058 = vmatprep.mubr.f32.mxu0 0.0
        %4059 = vmatmul.mubr.f32.gmra.mrb[0].mxu0 %v3989
        %v4060 = vpop.f32.mrb[0].mxu0
        %v4061 = vadd.f32 0.0, %v4060
        %v4062 = vpop.f32.mrb[0].mxu0
        %4063 = vmatprep.mubr.f32.mxu0 0.0
        %4064 = vmatmul.mubr.f32.gmra.mrb[0].mxu0 %v3992
        %v4065 = vpop.f32.mrb[0].mxu0
        %v4066 = vadd.f32 0.0, %v4065
        %v4067 = vpop.f32.mrb[0].mxu0
        %4068 = vdwg.mxu0
        %v4070 = vlaneseq
        %v4071 = vshrl.u32 %v4070, 7
        %v4072 = vsub.s32 0, %v4071
        %v4073 = vrot.slane %v3627, %v4072
        %v4076 = vsel %vm1633, %v4061, 0
        %v4079 = vsel %vm1633, %v4066, 0
        %4081 = vmatprep.subr.mxu0 0.0
        %4082 = vmatpush1.msra.mxu0 %v3626
        %4083 = vmatprep.subr.mxu0 0.0
        %4084 = vmatpush1.msra.mxu0 0.0
        %4085 = vmatprep.subr.mxu0 0.0
        %4086 = vmatpush1.msra.mxu0 0.0
        %4087 = vmatprep.subr.mxu0 0.0
        %4088 = vmatpush1.msra.mxu0 0.0
        %4089 = vmatprep.subr.mxu0 0.0
        %4090 = vmatpush1.msra.mxu0 0.0
        %4091 = vmatprep.subr.mxu0 0.0
        %4092 = vmatpush1.msra.mxu0 0.0
        %4093 = vmatprep.subr.mxu0 0.0
        %4094 = vmatpush1.msra.mxu0 0.0
        %4095 = vmatprep.subr.mxu0 0.0
        %4096 = vmatpush1.msra.mxu0 0.0
        %4097 = vmatprep.subr.mxu0 0.0
        %4098 = vmatpush1.msra.mxu0 0.0
        %4099 = vmatprep.subr.mxu0 0.0
        %4100 = vmatpush1.msra.mxu0 0.0
        %4101 = vmatprep.subr.mxu0 0.0
        %4102 = vmatpush1.msra.mxu0 0.0
        %4103 = vmatprep.subr.mxu0 0.0
        %4104 = vmatpush1.msra.mxu0 0.0
        %4105 = vmatprep.subr.mxu0 0.0
        %4106 = vmatpush1.msra.mxu0 0.0
        %4107 = vmatprep.subr.mxu0 0.0
        %4108 = vmatpush1.msra.mxu0 0.0
        %4109 = vmatprep.subr.mxu0 0.0
        %4110 = vmatpush1.msra.mxu0 0.0
        %4111 = vmatprep.subr.mxu0 0.0
        %4112 = vmatpush1.msra.mxu0 0.0
        %4113 = vmatprep.subr.mxu0 0.0
        %4114 = vmatpush1.msra.mxu0 0.0
        %4115 = vmatprep.subr.mxu0 0.0
        %4116 = vmatpush1.msra.mxu0 0.0
        %4117 = vmatprep.subr.mxu0 0.0
        %4118 = vmatpush1.msra.mxu0 0.0
        %4119 = vmatprep.subr.mxu0 0.0
        %4120 = vmatpush1.msra.mxu0 0.0
        %4121 = vmatprep.subr.mxu0 0.0
        %4122 = vmatpush1.msra.mxu0 0.0
        %4123 = vmatprep.subr.mxu0 0.0
        %4124 = vmatpush1.msra.mxu0 0.0
        %4125 = vmatprep.subr.mxu0 0.0
        %4126 = vmatpush1.msra.mxu0 0.0
        %4127 = vmatprep.subr.mxu0 0.0
        %4128 = vmatpush1.msra.mxu0 0.0
        %4129 = vmatprep.subr.mxu0 0.0
        %4130 = vmatpush1.msra.mxu0 0.0
        %4131 = vmatprep.subr.mxu0 0.0
        %4132 = vmatpush1.msra.mxu0 0.0
        %4133 = vmatprep.subr.mxu0 0.0
        %4134 = vmatpush1.msra.mxu0 0.0
        %4135 = vmatprep.subr.mxu0 0.0
        %4136 = vmatpush1.msra.mxu0 0.0
        %4137 = vmatprep.subr.mxu0 0.0
        %4138 = vmatpush1.msra.mxu0 0.0
        %4139 = vmatprep.subr.mxu0 0.0
        %4140 = vmatpush1.msra.mxu0 0.0
        %4141 = vmatprep.subr.mxu0 0.0
        %4142 = vmatpush1.msra.mxu0 0.0
        %4143 = vmatprep.subr.mxu0 0.0
        %4144 = vmatpush1.msra.mxu0 0.0
        %4145 = vmatprep.mubr.f32.mxu0 0.0
        %4146 = vmatmul.mubr.f32.gmra.mrb[0].mxu0 %v4076
        %v4147 = vpop.f32.mrb[0].mxu0
        %v4148 = vadd.f32 %v4073, %v4147
        %v4149 = vpop.f32.mrb[0].mxu0
        %4150 = vmatprep.mubr.f32.mxu0 0.0
        %4151 = vmatmul.mubr.f32.gmra.mrb[0].mxu0 %v4079
        %v4152 = vpop.f32.mrb[0].mxu0
        %v4153 = vadd.f32 %v4073, %v4152
        %v4154 = vpop.f32.mrb[0].mxu0
        %4155 = vdwg.mxu0
        %4156 = vst.msk [vmem:[%s1501] sm:$0xff] %vm1633, %v4148
        %4157 = vst.msk [vmem:[%s1501 + $0x8] sm:$0xff] %vm1633, %v4153
        %p4158 = scmp.lt.s32.totalorder %s105, 1
        %s4159 = scalar_select %p4158, %s105, 1
        %s4160 = smul.addr %s4159, 2
        %s4161 = smul.addr %s4160, 8
        %s4162 = scalar_lea.vmem %s83, %s4161
        // Predicated region
        $region269: #{tpu_custom_call.1} parent=183 // pred_check
          %p4163 = pneg %p989
        $region270: #{tpu_custom_call.1} parent=183 // pred_check_branch
          %4165 = sbr.rel (%p4163) target = $region272
        $region271: #{tpu_custom_call.1} parent=183 // pred_region
          _
        $region272: #{tpu_custom_call.1} parent=183 // pred_fallthru
          _
      $region184: #{tpu_custom_call.1} parent=5 // pred_fallthru
        _
      %p4166 = scmp.le.s32.totalorder 2, %s100
      // Predicated region
      $region273: #{tpu_custom_call.1} parent=5 // pred_check
        %p4167 = pneg %p4166
      $region274: #{tpu_custom_call.1} parent=5 // pred_check_branch
        %4169 = sbr.rel (%p4167) target = $region276
      $region275: #{tpu_custom_call.1} parent=5 // pred_region
        %s4170 = ssub.s32 %s100, 2
        // Predicated region
        $region277: #{tpu_custom_call.1} parent=275 // pred_check
          %p4171 = pneg %p995
        $region278: #{tpu_custom_call.1} parent=275 // pred_check_branch
          %4173 = sbr.rel (%p4171) target = $region280
        $region279: #{tpu_custom_call.1} parent=275 // pred_region
          %p4174 = scmp.lt.s32.totalorder %s106, 1
          %s4175 = scalar_select %p4174, %s106, 1
          %s4176 = smul.addr %s4175, 2
          %s4177 = smul.addr %s4176, 8
          %s4178 = scalar_lea.vmem %s83, %s4177
        $region280: #{tpu_custom_call.1} parent=275 // pred_fallthru
          _
      $region276: #{tpu_custom_call.1} parent=5 // pred_fallthru
        _
    $region6: #{tpu_custom_call.1} parent=1 // loop_footer
      %s104 = sadd.s32 1, %s100
    $region7: #{tpu_custom_call.1} parent=1 // loop_footer_branch
      %99 = sbr.rel target = $region3
    $region8: #{tpu_custom_call.1} parent=1 // loop_exit
      _
    %4179 = vsyncpa [#allocation3], 1
    %s4180 = scalar_lea.sflag [#allocation3], 1
    %4181 = vsyncpa %s4180, 1
    %4182 = vsyncpa [#allocation5], 1
    %4183 = vsyncpa [#allocation8], 1
    %4184 = vsyncpa [#allocation11], 1
    %4185 = vsyncpa [#allocation14], 1
    %4186 = vsyncpa [#allocation17], 1
    %4187 = vsyncpa [#allocation20], 1
    %4188 = vsyncpa [#allocation23], 1
    %4189 = vsyncpa [#allocation26], 1
    %4190 = vsyncpa [#allocation29], 1
    %4191 = vsyncpa [#allocation32], 1

</llo_original>
